<compile_context>
chip_gen: v7x
topology: tpu7x:2x2x1
jax: 0.10.0
libtpu: 0.0.40
codegen_flags: <defaults>
</compile_context>

<pallas_src>
import math

import jax
import jax.numpy as jnp
from jax.experimental import pallas as pl
from jax.experimental.pallas import tpu as pltpu


# ------------------------- fused Pallas kernel -------------------------

def make_fused_lstm_kernel(n_layers, T, H, t_chunk):
    """BN-folded input proj -> n_layers LSTM (length-masked) -> mean-over-time -> L2 norm.

    Gate columns were pre-permuted in the wrapper to [i, f, o, g].
    """

    def kernel(*refs):
        # refs = [x, lens, (wx, wh, b) * n_layers, out, (seq_scr if n_layers > 1)]
        x_ref = refs[0]                                   # (T, NB, C)
        lens_ref = refs[1]                                # (NB, 1) f32 valid lengths
        layer_refs = refs[2:2 + 3 * n_layers]
        o_ref = refs[2 + 3 * n_layers]                    # (NB, H)
        seq_scr = refs[3 + 3 * n_layers] if n_layers > 1 else None

        NB = x_ref.shape[1]
        lens = lens_ref[...]                              # (NB, 1)

        for layer in range(n_layers):
            wx_ref = layer_refs[3 * layer + 0]            # (Din, 4H), columns [i|f|o|g]
            wh_ref = layer_refs[3 * layer + 1]            # (H,   4H)
            b_ref = layer_refs[3 * layer + 2]             # (1,   4H) f32
            last = layer == n_layers - 1

            wh = wh_ref[...]
            bias = b_ref[...]
            h = jnp.zeros((NB, H), jnp.float32)
            c = jnp.zeros((NB, H), jnp.float32)
            acc = jnp.zeros((NB, H), jnp.float32)

            # TODO(synk): stage W_hh in the MXU weight registers once per layer
            # (pltpu.matmul_push_rhs / matmul_acc_lhs / matmul_pop) instead of a fresh
            # jnp.dot per timestep; kept on jnp.dot here for lowering robustness.

            t0 = 0
            while t0 < T:                                 # static chunking over time
                tc = min(t_chunk, T - t0)
                xin = x_ref[t0:t0 + tc] if layer == 0 else seq_scr[t0:t0 + tc]
                din = xin.shape[-1]
                # Input projection for the whole chunk (no recurrent dependency):
                # one (tc*NB, Din) x (Din, 4H) MXU matmul, f32 accumulation.
                x2d = xin.reshape(tc * NB, din).astype(wx_ref.dtype)
                gx = jnp.dot(x2d, wx_ref[...],
                             preferred_element_type=jnp.float32) + bias

                h_chunk = []
                # Statically unrolled recurrence (T is small); h/c/acc carried in vregs.
                # TODO(synk): switch to lax.fori_loop with a gx scratch for large T.
                for tl in range(tc):
                    t = t0 + tl
                    gates = gx[tl * NB:(tl + 1) * NB, :] + jnp.dot(
                        h.astype(wh.dtype), wh, preferred_element_type=jnp.float32)
                    sig = jax.nn.sigmoid(gates[:, :3 * H])        # i, f, o only
                    g_g = jnp.tanh(gates[:, 3 * H:])              # g only
                    i_g = sig[:, 0:H]
                    f_g = sig[:, H:2 * H]
                    o_g = sig[:, 2 * H:3 * H]
                    c_new = f_g * c + i_g * g_g
                    h_new = o_g * jnp.tanh(c_new)
                    # pack_padded_sequence semantics: freeze state past each row's length
                    # and only accumulate valid steps into the time-sum.
                    valid = lens > float(t)                        # (NB, 1)
                    c = jnp.where(valid, c_new, c)
                    h = jnp.where(valid, h_new, h)
                    if last:
                        acc = acc + jnp.where(valid, h_new, 0.0)
                    else:
                        h_chunk.append(h.astype(seq_scr.dtype))
                if not last:
                    # One (tc, NB, H) slab store instead of tc partial stores.
                    seq_scr[t0:t0 + tc] = jnp.stack(h_chunk, axis=0)
                t0 += tc

            if last:
                # sum_t h_t / len, then F.normalize(p=2, eps=1e-12): x / max(||x||, eps)
                pooled = acc / lens
                ss = jnp.sum(pooled * pooled, axis=1, keepdims=True)
                o_ref[...] = pooled * jax.lax.rsqrt(jnp.maximum(ss, 1e-24))

    return kernel


# ------------------------- wrapper -------------------------

def _permute_gates_ifog(w4h):
    """Reorder the last axis from PyTorch's [i|f|g|o] gate blocks to [i|f|o|g]."""
    H = w4h.shape[-1] // 4
    return jnp.concatenate(
        [w4h[..., :2 * H], w4h[..., 3 * H:], w4h[..., 2 * H:3 * H]], axis=-1)


def lstm_model_forward(x, params, hidden_dim, n_layers, num_frames=None,
                       weight_dtype=jnp.bfloat16, max_batch_tile=128,
                       time_chunk=16):
    """x: (N, T, C) float32 -> (N, hidden_dim) float32 (eval-mode forward).

    weight_dtype: bf16 by default (MXU-native on v5e/v6e/v7x, halves weight/input DMA
    bytes and VMEM residency); accumulation and all cell elementwise math stay f32.
    """
    N, T, C = x.shape
    H = hidden_dim

    if num_frames is None:
        lens = jnp.full((N,), float(T), dtype=jnp.float32)
    else:
        lens = jnp.asarray(num_frames).astype(jnp.float32)

    # Batch tile: as large as possible (fills MXU rows, amortizes the serial T*n_layers
    # recurrence over many batch rows, and with multiple grid steps the "parallel" axis
    # shards across v7x's two TensorCores) without padding tiny batches to 128.
    min_tile = 8 if jnp.dtype(weight_dtype).itemsize == 4 else 16
    NB = min(max_batch_tile, ((N + min_tile - 1) // min_tile) * min_tile)
    Np = ((N + NB - 1) // NB) * NB

    xt = jnp.transpose(x, (1, 0, 2)).astype(weight_dtype)      # time-major (T, N, C)
    if Np != N:
        xt = jnp.pad(xt, ((0, 0), (0, Np - N), (0, 0)))
        lens = jnp.pad(lens, (0, Np - N), constant_values=1.0)
    lens = lens.reshape(Np, 1)

    # Fold eval-mode BatchNorm1d (per-channel affine) into layer-0 W_ih and bias (f32).
    scale = params["bn_gamma"] * jax.lax.rsqrt(params["bn_var"] + 1e-5)   # (C,)
    shift = params["bn_beta"] - params["bn_mean"] * scale                 # (C,)

    weight_buffering = pl.Buffered(1)   # grid-invariant blocks: single-buffer (halves VMEM)

    layer_args = []
    in_specs = [
        pl.BlockSpec((T, NB, C), lambda i: (0, i, 0)),
        pl.BlockSpec((NB, 1), lambda i: (i, 0)),
    ]
    for layer in range(n_layers):
        d_in = C if layer == 0 else H
        wih_t = _permute_gates_ifog(jnp.transpose(params[f"w_ih_{layer}"]))   # (Din, 4H)
        whh_t = _permute_gates_ifog(jnp.transpose(params[f"w_hh_{layer}"]))   # (H,   4H)
        bias = _permute_gates_ifog(
            params[f"b_ih_{layer}"] + params[f"b_hh_{layer}"]).reshape(1, 4 * H)
        if layer == 0:
            bias = bias + shift[None, :] @ wih_t
            wih_t = wih_t * scale[:, None]
        layer_args += [wih_t.astype(weight_dtype),
                       whh_t.astype(weight_dtype),
                       bias.astype(jnp.float32)]
        in_specs += [
            pl.BlockSpec((d_in, 4 * H), lambda i: (0, 0), pipeline_mode=weight_buffering),
            pl.BlockSpec((H, 4 * H), lambda i: (0, 0), pipeline_mode=weight_buffering),
            pl.BlockSpec((1, 4 * H), lambda i: (0, 0), pipeline_mode=weight_buffering),
        ]

    scratch_shapes = []
    if n_layers > 1:
        # Inter-layer sequence kept in VMEM in the compute dtype (no HBM round-trip).
        scratch_shapes.append(pltpu.VMEM((T, NB, H), weight_dtype))

    out = pl.pallas_call(
        make_fused_lstm_kernel(n_layers, T, H, time_chunk),
        out_shape=jax.ShapeDtypeStruct((Np, H), jnp.float32),
        grid=(Np // NB,),
        in_specs=in_specs,
        out_specs=pl.BlockSpec((NB, H), lambda i: (i, 0)),
        scratch_shapes=scratch_shapes,
        compiler_params=pltpu.CompilerParams(
            dimension_semantics=("parallel",),
            vmem_limit_bytes=64 * 1024 * 1024),
    )(xt, lens, *layer_args)
    return out[:N]


# ------------------------- params (deterministic init) -------------------------

def init_params(key, dim, hidden_dim, n_layers):
    params = {}
    k = 1.0 / math.sqrt(hidden_dim)          # PyTorch LSTM init range
    d_in = dim
    for layer in range(n_layers):
        key, k1, k2, k3, k4 = jax.random.split(key, 5)
        params[f"w_ih_{layer}"] = jax.random.uniform(
            k1, (4 * hidden_dim, d_in), jnp.float32, -k, k)
        params[f"w_hh_{layer}"] = jax.random.uniform(
            k2, (4 * hidden_dim, hidden_dim), jnp.float32, -k, k)
        params[f"b_ih_{layer}"] = jax.random.uniform(
            k3, (4 * hidden_dim,), jnp.float32, -k, k)
        params[f"b_hh_{layer}"] = jax.random.uniform(
            k4, (4 * hidden_dim,), jnp.float32, -k, k)
        d_in = hidden_dim
    # Non-trivial BatchNorm running stats / affine so the BN fold is exercised.
    key, k5, k6, k7, k8 = jax.random.split(key, 5)
    params["bn_gamma"] = 1.0 + 0.2 * jax.random.normal(k5, (dim,), jnp.float32)
    params["bn_beta"] = 0.1 * jax.random.normal(k6, (dim,), jnp.float32)
    params["bn_mean"] = 0.1 * jax.random.normal(k7, (dim,), jnp.float32)
    params["bn_var"] = jax.random.uniform(k8, (dim,), jnp.float32, 0.5, 1.5)
    return params


# ------------------------- pure-JAX reference for verification -------------------------

def reference_forward(x, params, hidden_dim, n_layers, num_frames=None):
    N, T, C = x.shape
    H = hidden_dim
    if num_frames is None:
        lens = jnp.full((N,), float(T), dtype=jnp.float32)
    else:
        lens = jnp.asarray(num_frames).astype(jnp.float32)
    mask = (jnp.arange(T, dtype=jnp.float32)[:, None, None]
            < lens[None, :, None])                              # (T, N, 1)

    xb = ((x - params["bn_mean"]) / jnp.sqrt(params["bn_var"] + 1e-5)
          * params["bn_gamma"] + params["bn_beta"])
    seq = jnp.transpose(xb, (1, 0, 2))                          # (T, N, C)
    for layer in range(n_layers):
        wih = params[f"w_ih_{layer}"]
        whh = params[f"w_hh_{layer}"]
        b = params[f"b_ih_{layer}"] + params[f"b_hh_{layer}"]

        def step(carry, inp):
            h, c = carry
            x_t, m_t = inp
            gates = x_t @ wih.T + h @ whh.T + b
            i = jax.nn.sigmoid(gates[:, 0 * H:1 * H])
            f = jax.nn.sigmoid(gates[:, 1 * H:2 * H])
            g = jnp.tanh(gates[:, 2 * H:3 * H])
            o = jax.nn.sigmoid(gates[:, 3 * H:4 * H])
            c_new = f * c + i * g
            h_new = o * jnp.tanh(c_new)
            c = jnp.where(m_t, c_new, c)
            h = jnp.where(m_t, h_new, h)
            return (h, c), h

        init = (jnp.zeros((N, H), jnp.float32), jnp.zeros((N, H), jnp.float32))
        _, seq = jax.lax.scan(step, init, (seq, mask))
    pooled = jnp.sum(jnp.where(mask, seq, 0.0), axis=0) / lens[:, None]
    nrm = jnp.linalg.norm(pooled, axis=1, keepdims=True)
    return pooled / jnp.maximum(nrm, 1e-12)


# ------------------------- main -------------------------

if __name__ == "__main__":
    N, T, DIM, HIDDEN, N_LAYERS = 2, 8, 64, 32, 2

    key = jax.random.PRNGKey(0)
    key, xk, pk = jax.random.split(key, 3)
    x = jax.random.normal(xk, (N, T, DIM), dtype=jnp.float32)
    params = init_params(pk, DIM, HIDDEN, N_LAYERS)

    # Full-length sequences (default num_frames).
    out = jax.block_until_ready(lstm_model_forward(x, params, HIDDEN, N_LAYERS))
    ref = jax.block_until_ready(reference_forward(x, params, HIDDEN, N_LAYERS))
    assert out.shape == (N, HIDDEN), out.shape
    assert jnp.all(jnp.isfinite(out))
    assert jnp.allclose(out, ref, rtol=5e-2, atol=5e-2), (
        "mismatch (full-length): max abs err = %g" % float(jnp.max(jnp.abs(out - ref))))

    # Variable-length sequences (pack_padded_sequence semantics).
    num_frames = jnp.array([T, T - 3], dtype=jnp.int32)
    out_v = jax.block_until_ready(
        lstm_model_forward(x, params, HIDDEN, N_LAYERS, num_frames=num_frames))
    ref_v = jax.block_until_ready(
        reference_forward(x, params, HIDDEN, N_LAYERS, num_frames=num_frames))
    assert jnp.all(jnp.isfinite(out_v))
    assert jnp.allclose(out_v, ref_v, rtol=5e-2, atol=5e-2), (
        "mismatch (varlen): max abs err = %g" % float(jnp.max(jnp.abs(out_v - ref_v))))

    print("KERNEL_OK")
</pallas_src>

<mosaic_0001>
module attributes {stable_mosaic.version = 11 : i64} {
  func.func @kernel(%arg0: i32, %arg1: memref<8x16x64xbf16, #tpu.memory_space<vmem>>, %arg2: memref<16x1xf32, #tpu.memory_space<vmem>>, %arg3: memref<64x128xbf16, #tpu.memory_space<vmem>>, %arg4: memref<32x128xbf16, #tpu.memory_space<vmem>>, %arg5: memref<1x128xf32, #tpu.memory_space<vmem>>, %arg6: memref<32x128xbf16, #tpu.memory_space<vmem>>, %arg7: memref<32x128xbf16, #tpu.memory_space<vmem>>, %arg8: memref<1x128xf32, #tpu.memory_space<vmem>>, %arg9: memref<16x32xf32, #tpu.memory_space<vmem>>, %arg10: memref<8x16x32xbf16, #tpu.memory_space<vmem>>) attributes {dimension_semantics = [#tpu.dimension_semantics<parallel>], iteration_bounds = array<i64: 1>, scalar_prefetch = 0 : i64, scratch_operands = 1 : i64, tpu.core_type = #tpu.core_type<tc>, window_params = [{transform_indices = @transform_0, window_bounds = array<i64: 8, 16, 64>}, {transform_indices = @transform_1, window_bounds = array<i64: 16, 1>}, {pipeline_mode = #tpu.pipeline_mode<synchronous>, transform_indices = @transform_2, window_bounds = array<i64: 64, 128>}, {pipeline_mode = #tpu.pipeline_mode<synchronous>, transform_indices = @transform_3, window_bounds = array<i64: 32, 128>}, {pipeline_mode = #tpu.pipeline_mode<synchronous>, transform_indices = @transform_4, window_bounds = array<i64: 1, 128>}, {pipeline_mode = #tpu.pipeline_mode<synchronous>, transform_indices = @transform_5, window_bounds = array<i64: 32, 128>}, {pipeline_mode = #tpu.pipeline_mode<synchronous>, transform_indices = @transform_6, window_bounds = array<i64: 32, 128>}, {pipeline_mode = #tpu.pipeline_mode<synchronous>, transform_indices = @transform_7, window_bounds = array<i64: 1, 128>}, {transform_indices = @transform_8, window_bounds = array<i64: 16, 32>}]} {
    %c0 = arith.constant 0 : index
    %c0_0 = arith.constant 0 : index
    %0 = vector.load %arg2[%c0, %c0_0] : memref<16x1xf32, #tpu.memory_space<vmem>>, vector<16x1xf32>
    %c0_1 = arith.constant 0 : index
    %c0_2 = arith.constant 0 : index
    %1 = vector.load %arg4[%c0_1, %c0_2] : memref<32x128xbf16, #tpu.memory_space<vmem>>, vector<32x128xbf16>
    %c0_3 = arith.constant 0 : index
    %c0_4 = arith.constant 0 : index
    %2 = vector.load %arg5[%c0_3, %c0_4] : memref<1x128xf32, #tpu.memory_space<vmem>>, vector<1x128xf32>
    %cst = arith.constant 0.000000e+00 : f32
    %3 = vector.broadcast %cst : f32 to vector<16x32xf32>
    %cst_5 = arith.constant 0.000000e+00 : f32
    %4 = vector.broadcast %cst_5 : f32 to vector<16x32xf32>
    %c0_6 = arith.constant 0 : index
    %c0_7 = arith.constant 0 : index
    %c0_8 = arith.constant 0 : index
    %5 = vector.load %arg1[%c0_6, %c0_7, %c0_8] : memref<8x16x64xbf16, #tpu.memory_space<vmem>>, vector<8x16x64xbf16>
    %6 = vector.shape_cast %5 : vector<8x16x64xbf16> to vector<128x64xbf16>
    %c0_9 = arith.constant 0 : index
    %c0_10 = arith.constant 0 : index
    %7 = vector.load %arg3[%c0_9, %c0_10] : memref<64x128xbf16, #tpu.memory_space<vmem>>, vector<64x128xbf16>
    %cst_11 = arith.constant dense<0.000000e+00> : vector<128x128xf32>
    %8 = tpu.matmul %6, %7, %cst_11 {dimension_numbers = #tpu.dot_dimension_numbers<[1], [0], [0], [1], [0, 0, 1, 1], [], []>} : vector<128x64xbf16>, vector<64x128xbf16>, vector<128x128xf32> -> vector<128x128xf32>
    %9 = vector.broadcast %2 : vector<1x128xf32> to vector<128x128xf32>
    %10 = arith.addf %8, %9 : vector<128x128xf32>
    %11 = vector.extract_strided_slice %10 {offsets = [0, 0], sizes = [16, 128], strides = [1, 1]} : vector<128x128xf32> to vector<16x128xf32>
    %12 = arith.truncf %3 : vector<16x32xf32> to vector<16x32xbf16>
    %cst_12 = arith.constant dense<0.000000e+00> : vector<16x128xf32>
    %13 = tpu.matmul %12, %1, %cst_12 {dimension_numbers = #tpu.dot_dimension_numbers<[1], [0], [0], [1], [0, 0, 1, 1], [], []>} : vector<16x32xbf16>, vector<32x128xbf16>, vector<16x128xf32> -> vector<16x128xf32>
    %14 = arith.addf %11, %13 : vector<16x128xf32>
    %15 = vector.extract_strided_slice %14 {offsets = [0, 0], sizes = [16, 96], strides = [1, 1]} : vector<16x128xf32> to vector<16x96xf32>
    %16 = arith.negf %15 : vector<16x96xf32>
    %17 = math.exp %16 : vector<16x96xf32>
    %cst_13 = arith.constant 1.000000e+00 : f32
    %18 = vector.broadcast %cst_13 : f32 to vector<16x96xf32>
    %19 = arith.addf %18, %17 : vector<16x96xf32>
    %20 = arith.divf %18, %19 : vector<16x96xf32>
    %21 = vector.extract_strided_slice %14 {offsets = [0, 96], sizes = [16, 32], strides = [1, 1]} : vector<16x128xf32> to vector<16x32xf32>
    %22 = math.tanh %21 : vector<16x32xf32>
    %23 = vector.extract_strided_slice %20 {offsets = [0, 0], sizes = [16, 32], strides = [1, 1]} : vector<16x96xf32> to vector<16x32xf32>
    %24 = vector.extract_strided_slice %20 {offsets = [0, 32], sizes = [16, 32], strides = [1, 1]} : vector<16x96xf32> to vector<16x32xf32>
    %25 = vector.extract_strided_slice %20 {offsets = [0, 64], sizes = [16, 32], strides = [1, 1]} : vector<16x96xf32> to vector<16x32xf32>
    %26 = arith.mulf %24, %4 : vector<16x32xf32>
    %27 = arith.mulf %23, %22 : vector<16x32xf32>
    %28 = arith.addf %26, %27 : vector<16x32xf32>
    %29 = math.tanh %28 : vector<16x32xf32>
    %30 = arith.mulf %25, %29 : vector<16x32xf32>
    %cst_14 = arith.constant 0.000000e+00 : f32
    %31 = vector.broadcast %cst_14 : f32 to vector<16x1xf32>
    %32 = arith.cmpf ogt, %0, %31 : vector<16x1xf32>
    %33 = vector.shape_cast %32 : vector<16x1xi1> to vector<16x1xi1>
    %34 = vector.broadcast %33 : vector<16x1xi1> to vector<16x32xi1>
    %35 = arith.select %34, %28, %4 : vector<16x32xi1>, vector<16x32xf32>
    %36 = vector.shape_cast %32 : vector<16x1xi1> to vector<16x1xi1>
    %37 = vector.broadcast %36 : vector<16x1xi1> to vector<16x32xi1>
    %38 = arith.select %37, %30, %3 : vector<16x32xi1>, vector<16x32xf32>
    %39 = arith.truncf %38 : vector<16x32xf32> to vector<16x32xbf16>
    %40 = vector.extract_strided_slice %10 {offsets = [16, 0], sizes = [16, 128], strides = [1, 1]} : vector<128x128xf32> to vector<16x128xf32>
    %41 = arith.truncf %38 : vector<16x32xf32> to vector<16x32xbf16>
    %cst_15 = arith.constant dense<0.000000e+00> : vector<16x128xf32>
    %42 = tpu.matmul %41, %1, %cst_15 {dimension_numbers = #tpu.dot_dimension_numbers<[1], [0], [0], [1], [0, 0, 1, 1], [], []>} : vector<16x32xbf16>, vector<32x128xbf16>, vector<16x128xf32> -> vector<16x128xf32>
    %43 = arith.addf %40, %42 : vector<16x128xf32>
    %44 = vector.extract_strided_slice %43 {offsets = [0, 0], sizes = [16, 96], strides = [1, 1]} : vector<16x128xf32> to vector<16x96xf32>
    %45 = arith.negf %44 : vector<16x96xf32>
    %46 = math.exp %45 : vector<16x96xf32>
    %cst_16 = arith.constant 1.000000e+00 : f32
    %47 = vector.broadcast %cst_16 : f32 to vector<16x96xf32>
    %48 = arith.addf %47, %46 : vector<16x96xf32>
    %49 = arith.divf %47, %48 : vector<16x96xf32>
    %50 = vector.extract_strided_slice %43 {offsets = [0, 96], sizes = [16, 32], strides = [1, 1]} : vector<16x128xf32> to vector<16x32xf32>
    %51 = math.tanh %50 : vector<16x32xf32>
    %52 = vector.extract_strided_slice %49 {offsets = [0, 0], sizes = [16, 32], strides = [1, 1]} : vector<16x96xf32> to vector<16x32xf32>
    %53 = vector.extract_strided_slice %49 {offsets = [0, 32], sizes = [16, 32], strides = [1, 1]} : vector<16x96xf32> to vector<16x32xf32>
    %54 = vector.extract_strided_slice %49 {offsets = [0, 64], sizes = [16, 32], strides = [1, 1]} : vector<16x96xf32> to vector<16x32xf32>
    %55 = arith.mulf %53, %35 : vector<16x32xf32>
    %56 = arith.mulf %52, %51 : vector<16x32xf32>
    %57 = arith.addf %55, %56 : vector<16x32xf32>
    %58 = math.tanh %57 : vector<16x32xf32>
    %59 = arith.mulf %54, %58 : vector<16x32xf32>
    %cst_17 = arith.constant 1.000000e+00 : f32
    %60 = vector.broadcast %cst_17 : f32 to vector<16x1xf32>
    %61 = arith.cmpf ogt, %0, %60 : vector<16x1xf32>
    %62 = vector.shape_cast %61 : vector<16x1xi1> to vector<16x1xi1>
    %63 = vector.broadcast %62 : vector<16x1xi1> to vector<16x32xi1>
    %64 = arith.select %63, %57, %35 : vector<16x32xi1>, vector<16x32xf32>
    %65 = vector.shape_cast %61 : vector<16x1xi1> to vector<16x1xi1>
    %66 = vector.broadcast %65 : vector<16x1xi1> to vector<16x32xi1>
    %67 = arith.select %66, %59, %38 : vector<16x32xi1>, vector<16x32xf32>
    %68 = arith.truncf %67 : vector<16x32xf32> to vector<16x32xbf16>
    %69 = vector.extract_strided_slice %10 {offsets = [32, 0], sizes = [16, 128], strides = [1, 1]} : vector<128x128xf32> to vector<16x128xf32>
    %70 = arith.truncf %67 : vector<16x32xf32> to vector<16x32xbf16>
    %cst_18 = arith.constant dense<0.000000e+00> : vector<16x128xf32>
    %71 = tpu.matmul %70, %1, %cst_18 {dimension_numbers = #tpu.dot_dimension_numbers<[1], [0], [0], [1], [0, 0, 1, 1], [], []>} : vector<16x32xbf16>, vector<32x128xbf16>, vector<16x128xf32> -> vector<16x128xf32>
    %72 = arith.addf %69, %71 : vector<16x128xf32>
    %73 = vector.extract_strided_slice %72 {offsets = [0, 0], sizes = [16, 96], strides = [1, 1]} : vector<16x128xf32> to vector<16x96xf32>
    %74 = arith.negf %73 : vector<16x96xf32>
    %75 = math.exp %74 : vector<16x96xf32>
    %cst_19 = arith.constant 1.000000e+00 : f32
    %76 = vector.broadcast %cst_19 : f32 to vector<16x96xf32>
    %77 = arith.addf %76, %75 : vector<16x96xf32>
    %78 = arith.divf %76, %77 : vector<16x96xf32>
    %79 = vector.extract_strided_slice %72 {offsets = [0, 96], sizes = [16, 32], strides = [1, 1]} : vector<16x128xf32> to vector<16x32xf32>
    %80 = math.tanh %79 : vector<16x32xf32>
    %81 = vector.extract_strided_slice %78 {offsets = [0, 0], sizes = [16, 32], strides = [1, 1]} : vector<16x96xf32> to vector<16x32xf32>
    %82 = vector.extract_strided_slice %78 {offsets = [0, 32], sizes = [16, 32], strides = [1, 1]} : vector<16x96xf32> to vector<16x32xf32>
    %83 = vector.extract_strided_slice %78 {offsets = [0, 64], sizes = [16, 32], strides = [1, 1]} : vector<16x96xf32> to vector<16x32xf32>
    %84 = arith.mulf %82, %64 : vector<16x32xf32>
    %85 = arith.mulf %81, %80 : vector<16x32xf32>
    %86 = arith.addf %84, %85 : vector<16x32xf32>
    %87 = math.tanh %86 : vector<16x32xf32>
    %88 = arith.mulf %83, %87 : vector<16x32xf32>
    %cst_20 = arith.constant 2.000000e+00 : f32
    %89 = vector.broadcast %cst_20 : f32 to vector<16x1xf32>
    %90 = arith.cmpf ogt, %0, %89 : vector<16x1xf32>
    %91 = vector.shape_cast %90 : vector<16x1xi1> to vector<16x1xi1>
    %92 = vector.broadcast %91 : vector<16x1xi1> to vector<16x32xi1>
    %93 = arith.select %92, %86, %64 : vector<16x32xi1>, vector<16x32xf32>
    %94 = vector.shape_cast %90 : vector<16x1xi1> to vector<16x1xi1>
    %95 = vector.broadcast %94 : vector<16x1xi1> to vector<16x32xi1>
    %96 = arith.select %95, %88, %67 : vector<16x32xi1>, vector<16x32xf32>
    %97 = arith.truncf %96 : vector<16x32xf32> to vector<16x32xbf16>
    %98 = vector.extract_strided_slice %10 {offsets = [48, 0], sizes = [16, 128], strides = [1, 1]} : vector<128x128xf32> to vector<16x128xf32>
    %99 = arith.truncf %96 : vector<16x32xf32> to vector<16x32xbf16>
    %cst_21 = arith.constant dense<0.000000e+00> : vector<16x128xf32>
    %100 = tpu.matmul %99, %1, %cst_21 {dimension_numbers = #tpu.dot_dimension_numbers<[1], [0], [0], [1], [0, 0, 1, 1], [], []>} : vector<16x32xbf16>, vector<32x128xbf16>, vector<16x128xf32> -> vector<16x128xf32>
    %101 = arith.addf %98, %100 : vector<16x128xf32>
    %102 = vector.extract_strided_slice %101 {offsets = [0, 0], sizes = [16, 96], strides = [1, 1]} : vector<16x128xf32> to vector<16x96xf32>
    %103 = arith.negf %102 : vector<16x96xf32>
    %104 = math.exp %103 : vector<16x96xf32>
    %cst_22 = arith.constant 1.000000e+00 : f32
    %105 = vector.broadcast %cst_22 : f32 to vector<16x96xf32>
    %106 = arith.addf %105, %104 : vector<16x96xf32>
    %107 = arith.divf %105, %106 : vector<16x96xf32>
    %108 = vector.extract_strided_slice %101 {offsets = [0, 96], sizes = [16, 32], strides = [1, 1]} : vector<16x128xf32> to vector<16x32xf32>
    %109 = math.tanh %108 : vector<16x32xf32>
    %110 = vector.extract_strided_slice %107 {offsets = [0, 0], sizes = [16, 32], strides = [1, 1]} : vector<16x96xf32> to vector<16x32xf32>
    %111 = vector.extract_strided_slice %107 {offsets = [0, 32], sizes = [16, 32], strides = [1, 1]} : vector<16x96xf32> to vector<16x32xf32>
    %112 = vector.extract_strided_slice %107 {offsets = [0, 64], sizes = [16, 32], strides = [1, 1]} : vector<16x96xf32> to vector<16x32xf32>
    %113 = arith.mulf %111, %93 : vector<16x32xf32>
    %114 = arith.mulf %110, %109 : vector<16x32xf32>
    %115 = arith.addf %113, %114 : vector<16x32xf32>
    %116 = math.tanh %115 : vector<16x32xf32>
    %117 = arith.mulf %112, %116 : vector<16x32xf32>
    %cst_23 = arith.constant 3.000000e+00 : f32
    %118 = vector.broadcast %cst_23 : f32 to vector<16x1xf32>
    %119 = arith.cmpf ogt, %0, %118 : vector<16x1xf32>
    %120 = vector.shape_cast %119 : vector<16x1xi1> to vector<16x1xi1>
    %121 = vector.broadcast %120 : vector<16x1xi1> to vector<16x32xi1>
    %122 = arith.select %121, %115, %93 : vector<16x32xi1>, vector<16x32xf32>
    %123 = vector.shape_cast %119 : vector<16x1xi1> to vector<16x1xi1>
    %124 = vector.broadcast %123 : vector<16x1xi1> to vector<16x32xi1>
    %125 = arith.select %124, %117, %96 : vector<16x32xi1>, vector<16x32xf32>
    %126 = arith.truncf %125 : vector<16x32xf32> to vector<16x32xbf16>
    %127 = vector.extract_strided_slice %10 {offsets = [64, 0], sizes = [16, 128], strides = [1, 1]} : vector<128x128xf32> to vector<16x128xf32>
    %128 = arith.truncf %125 : vector<16x32xf32> to vector<16x32xbf16>
    %cst_24 = arith.constant dense<0.000000e+00> : vector<16x128xf32>
    %129 = tpu.matmul %128, %1, %cst_24 {dimension_numbers = #tpu.dot_dimension_numbers<[1], [0], [0], [1], [0, 0, 1, 1], [], []>} : vector<16x32xbf16>, vector<32x128xbf16>, vector<16x128xf32> -> vector<16x128xf32>
    %130 = arith.addf %127, %129 : vector<16x128xf32>
    %131 = vector.extract_strided_slice %130 {offsets = [0, 0], sizes = [16, 96], strides = [1, 1]} : vector<16x128xf32> to vector<16x96xf32>
    %132 = arith.negf %131 : vector<16x96xf32>
    %133 = math.exp %132 : vector<16x96xf32>
    %cst_25 = arith.constant 1.000000e+00 : f32
    %134 = vector.broadcast %cst_25 : f32 to vector<16x96xf32>
    %135 = arith.addf %134, %133 : vector<16x96xf32>
    %136 = arith.divf %134, %135 : vector<16x96xf32>
    %137 = vector.extract_strided_slice %130 {offsets = [0, 96], sizes = [16, 32], strides = [1, 1]} : vector<16x128xf32> to vector<16x32xf32>
    %138 = math.tanh %137 : vector<16x32xf32>
    %139 = vector.extract_strided_slice %136 {offsets = [0, 0], sizes = [16, 32], strides = [1, 1]} : vector<16x96xf32> to vector<16x32xf32>
    %140 = vector.extract_strided_slice %136 {offsets = [0, 32], sizes = [16, 32], strides = [1, 1]} : vector<16x96xf32> to vector<16x32xf32>
    %141 = vector.extract_strided_slice %136 {offsets = [0, 64], sizes = [16, 32], strides = [1, 1]} : vector<16x96xf32> to vector<16x32xf32>
    %142 = arith.mulf %140, %122 : vector<16x32xf32>
    %143 = arith.mulf %139, %138 : vector<16x32xf32>
    %144 = arith.addf %142, %143 : vector<16x32xf32>
    %145 = math.tanh %144 : vector<16x32xf32>
    %146 = arith.mulf %141, %145 : vector<16x32xf32>
    %cst_26 = arith.constant 4.000000e+00 : f32
    %147 = vector.broadcast %cst_26 : f32 to vector<16x1xf32>
    %148 = arith.cmpf ogt, %0, %147 : vector<16x1xf32>
    %149 = vector.shape_cast %148 : vector<16x1xi1> to vector<16x1xi1>
    %150 = vector.broadcast %149 : vector<16x1xi1> to vector<16x32xi1>
    %151 = arith.select %150, %144, %122 : vector<16x32xi1>, vector<16x32xf32>
    %152 = vector.shape_cast %148 : vector<16x1xi1> to vector<16x1xi1>
    %153 = vector.broadcast %152 : vector<16x1xi1> to vector<16x32xi1>
    %154 = arith.select %153, %146, %125 : vector<16x32xi1>, vector<16x32xf32>
    %155 = arith.truncf %154 : vector<16x32xf32> to vector<16x32xbf16>
    %156 = vector.extract_strided_slice %10 {offsets = [80, 0], sizes = [16, 128], strides = [1, 1]} : vector<128x128xf32> to vector<16x128xf32>
    %157 = arith.truncf %154 : vector<16x32xf32> to vector<16x32xbf16>
    %cst_27 = arith.constant dense<0.000000e+00> : vector<16x128xf32>
    %158 = tpu.matmul %157, %1, %cst_27 {dimension_numbers = #tpu.dot_dimension_numbers<[1], [0], [0], [1], [0, 0, 1, 1], [], []>} : vector<16x32xbf16>, vector<32x128xbf16>, vector<16x128xf32> -> vector<16x128xf32>
    %159 = arith.addf %156, %158 : vector<16x128xf32>
    %160 = vector.extract_strided_slice %159 {offsets = [0, 0], sizes = [16, 96], strides = [1, 1]} : vector<16x128xf32> to vector<16x96xf32>
    %161 = arith.negf %160 : vector<16x96xf32>
    %162 = math.exp %161 : vector<16x96xf32>
    %cst_28 = arith.constant 1.000000e+00 : f32
    %163 = vector.broadcast %cst_28 : f32 to vector<16x96xf32>
    %164 = arith.addf %163, %162 : vector<16x96xf32>
    %165 = arith.divf %163, %164 : vector<16x96xf32>
    %166 = vector.extract_strided_slice %159 {offsets = [0, 96], sizes = [16, 32], strides = [1, 1]} : vector<16x128xf32> to vector<16x32xf32>
    %167 = math.tanh %166 : vector<16x32xf32>
    %168 = vector.extract_strided_slice %165 {offsets = [0, 0], sizes = [16, 32], strides = [1, 1]} : vector<16x96xf32> to vector<16x32xf32>
    %169 = vector.extract_strided_slice %165 {offsets = [0, 32], sizes = [16, 32], strides = [1, 1]} : vector<16x96xf32> to vector<16x32xf32>
    %170 = vector.extract_strided_slice %165 {offsets = [0, 64], sizes = [16, 32], strides = [1, 1]} : vector<16x96xf32> to vector<16x32xf32>
    %171 = arith.mulf %169, %151 : vector<16x32xf32>
    %172 = arith.mulf %168, %167 : vector<16x32xf32>
    %173 = arith.addf %171, %172 : vector<16x32xf32>
    %174 = math.tanh %173 : vector<16x32xf32>
    %175 = arith.mulf %170, %174 : vector<16x32xf32>
    %cst_29 = arith.constant 5.000000e+00 : f32
    %176 = vector.broadcast %cst_29 : f32 to vector<16x1xf32>
    %177 = arith.cmpf ogt, %0, %176 : vector<16x1xf32>
    %178 = vector.shape_cast %177 : vector<16x1xi1> to vector<16x1xi1>
    %179 = vector.broadcast %178 : vector<16x1xi1> to vector<16x32xi1>
    %180 = arith.select %179, %173, %151 : vector<16x32xi1>, vector<16x32xf32>
    %181 = vector.shape_cast %177 : vector<16x1xi1> to vector<16x1xi1>
    %182 = vector.broadcast %181 : vector<16x1xi1> to vector<16x32xi1>
    %183 = arith.select %182, %175, %154 : vector<16x32xi1>, vector<16x32xf32>
    %184 = arith.truncf %183 : vector<16x32xf32> to vector<16x32xbf16>
    %185 = vector.extract_strided_slice %10 {offsets = [96, 0], sizes = [16, 128], strides = [1, 1]} : vector<128x128xf32> to vector<16x128xf32>
    %186 = arith.truncf %183 : vector<16x32xf32> to vector<16x32xbf16>
    %cst_30 = arith.constant dense<0.000000e+00> : vector<16x128xf32>
    %187 = tpu.matmul %186, %1, %cst_30 {dimension_numbers = #tpu.dot_dimension_numbers<[1], [0], [0], [1], [0, 0, 1, 1], [], []>} : vector<16x32xbf16>, vector<32x128xbf16>, vector<16x128xf32> -> vector<16x128xf32>
    %188 = arith.addf %185, %187 : vector<16x128xf32>
    %189 = vector.extract_strided_slice %188 {offsets = [0, 0], sizes = [16, 96], strides = [1, 1]} : vector<16x128xf32> to vector<16x96xf32>
    %190 = arith.negf %189 : vector<16x96xf32>
    %191 = math.exp %190 : vector<16x96xf32>
    %cst_31 = arith.constant 1.000000e+00 : f32
    %192 = vector.broadcast %cst_31 : f32 to vector<16x96xf32>
    %193 = arith.addf %192, %191 : vector<16x96xf32>
    %194 = arith.divf %192, %193 : vector<16x96xf32>
    %195 = vector.extract_strided_slice %188 {offsets = [0, 96], sizes = [16, 32], strides = [1, 1]} : vector<16x128xf32> to vector<16x32xf32>
    %196 = math.tanh %195 : vector<16x32xf32>
    %197 = vector.extract_strided_slice %194 {offsets = [0, 0], sizes = [16, 32], strides = [1, 1]} : vector<16x96xf32> to vector<16x32xf32>
    %198 = vector.extract_strided_slice %194 {offsets = [0, 32], sizes = [16, 32], strides = [1, 1]} : vector<16x96xf32> to vector<16x32xf32>
    %199 = vector.extract_strided_slice %194 {offsets = [0, 64], sizes = [16, 32], strides = [1, 1]} : vector<16x96xf32> to vector<16x32xf32>
    %200 = arith.mulf %198, %180 : vector<16x32xf32>
    %201 = arith.mulf %197, %196 : vector<16x32xf32>
    %202 = arith.addf %200, %201 : vector<16x32xf32>
    %203 = math.tanh %202 : vector<16x32xf32>
    %204 = arith.mulf %199, %203 : vector<16x32xf32>
    %cst_32 = arith.constant 6.000000e+00 : f32
    %205 = vector.broadcast %cst_32 : f32 to vector<16x1xf32>
    %206 = arith.cmpf ogt, %0, %205 : vector<16x1xf32>
    %207 = vector.shape_cast %206 : vector<16x1xi1> to vector<16x1xi1>
    %208 = vector.broadcast %207 : vector<16x1xi1> to vector<16x32xi1>
    %209 = arith.select %208, %202, %180 : vector<16x32xi1>, vector<16x32xf32>
    %210 = vector.shape_cast %206 : vector<16x1xi1> to vector<16x1xi1>
    %211 = vector.broadcast %210 : vector<16x1xi1> to vector<16x32xi1>
    %212 = arith.select %211, %204, %183 : vector<16x32xi1>, vector<16x32xf32>
    %213 = arith.truncf %212 : vector<16x32xf32> to vector<16x32xbf16>
    %214 = vector.extract_strided_slice %10 {offsets = [112, 0], sizes = [16, 128], strides = [1, 1]} : vector<128x128xf32> to vector<16x128xf32>
    %215 = arith.truncf %212 : vector<16x32xf32> to vector<16x32xbf16>
    %cst_33 = arith.constant dense<0.000000e+00> : vector<16x128xf32>
    %216 = tpu.matmul %215, %1, %cst_33 {dimension_numbers = #tpu.dot_dimension_numbers<[1], [0], [0], [1], [0, 0, 1, 1], [], []>} : vector<16x32xbf16>, vector<32x128xbf16>, vector<16x128xf32> -> vector<16x128xf32>
    %217 = arith.addf %214, %216 : vector<16x128xf32>
    %218 = vector.extract_strided_slice %217 {offsets = [0, 0], sizes = [16, 96], strides = [1, 1]} : vector<16x128xf32> to vector<16x96xf32>
    %219 = arith.negf %218 : vector<16x96xf32>
    %220 = math.exp %219 : vector<16x96xf32>
    %cst_34 = arith.constant 1.000000e+00 : f32
    %221 = vector.broadcast %cst_34 : f32 to vector<16x96xf32>
    %222 = arith.addf %221, %220 : vector<16x96xf32>
    %223 = arith.divf %221, %222 : vector<16x96xf32>
    %224 = vector.extract_strided_slice %217 {offsets = [0, 96], sizes = [16, 32], strides = [1, 1]} : vector<16x128xf32> to vector<16x32xf32>
    %225 = math.tanh %224 : vector<16x32xf32>
    %226 = vector.extract_strided_slice %223 {offsets = [0, 0], sizes = [16, 32], strides = [1, 1]} : vector<16x96xf32> to vector<16x32xf32>
    %227 = vector.extract_strided_slice %223 {offsets = [0, 32], sizes = [16, 32], strides = [1, 1]} : vector<16x96xf32> to vector<16x32xf32>
    %228 = vector.extract_strided_slice %223 {offsets = [0, 64], sizes = [16, 32], strides = [1, 1]} : vector<16x96xf32> to vector<16x32xf32>
    %229 = arith.mulf %227, %209 : vector<16x32xf32>
    %230 = arith.mulf %226, %225 : vector<16x32xf32>
    %231 = arith.addf %229, %230 : vector<16x32xf32>
    %232 = math.tanh %231 : vector<16x32xf32>
    %233 = arith.mulf %228, %232 : vector<16x32xf32>
    %cst_35 = arith.constant 7.000000e+00 : f32
    %234 = vector.broadcast %cst_35 : f32 to vector<16x1xf32>
    %235 = arith.cmpf ogt, %0, %234 : vector<16x1xf32>
    %236 = vector.shape_cast %235 : vector<16x1xi1> to vector<16x1xi1>
    %237 = vector.broadcast %236 : vector<16x1xi1> to vector<16x32xi1>
    %238 = arith.select %237, %233, %212 : vector<16x32xi1>, vector<16x32xf32>
    %239 = arith.truncf %238 : vector<16x32xf32> to vector<16x32xbf16>
    %240 = vector.shape_cast %39 : vector<16x32xbf16> to vector<1x16x32xbf16>
    %241 = vector.shape_cast %68 : vector<16x32xbf16> to vector<1x16x32xbf16>
    %242 = vector.shape_cast %97 : vector<16x32xbf16> to vector<1x16x32xbf16>
    %243 = vector.shape_cast %126 : vector<16x32xbf16> to vector<1x16x32xbf16>
    %244 = vector.shape_cast %155 : vector<16x32xbf16> to vector<1x16x32xbf16>
    %245 = vector.shape_cast %184 : vector<16x32xbf16> to vector<1x16x32xbf16>
    %246 = vector.shape_cast %213 : vector<16x32xbf16> to vector<1x16x32xbf16>
    %247 = vector.shape_cast %239 : vector<16x32xbf16> to vector<1x16x32xbf16>
    %248 = tpu.concatenate %240, %241, %242, %243, %244, %245, %246, %247 in 0 : vector<1x16x32xbf16>, vector<1x16x32xbf16>, vector<1x16x32xbf16>, vector<1x16x32xbf16>, vector<1x16x32xbf16>, vector<1x16x32xbf16>, vector<1x16x32xbf16>, vector<1x16x32xbf16> -> vector<8x16x32xbf16>
    %c0_36 = arith.constant 0 : index
    %c0_37 = arith.constant 0 : index
    %c0_38 = arith.constant 0 : index
    %249 = vector.load %arg10[%c0_36, %c0_37, %c0_38] : memref<8x16x32xbf16, #tpu.memory_space<vmem>>, vector<8x16x32xbf16>
    tpu.vector_store %arg10[%c0_36, %c0_37, %c0_38], %248 {strides = array<i32>} : memref<8x16x32xbf16, #tpu.memory_space<vmem>>, vector<8x16x32xbf16>,
    %c0_39 = arith.constant 0 : index
    %c0_40 = arith.constant 0 : index
    %250 = vector.load %arg7[%c0_39, %c0_40] : memref<32x128xbf16, #tpu.memory_space<vmem>>, vector<32x128xbf16>
    %c0_41 = arith.constant 0 : index
    %c0_42 = arith.constant 0 : index
    %251 = vector.load %arg8[%c0_41, %c0_42] : memref<1x128xf32, #tpu.memory_space<vmem>>, vector<1x128xf32>
    %cst_43 = arith.constant 0.000000e+00 : f32
    %252 = vector.broadcast %cst_43 : f32 to vector<16x32xf32>
    %cst_44 = arith.constant 0.000000e+00 : f32
    %253 = vector.broadcast %cst_44 : f32 to vector<16x32xf32>
    %cst_45 = arith.constant 0.000000e+00 : f32
    %254 = vector.broadcast %cst_45 : f32 to vector<16x32xf32>
    %c0_46 = arith.constant 0 : index
    %c0_47 = arith.constant 0 : index
    %c0_48 = arith.constant 0 : index
    %255 = vector.load %arg10[%c0_46, %c0_47, %c0_48] : memref<8x16x32xbf16, #tpu.memory_space<vmem>>, vector<8x16x32xbf16>
    %256 = vector.shape_cast %255 : vector<8x16x32xbf16> to vector<128x32xbf16>
    %c0_49 = arith.constant 0 : index
    %c0_50 = arith.constant 0 : index
    %257 = vector.load %arg6[%c0_49, %c0_50] : memref<32x128xbf16, #tpu.memory_space<vmem>>, vector<32x128xbf16>
    %cst_51 = arith.constant dense<0.000000e+00> : vector<128x128xf32>
    %258 = tpu.matmul %256, %257, %cst_51 {dimension_numbers = #tpu.dot_dimension_numbers<[1], [0], [0], [1], [0, 0, 1, 1], [], []>} : vector<128x32xbf16>, vector<32x128xbf16>, vector<128x128xf32> -> vector<128x128xf32>
    %259 = vector.broadcast %251 : vector<1x128xf32> to vector<128x128xf32>
    %260 = arith.addf %258, %259 : vector<128x128xf32>
    %261 = vector.extract_strided_slice %260 {offsets = [0, 0], sizes = [16, 128], strides = [1, 1]} : vector<128x128xf32> to vector<16x128xf32>
    %262 = arith.truncf %252 : vector<16x32xf32> to vector<16x32xbf16>
    %cst_52 = arith.constant dense<0.000000e+00> : vector<16x128xf32>
    %263 = tpu.matmul %262, %250, %cst_52 {dimension_numbers = #tpu.dot_dimension_numbers<[1], [0], [0], [1], [0, 0, 1, 1], [], []>} : vector<16x32xbf16>, vector<32x128xbf16>, vector<16x128xf32> -> vector<16x128xf32>
    %264 = arith.addf %261, %263 : vector<16x128xf32>
    %265 = vector.extract_strided_slice %264 {offsets = [0, 0], sizes = [16, 96], strides = [1, 1]} : vector<16x128xf32> to vector<16x96xf32>
    %266 = arith.negf %265 : vector<16x96xf32>
    %267 = math.exp %266 : vector<16x96xf32>
    %cst_53 = arith.constant 1.000000e+00 : f32
    %268 = vector.broadcast %cst_53 : f32 to vector<16x96xf32>
    %269 = arith.addf %268, %267 : vector<16x96xf32>
    %270 = arith.divf %268, %269 : vector<16x96xf32>
    %271 = vector.extract_strided_slice %264 {offsets = [0, 96], sizes = [16, 32], strides = [1, 1]} : vector<16x128xf32> to vector<16x32xf32>
    %272 = math.tanh %271 : vector<16x32xf32>
    %273 = vector.extract_strided_slice %270 {offsets = [0, 0], sizes = [16, 32], strides = [1, 1]} : vector<16x96xf32> to vector<16x32xf32>
    %274 = vector.extract_strided_slice %270 {offsets = [0, 32], sizes = [16, 32], strides = [1, 1]} : vector<16x96xf32> to vector<16x32xf32>
    %275 = vector.extract_strided_slice %270 {offsets = [0, 64], sizes = [16, 32], strides = [1, 1]} : vector<16x96xf32> to vector<16x32xf32>
    %276 = arith.mulf %274, %253 : vector<16x32xf32>
    %277 = arith.mulf %273, %272 : vector<16x32xf32>
    %278 = arith.addf %276, %277 : vector<16x32xf32>
    %279 = math.tanh %278 : vector<16x32xf32>
    %280 = arith.mulf %275, %279 : vector<16x32xf32>
    %cst_54 = arith.constant 0.000000e+00 : f32
    %281 = vector.broadcast %cst_54 : f32 to vector<16x1xf32>
    %282 = arith.cmpf ogt, %0, %281 : vector<16x1xf32>
    %283 = vector.shape_cast %282 : vector<16x1xi1> to vector<16x1xi1>
    %284 = vector.broadcast %283 : vector<16x1xi1> to vector<16x32xi1>
    %285 = arith.select %284, %278, %253 : vector<16x32xi1>, vector<16x32xf32>
    %286 = vector.shape_cast %282 : vector<16x1xi1> to vector<16x1xi1>
    %287 = vector.broadcast %286 : vector<16x1xi1> to vector<16x32xi1>
    %288 = arith.select %287, %280, %252 : vector<16x32xi1>, vector<16x32xf32>
    %cst_55 = arith.constant 0.000000e+00 : f32
    %289 = vector.shape_cast %282 : vector<16x1xi1> to vector<16x1xi1>
    %290 = vector.broadcast %289 : vector<16x1xi1> to vector<16x32xi1>
    %291 = vector.broadcast %cst_55 : f32 to vector<16x32xf32>
    %292 = arith.select %290, %280, %291 : vector<16x32xi1>, vector<16x32xf32>
    %293 = arith.addf %254, %292 : vector<16x32xf32>
    %294 = vector.extract_strided_slice %260 {offsets = [16, 0], sizes = [16, 128], strides = [1, 1]} : vector<128x128xf32> to vector<16x128xf32>
    %295 = arith.truncf %288 : vector<16x32xf32> to vector<16x32xbf16>
    %cst_56 = arith.constant dense<0.000000e+00> : vector<16x128xf32>
    %296 = tpu.matmul %295, %250, %cst_56 {dimension_numbers = #tpu.dot_dimension_numbers<[1], [0], [0], [1], [0, 0, 1, 1], [], []>} : vector<16x32xbf16>, vector<32x128xbf16>, vector<16x128xf32> -> vector<16x128xf32>
    %297 = arith.addf %294, %296 : vector<16x128xf32>
    %298 = vector.extract_strided_slice %297 {offsets = [0, 0], sizes = [16, 96], strides = [1, 1]} : vector<16x128xf32> to vector<16x96xf32>
    %299 = arith.negf %298 : vector<16x96xf32>
    %300 = math.exp %299 : vector<16x96xf32>
    %cst_57 = arith.constant 1.000000e+00 : f32
    %301 = vector.broadcast %cst_57 : f32 to vector<16x96xf32>
    %302 = arith.addf %301, %300 : vector<16x96xf32>
    %303 = arith.divf %301, %302 : vector<16x96xf32>
    %304 = vector.extract_strided_slice %297 {offsets = [0, 96], sizes = [16, 32], strides = [1, 1]} : vector<16x128xf32> to vector<16x32xf32>
    %305 = math.tanh %304 : vector<16x32xf32>
    %306 = vector.extract_strided_slice %303 {offsets = [0, 0], sizes = [16, 32], strides = [1, 1]} : vector<16x96xf32> to vector<16x32xf32>
    %307 = vector.extract_strided_slice %303 {offsets = [0, 32], sizes = [16, 32], strides = [1, 1]} : vector<16x96xf32> to vector<16x32xf32>
    %308 = vector.extract_strided_slice %303 {offsets = [0, 64], sizes = [16, 32], strides = [1, 1]} : vector<16x96xf32> to vector<16x32xf32>
    %309 = arith.mulf %307, %285 : vector<16x32xf32>
    %310 = arith.mulf %306, %305 : vector<16x32xf32>
    %311 = arith.addf %309, %310 : vector<16x32xf32>
    %312 = math.tanh %311 : vector<16x32xf32>
    %313 = arith.mulf %308, %312 : vector<16x32xf32>
    %cst_58 = arith.constant 1.000000e+00 : f32
    %314 = vector.broadcast %cst_58 : f32 to vector<16x1xf32>
    %315 = arith.cmpf ogt, %0, %314 : vector<16x1xf32>
    %316 = vector.shape_cast %315 : vector<16x1xi1> to vector<16x1xi1>
    %317 = vector.broadcast %316 : vector<16x1xi1> to vector<16x32xi1>
    %318 = arith.select %317, %311, %285 : vector<16x32xi1>, vector<16x32xf32>
    %319 = vector.shape_cast %315 : vector<16x1xi1> to vector<16x1xi1>
    %320 = vector.broadcast %319 : vector<16x1xi1> to vector<16x32xi1>
    %321 = arith.select %320, %313, %288 : vector<16x32xi1>, vector<16x32xf32>
    %cst_59 = arith.constant 0.000000e+00 : f32
    %322 = vector.shape_cast %315 : vector<16x1xi1> to vector<16x1xi1>
    %323 = vector.broadcast %322 : vector<16x1xi1> to vector<16x32xi1>
    %324 = vector.broadcast %cst_59 : f32 to vector<16x32xf32>
    %325 = arith.select %323, %313, %324 : vector<16x32xi1>, vector<16x32xf32>
    %326 = arith.addf %293, %325 : vector<16x32xf32>
    %327 = vector.extract_strided_slice %260 {offsets = [32, 0], sizes = [16, 128], strides = [1, 1]} : vector<128x128xf32> to vector<16x128xf32>
    %328 = arith.truncf %321 : vector<16x32xf32> to vector<16x32xbf16>
    %cst_60 = arith.constant dense<0.000000e+00> : vector<16x128xf32>
    %329 = tpu.matmul %328, %250, %cst_60 {dimension_numbers = #tpu.dot_dimension_numbers<[1], [0], [0], [1], [0, 0, 1, 1], [], []>} : vector<16x32xbf16>, vector<32x128xbf16>, vector<16x128xf32> -> vector<16x128xf32>
    %330 = arith.addf %327, %329 : vector<16x128xf32>
    %331 = vector.extract_strided_slice %330 {offsets = [0, 0], sizes = [16, 96], strides = [1, 1]} : vector<16x128xf32> to vector<16x96xf32>
    %332 = arith.negf %331 : vector<16x96xf32>
    %333 = math.exp %332 : vector<16x96xf32>
    %cst_61 = arith.constant 1.000000e+00 : f32
    %334 = vector.broadcast %cst_61 : f32 to vector<16x96xf32>
    %335 = arith.addf %334, %333 : vector<16x96xf32>
    %336 = arith.divf %334, %335 : vector<16x96xf32>
    %337 = vector.extract_strided_slice %330 {offsets = [0, 96], sizes = [16, 32], strides = [1, 1]} : vector<16x128xf32> to vector<16x32xf32>
    %338 = math.tanh %337 : vector<16x32xf32>
    %339 = vector.extract_strided_slice %336 {offsets = [0, 0], sizes = [16, 32], strides = [1, 1]} : vector<16x96xf32> to vector<16x32xf32>
    %340 = vector.extract_strided_slice %336 {offsets = [0, 32], sizes = [16, 32], strides = [1, 1]} : vector<16x96xf32> to vector<16x32xf32>
    %341 = vector.extract_strided_slice %336 {offsets = [0, 64], sizes = [16, 32], strides = [1, 1]} : vector<16x96xf32> to vector<16x32xf32>
    %342 = arith.mulf %340, %318 : vector<16x32xf32>
    %343 = arith.mulf %339, %338 : vector<16x32xf32>
    %344 = arith.addf %342, %343 : vector<16x32xf32>
    %345 = math.tanh %344 : vector<16x32xf32>
    %346 = arith.mulf %341, %345 : vector<16x32xf32>
    %cst_62 = arith.constant 2.000000e+00 : f32
    %347 = vector.broadcast %cst_62 : f32 to vector<16x1xf32>
    %348 = arith.cmpf ogt, %0, %347 : vector<16x1xf32>
    %349 = vector.shape_cast %348 : vector<16x1xi1> to vector<16x1xi1>
    %350 = vector.broadcast %349 : vector<16x1xi1> to vector<16x32xi1>
    %351 = arith.select %350, %344, %318 : vector<16x32xi1>, vector<16x32xf32>
    %352 = vector.shape_cast %348 : vector<16x1xi1> to vector<16x1xi1>
    %353 = vector.broadcast %352 : vector<16x1xi1> to vector<16x32xi1>
    %354 = arith.select %353, %346, %321 : vector<16x32xi1>, vector<16x32xf32>
    %cst_63 = arith.constant 0.000000e+00 : f32
    %355 = vector.shape_cast %348 : vector<16x1xi1> to vector<16x1xi1>
    %356 = vector.broadcast %355 : vector<16x1xi1> to vector<16x32xi1>
    %357 = vector.broadcast %cst_63 : f32 to vector<16x32xf32>
    %358 = arith.select %356, %346, %357 : vector<16x32xi1>, vector<16x32xf32>
    %359 = arith.addf %326, %358 : vector<16x32xf32>
    %360 = vector.extract_strided_slice %260 {offsets = [48, 0], sizes = [16, 128], strides = [1, 1]} : vector<128x128xf32> to vector<16x128xf32>
    %361 = arith.truncf %354 : vector<16x32xf32> to vector<16x32xbf16>
    %cst_64 = arith.constant dense<0.000000e+00> : vector<16x128xf32>
    %362 = tpu.matmul %361, %250, %cst_64 {dimension_numbers = #tpu.dot_dimension_numbers<[1], [0], [0], [1], [0, 0, 1, 1], [], []>} : vector<16x32xbf16>, vector<32x128xbf16>, vector<16x128xf32> -> vector<16x128xf32>
    %363 = arith.addf %360, %362 : vector<16x128xf32>
    %364 = vector.extract_strided_slice %363 {offsets = [0, 0], sizes = [16, 96], strides = [1, 1]} : vector<16x128xf32> to vector<16x96xf32>
    %365 = arith.negf %364 : vector<16x96xf32>
    %366 = math.exp %365 : vector<16x96xf32>
    %cst_65 = arith.constant 1.000000e+00 : f32
    %367 = vector.broadcast %cst_65 : f32 to vector<16x96xf32>
    %368 = arith.addf %367, %366 : vector<16x96xf32>
    %369 = arith.divf %367, %368 : vector<16x96xf32>
    %370 = vector.extract_strided_slice %363 {offsets = [0, 96], sizes = [16, 32], strides = [1, 1]} : vector<16x128xf32> to vector<16x32xf32>
    %371 = math.tanh %370 : vector<16x32xf32>
    %372 = vector.extract_strided_slice %369 {offsets = [0, 0], sizes = [16, 32], strides = [1, 1]} : vector<16x96xf32> to vector<16x32xf32>
    %373 = vector.extract_strided_slice %369 {offsets = [0, 32], sizes = [16, 32], strides = [1, 1]} : vector<16x96xf32> to vector<16x32xf32>
    %374 = vector.extract_strided_slice %369 {offsets = [0, 64], sizes = [16, 32], strides = [1, 1]} : vector<16x96xf32> to vector<16x32xf32>
    %375 = arith.mulf %373, %351 : vector<16x32xf32>
    %376 = arith.mulf %372, %371 : vector<16x32xf32>
    %377 = arith.addf %375, %376 : vector<16x32xf32>
    %378 = math.tanh %377 : vector<16x32xf32>
    %379 = arith.mulf %374, %378 : vector<16x32xf32>
    %cst_66 = arith.constant 3.000000e+00 : f32
    %380 = vector.broadcast %cst_66 : f32 to vector<16x1xf32>
    %381 = arith.cmpf ogt, %0, %380 : vector<16x1xf32>
    %382 = vector.shape_cast %381 : vector<16x1xi1> to vector<16x1xi1>
    %383 = vector.broadcast %382 : vector<16x1xi1> to vector<16x32xi1>
    %384 = arith.select %383, %377, %351 : vector<16x32xi1>, vector<16x32xf32>
    %385 = vector.shape_cast %381 : vector<16x1xi1> to vector<16x1xi1>
    %386 = vector.broadcast %385 : vector<16x1xi1> to vector<16x32xi1>
    %387 = arith.select %386, %379, %354 : vector<16x32xi1>, vector<16x32xf32>
    %cst_67 = arith.constant 0.000000e+00 : f32
    %388 = vector.shape_cast %381 : vector<16x1xi1> to vector<16x1xi1>
    %389 = vector.broadcast %388 : vector<16x1xi1> to vector<16x32xi1>
    %390 = vector.broadcast %cst_67 : f32 to vector<16x32xf32>
    %391 = arith.select %389, %379, %390 : vector<16x32xi1>, vector<16x32xf32>
    %392 = arith.addf %359, %391 : vector<16x32xf32>
    %393 = vector.extract_strided_slice %260 {offsets = [64, 0], sizes = [16, 128], strides = [1, 1]} : vector<128x128xf32> to vector<16x128xf32>
    %394 = arith.truncf %387 : vector<16x32xf32> to vector<16x32xbf16>
    %cst_68 = arith.constant dense<0.000000e+00> : vector<16x128xf32>
    %395 = tpu.matmul %394, %250, %cst_68 {dimension_numbers = #tpu.dot_dimension_numbers<[1], [0], [0], [1], [0, 0, 1, 1], [], []>} : vector<16x32xbf16>, vector<32x128xbf16>, vector<16x128xf32> -> vector<16x128xf32>
    %396 = arith.addf %393, %395 : vector<16x128xf32>
    %397 = vector.extract_strided_slice %396 {offsets = [0, 0], sizes = [16, 96], strides = [1, 1]} : vector<16x128xf32> to vector<16x96xf32>
    %398 = arith.negf %397 : vector<16x96xf32>
    %399 = math.exp %398 : vector<16x96xf32>
    %cst_69 = arith.constant 1.000000e+00 : f32
    %400 = vector.broadcast %cst_69 : f32 to vector<16x96xf32>
    %401 = arith.addf %400, %399 : vector<16x96xf32>
    %402 = arith.divf %400, %401 : vector<16x96xf32>
    %403 = vector.extract_strided_slice %396 {offsets = [0, 96], sizes = [16, 32], strides = [1, 1]} : vector<16x128xf32> to vector<16x32xf32>
    %404 = math.tanh %403 : vector<16x32xf32>
    %405 = vector.extract_strided_slice %402 {offsets = [0, 0], sizes = [16, 32], strides = [1, 1]} : vector<16x96xf32> to vector<16x32xf32>
    %406 = vector.extract_strided_slice %402 {offsets = [0, 32], sizes = [16, 32], strides = [1, 1]} : vector<16x96xf32> to vector<16x32xf32>
    %407 = vector.extract_strided_slice %402 {offsets = [0, 64], sizes = [16, 32], strides = [1, 1]} : vector<16x96xf32> to vector<16x32xf32>
    %408 = arith.mulf %406, %384 : vector<16x32xf32>
    %409 = arith.mulf %405, %404 : vector<16x32xf32>
    %410 = arith.addf %408, %409 : vector<16x32xf32>
    %411 = math.tanh %410 : vector<16x32xf32>
    %412 = arith.mulf %407, %411 : vector<16x32xf32>
    %cst_70 = arith.constant 4.000000e+00 : f32
    %413 = vector.broadcast %cst_70 : f32 to vector<16x1xf32>
    %414 = arith.cmpf ogt, %0, %413 : vector<16x1xf32>
    %415 = vector.shape_cast %414 : vector<16x1xi1> to vector<16x1xi1>
    %416 = vector.broadcast %415 : vector<16x1xi1> to vector<16x32xi1>
    %417 = arith.select %416, %410, %384 : vector<16x32xi1>, vector<16x32xf32>
    %418 = vector.shape_cast %414 : vector<16x1xi1> to vector<16x1xi1>
    %419 = vector.broadcast %418 : vector<16x1xi1> to vector<16x32xi1>
    %420 = arith.select %419, %412, %387 : vector<16x32xi1>, vector<16x32xf32>
    %cst_71 = arith.constant 0.000000e+00 : f32
    %421 = vector.shape_cast %414 : vector<16x1xi1> to vector<16x1xi1>
    %422 = vector.broadcast %421 : vector<16x1xi1> to vector<16x32xi1>
    %423 = vector.broadcast %cst_71 : f32 to vector<16x32xf32>
    %424 = arith.select %422, %412, %423 : vector<16x32xi1>, vector<16x32xf32>
    %425 = arith.addf %392, %424 : vector<16x32xf32>
    %426 = vector.extract_strided_slice %260 {offsets = [80, 0], sizes = [16, 128], strides = [1, 1]} : vector<128x128xf32> to vector<16x128xf32>
    %427 = arith.truncf %420 : vector<16x32xf32> to vector<16x32xbf16>
    %cst_72 = arith.constant dense<0.000000e+00> : vector<16x128xf32>
    %428 = tpu.matmul %427, %250, %cst_72 {dimension_numbers = #tpu.dot_dimension_numbers<[1], [0], [0], [1], [0, 0, 1, 1], [], []>} : vector<16x32xbf16>, vector<32x128xbf16>, vector<16x128xf32> -> vector<16x128xf32>
    %429 = arith.addf %426, %428 : vector<16x128xf32>
    %430 = vector.extract_strided_slice %429 {offsets = [0, 0], sizes = [16, 96], strides = [1, 1]} : vector<16x128xf32> to vector<16x96xf32>
    %431 = arith.negf %430 : vector<16x96xf32>
    %432 = math.exp %431 : vector<16x96xf32>
    %cst_73 = arith.constant 1.000000e+00 : f32
    %433 = vector.broadcast %cst_73 : f32 to vector<16x96xf32>
    %434 = arith.addf %433, %432 : vector<16x96xf32>
    %435 = arith.divf %433, %434 : vector<16x96xf32>
    %436 = vector.extract_strided_slice %429 {offsets = [0, 96], sizes = [16, 32], strides = [1, 1]} : vector<16x128xf32> to vector<16x32xf32>
    %437 = math.tanh %436 : vector<16x32xf32>
    %438 = vector.extract_strided_slice %435 {offsets = [0, 0], sizes = [16, 32], strides = [1, 1]} : vector<16x96xf32> to vector<16x32xf32>
    %439 = vector.extract_strided_slice %435 {offsets = [0, 32], sizes = [16, 32], strides = [1, 1]} : vector<16x96xf32> to vector<16x32xf32>
    %440 = vector.extract_strided_slice %435 {offsets = [0, 64], sizes = [16, 32], strides = [1, 1]} : vector<16x96xf32> to vector<16x32xf32>
    %441 = arith.mulf %439, %417 : vector<16x32xf32>
    %442 = arith.mulf %438, %437 : vector<16x32xf32>
    %443 = arith.addf %441, %442 : vector<16x32xf32>
    %444 = math.tanh %443 : vector<16x32xf32>
    %445 = arith.mulf %440, %444 : vector<16x32xf32>
    %cst_74 = arith.constant 5.000000e+00 : f32
    %446 = vector.broadcast %cst_74 : f32 to vector<16x1xf32>
    %447 = arith.cmpf ogt, %0, %446 : vector<16x1xf32>
    %448 = vector.shape_cast %447 : vector<16x1xi1> to vector<16x1xi1>
    %449 = vector.broadcast %448 : vector<16x1xi1> to vector<16x32xi1>
    %450 = arith.select %449, %443, %417 : vector<16x32xi1>, vector<16x32xf32>
    %451 = vector.shape_cast %447 : vector<16x1xi1> to vector<16x1xi1>
    %452 = vector.broadcast %451 : vector<16x1xi1> to vector<16x32xi1>
    %453 = arith.select %452, %445, %420 : vector<16x32xi1>, vector<16x32xf32>
    %cst_75 = arith.constant 0.000000e+00 : f32
    %454 = vector.shape_cast %447 : vector<16x1xi1> to vector<16x1xi1>
    %455 = vector.broadcast %454 : vector<16x1xi1> to vector<16x32xi1>
    %456 = vector.broadcast %cst_75 : f32 to vector<16x32xf32>
    %457 = arith.select %455, %445, %456 : vector<16x32xi1>, vector<16x32xf32>
    %458 = arith.addf %425, %457 : vector<16x32xf32>
    %459 = vector.extract_strided_slice %260 {offsets = [96, 0], sizes = [16, 128], strides = [1, 1]} : vector<128x128xf32> to vector<16x128xf32>
    %460 = arith.truncf %453 : vector<16x32xf32> to vector<16x32xbf16>
    %cst_76 = arith.constant dense<0.000000e+00> : vector<16x128xf32>
    %461 = tpu.matmul %460, %250, %cst_76 {dimension_numbers = #tpu.dot_dimension_numbers<[1], [0], [0], [1], [0, 0, 1, 1], [], []>} : vector<16x32xbf16>, vector<32x128xbf16>, vector<16x128xf32> -> vector<16x128xf32>
    %462 = arith.addf %459, %461 : vector<16x128xf32>
    %463 = vector.extract_strided_slice %462 {offsets = [0, 0], sizes = [16, 96], strides = [1, 1]} : vector<16x128xf32> to vector<16x96xf32>
    %464 = arith.negf %463 : vector<16x96xf32>
    %465 = math.exp %464 : vector<16x96xf32>
    %cst_77 = arith.constant 1.000000e+00 : f32
    %466 = vector.broadcast %cst_77 : f32 to vector<16x96xf32>
    %467 = arith.addf %466, %465 : vector<16x96xf32>
    %468 = arith.divf %466, %467 : vector<16x96xf32>
    %469 = vector.extract_strided_slice %462 {offsets = [0, 96], sizes = [16, 32], strides = [1, 1]} : vector<16x128xf32> to vector<16x32xf32>
    %470 = math.tanh %469 : vector<16x32xf32>
    %471 = vector.extract_strided_slice %468 {offsets = [0, 0], sizes = [16, 32], strides = [1, 1]} : vector<16x96xf32> to vector<16x32xf32>
    %472 = vector.extract_strided_slice %468 {offsets = [0, 32], sizes = [16, 32], strides = [1, 1]} : vector<16x96xf32> to vector<16x32xf32>
    %473 = vector.extract_strided_slice %468 {offsets = [0, 64], sizes = [16, 32], strides = [1, 1]} : vector<16x96xf32> to vector<16x32xf32>
    %474 = arith.mulf %472, %450 : vector<16x32xf32>
    %475 = arith.mulf %471, %470 : vector<16x32xf32>
    %476 = arith.addf %474, %475 : vector<16x32xf32>
    %477 = math.tanh %476 : vector<16x32xf32>
    %478 = arith.mulf %473, %477 : vector<16x32xf32>
    %cst_78 = arith.constant 6.000000e+00 : f32
    %479 = vector.broadcast %cst_78 : f32 to vector<16x1xf32>
    %480 = arith.cmpf ogt, %0, %479 : vector<16x1xf32>
    %481 = vector.shape_cast %480 : vector<16x1xi1> to vector<16x1xi1>
    %482 = vector.broadcast %481 : vector<16x1xi1> to vector<16x32xi1>
    %483 = arith.select %482, %476, %450 : vector<16x32xi1>, vector<16x32xf32>
    %484 = vector.shape_cast %480 : vector<16x1xi1> to vector<16x1xi1>
    %485 = vector.broadcast %484 : vector<16x1xi1> to vector<16x32xi1>
    %486 = arith.select %485, %478, %453 : vector<16x32xi1>, vector<16x32xf32>
    %cst_79 = arith.constant 0.000000e+00 : f32
    %487 = vector.shape_cast %480 : vector<16x1xi1> to vector<16x1xi1>
    %488 = vector.broadcast %487 : vector<16x1xi1> to vector<16x32xi1>
    %489 = vector.broadcast %cst_79 : f32 to vector<16x32xf32>
    %490 = arith.select %488, %478, %489 : vector<16x32xi1>, vector<16x32xf32>
    %491 = arith.addf %458, %490 : vector<16x32xf32>
    %492 = vector.extract_strided_slice %260 {offsets = [112, 0], sizes = [16, 128], strides = [1, 1]} : vector<128x128xf32> to vector<16x128xf32>
    %493 = arith.truncf %486 : vector<16x32xf32> to vector<16x32xbf16>
    %cst_80 = arith.constant dense<0.000000e+00> : vector<16x128xf32>
    %494 = tpu.matmul %493, %250, %cst_80 {dimension_numbers = #tpu.dot_dimension_numbers<[1], [0], [0], [1], [0, 0, 1, 1], [], []>} : vector<16x32xbf16>, vector<32x128xbf16>, vector<16x128xf32> -> vector<16x128xf32>
    %495 = arith.addf %492, %494 : vector<16x128xf32>
    %496 = vector.extract_strided_slice %495 {offsets = [0, 0], sizes = [16, 96], strides = [1, 1]} : vector<16x128xf32> to vector<16x96xf32>
    %497 = arith.negf %496 : vector<16x96xf32>
    %498 = math.exp %497 : vector<16x96xf32>
    %cst_81 = arith.constant 1.000000e+00 : f32
    %499 = vector.broadcast %cst_81 : f32 to vector<16x96xf32>
    %500 = arith.addf %499, %498 : vector<16x96xf32>
    %501 = arith.divf %499, %500 : vector<16x96xf32>
    %502 = vector.extract_strided_slice %495 {offsets = [0, 96], sizes = [16, 32], strides = [1, 1]} : vector<16x128xf32> to vector<16x32xf32>
    %503 = math.tanh %502 : vector<16x32xf32>
    %504 = vector.extract_strided_slice %501 {offsets = [0, 0], sizes = [16, 32], strides = [1, 1]} : vector<16x96xf32> to vector<16x32xf32>
    %505 = vector.extract_strided_slice %501 {offsets = [0, 32], sizes = [16, 32], strides = [1, 1]} : vector<16x96xf32> to vector<16x32xf32>
    %506 = vector.extract_strided_slice %501 {offsets = [0, 64], sizes = [16, 32], strides = [1, 1]} : vector<16x96xf32> to vector<16x32xf32>
    %507 = arith.mulf %505, %483 : vector<16x32xf32>
    %508 = arith.mulf %504, %503 : vector<16x32xf32>
    %509 = arith.addf %507, %508 : vector<16x32xf32>
    %510 = math.tanh %509 : vector<16x32xf32>
    %511 = arith.mulf %506, %510 : vector<16x32xf32>
    %cst_82 = arith.constant 7.000000e+00 : f32
    %512 = vector.broadcast %cst_82 : f32 to vector<16x1xf32>
    %513 = arith.cmpf ogt, %0, %512 : vector<16x1xf32>
    %cst_83 = arith.constant 0.000000e+00 : f32
    %514 = vector.shape_cast %513 : vector<16x1xi1> to vector<16x1xi1>
    %515 = vector.broadcast %514 : vector<16x1xi1> to vector<16x32xi1>
    %516 = vector.broadcast %cst_83 : f32 to vector<16x32xf32>
    %517 = arith.select %515, %511, %516 : vector<16x32xi1>, vector<16x32xf32>
    %518 = arith.addf %491, %517 : vector<16x32xf32>
    %519 = vector.broadcast %0 : vector<16x1xf32> to vector<16x32xf32>
    %520 = arith.divf %518, %519 : vector<16x32xf32>
    %521 = arith.mulf %520, %520 : vector<16x32xf32>
    %cst_84 = arith.constant dense<0.000000e+00> : vector<16xf32>
    %522 = vector.multi_reduction <add>, %521, %cst_84 [1] : vector<16x32xf32> to vector<16xf32>
    %523 = vector.shape_cast %522 : vector<16xf32> to vector<16x1xf32>
    %cst_85 = arith.constant 1.000000e-24 : f32
    %524 = vector.broadcast %cst_85 : f32 to vector<16x1xf32>
    %525 = arith.maximumf %523, %524 : vector<16x1xf32>
    %526 = math.rsqrt %525 : vector<16x1xf32>
    %527 = vector.broadcast %526 : vector<16x1xf32> to vector<16x32xf32>
    %528 = arith.mulf %520, %527 : vector<16x32xf32>
    %c0_86 = arith.constant 0 : index
    %c0_87 = arith.constant 0 : index
    %529 = vector.load %arg9[%c0_86, %c0_87] : memref<16x32xf32, #tpu.memory_space<vmem>>, vector<16x32xf32>
    tpu.vector_store %arg9[%c0_86, %c0_87], %528 {strides = array<i32>} : memref<16x32xf32, #tpu.memory_space<vmem>>, vector<16x32xf32>,
    return
  }
  func.func @transform_0(%arg0: i32) -> (i32, i32, i32) {
    %c0_i32 = arith.constant 0 : i32
    %c0_i32_0 = arith.constant 0 : i32
    %c0_i32_1 = arith.constant 0 : i32
    return %c0_i32, %arg0, %c0_i32_0 : i32, i32, i32
  }
  func.func @transform_1(%arg0: i32) -> (i32, i32) {
    %c0_i32 = arith.constant 0 : i32
    %c0_i32_0 = arith.constant 0 : i32
    return %arg0, %c0_i32 : i32, i32
  }
  func.func @transform_2(%arg0: i32) -> (i32, i32) {
    %c0_i32 = arith.constant 0 : i32
    %c0_i32_0 = arith.constant 0 : i32
    %c0_i32_1 = arith.constant 0 : i32
    return %c0_i32, %c0_i32_0 : i32, i32
  }
  func.func @transform_3(%arg0: i32) -> (i32, i32) {
    %c0_i32 = arith.constant 0 : i32
    %c0_i32_0 = arith.constant 0 : i32
    %c0_i32_1 = arith.constant 0 : i32
    return %c0_i32, %c0_i32_0 : i32, i32
  }
  func.func @transform_4(%arg0: i32) -> (i32, i32) {
    %c0_i32 = arith.constant 0 : i32
    %c0_i32_0 = arith.constant 0 : i32
    %c0_i32_1 = arith.constant 0 : i32
    return %c0_i32, %c0_i32_0 : i32, i32
  }
  func.func @transform_5(%arg0: i32) -> (i32, i32) {
    %c0_i32 = arith.constant 0 : i32
    %c0_i32_0 = arith.constant 0 : i32
    %c0_i32_1 = arith.constant 0 : i32
    return %c0_i32, %c0_i32_0 : i32, i32
  }
  func.func @transform_6(%arg0: i32) -> (i32, i32) {
    %c0_i32 = arith.constant 0 : i32
    %c0_i32_0 = arith.constant 0 : i32
    %c0_i32_1 = arith.constant 0 : i32
    return %c0_i32, %c0_i32_0 : i32, i32
  }
  func.func @transform_7(%arg0: i32) -> (i32, i32) {
    %c0_i32 = arith.constant 0 : i32
    %c0_i32_0 = arith.constant 0 : i32
    %c0_i32_1 = arith.constant 0 : i32
    return %c0_i32, %c0_i32_0 : i32, i32
  }
  func.func @transform_8(%arg0: i32) -> (i32, i32) {
    %c0_i32 = arith.constant 0 : i32
    %c0_i32_0 = arith.constant 0 : i32
    return %arg0, %c0_i32 : i32, i32
  }
}

</mosaic_0001>

<llo_original>
// kernel: tpu_custom_call.1
$region0: #{tpu_custom_call.1}
  #allocation0 [shape = 'u32[]', space=smem, size = 0x4, offset = 0x4, fixed_abs, tag = 'smem constant byte address 0x4 - core index']
  #allocation1 [shape = 'u32[144,128]{1,0:T(1,128)}', space=vmem, size = 0x12000, scoped, tag = 'internal scratch']
  #allocation2 [shape = 'bf16[8,16,32]{2,1,0:T(16,128)(2,1)}', space=vmem, size = 0x8000, scoped, tag = 'scratch operand']
  %s0 = inlined_call_operand.hbm [shape: bf16[8,16,64], index: 0, kind: input, shape index: {}]
  %s1 = inlined_call_operand.hbm [shape: f32[16,1], index: 1, kind: input, shape index: {}]
  %s2 = inlined_call_operand.hbm [shape: bf16[64,128], index: 2, kind: input, shape index: {}]
  %s3 = inlined_call_operand.hbm [shape: bf16[32,128], index: 3, kind: input, shape index: {}]
  %s4 = inlined_call_operand.hbm [shape: f32[1,128], index: 4, kind: input, shape index: {}]
  %s5 = inlined_call_operand.hbm [shape: bf16[32,128], index: 5, kind: input, shape index: {}]
  %s6 = inlined_call_operand.hbm [shape: bf16[32,128], index: 6, kind: input, shape index: {}]
  %s7 = inlined_call_operand.hbm [shape: f32[1,128], index: 7, kind: input, shape index: {}]
  %s8 = inlined_call_operand.hbm [shape: f32[16,32], index: 8, kind: output, shape index: {}]
  %s9 = sld [smem:[#allocation0]]
  $region74: #{tpu_custom_call.1} parent=0
    _
  %s11 = ssub.s32 1, %s9
  %s12 = scalar_select 0, %s11, %s9
  $region1: #{tpu_custom_call.1} parent=0
    #allocation3 [shape = 'u8[32768]{0}', space=vmem, size = 0x8000, scoped, tag = 'input window, operand 0, single buffered']
    #allocation4 [shape = 's32[1]{0}', space=sflag, size = 0x4, scoped, tag = 'scoped memory for tpu_custom_call.1']
    #allocation5 [shape = 's32[1]{0}', space=sflag, size = 0x4, scoped, tag = 'scoped memory for tpu_custom_call.1']
    #allocation6 [shape = 'u8[8192]{0}', space=vmem, size = 0x2000, scoped, tag = 'input window, operand 1, single buffered']
    #allocation7 [shape = 's32[1]{0}', space=sflag, size = 0x4, scoped, tag = 'scoped memory for tpu_custom_call.1']
    #allocation8 [shape = 'u8[16384]{0}', space=vmem, size = 0x4000, scoped, tag = 'input window, operand 2, single buffered']
    #allocation9 [shape = 'u8[8192]{0}', space=vmem, size = 0x2000, scoped, tag = 'input window, operand 3, single buffered']
    #allocation10 [shape = 's32[1]{0}', space=sflag, size = 0x4, scoped, tag = 'scoped memory for tpu_custom_call.1']
    #allocation11 [shape = 'u8[512]{0}', space=vmem, size = 0x400, scoped, tag = 'input window, operand 4, single buffered']
    #allocation12 [shape = 'u8[8192]{0}', space=vmem, size = 0x2000, scoped, tag = 'input window, operand 5, single buffered']
    #allocation13 [shape = 's32[1]{0}', space=sflag, size = 0x4, scoped, tag = 'scoped memory for tpu_custom_call.1']
    #allocation14 [shape = 'u8[8192]{0}', space=vmem, size = 0x2000, scoped, tag = 'input window, operand 6, single buffered']
    #allocation15 [shape = 'u8[512]{0}', space=vmem, size = 0x400, scoped, tag = 'input window, operand 7, single buffered']
    #allocation16 [shape = 's32[1]{0}', space=sflag, size = 0x4, scoped, tag = 'scoped memory for tpu_custom_call.1']
    #allocation17 [shape = 'u8[8192]{0}', space=vmem, size = 0x2000, scoped, tag = 'output window, operand 0, single buffered']
    %13 = vsyncpa [#allocation4], 0
    %14 = vsyncpa [#allocation7], 0
    %15 = vsyncpa [#allocation10], 0
    %16 = vsyncpa [#allocation13], 0
    %17 = vsyncpa [#allocation16], 0
    %18 = vsyncpa [#allocation5], 0
    // Predicated region
    $region2: #{tpu_custom_call.1} parent=1 // pred_check
      _
    $region3: #{tpu_custom_call.1} parent=1 // pred_check_branch
      %20 = sbr.rel (0) target = $region5
    $region4: #{tpu_custom_call.1} parent=1 // pred_region
      %s22 = ssub.s32 1024, 1024
      %23 = vsyncadd [#allocation4], %s22
      %s24 = sshll.u32 [#allocation3], 4
      %s25 = int_to_ptr.vmem [resolvable:$true] %s24
      %30 = dma.hbm_to_vmem [thread:$0]  %s0, 1024, %s25, [#allocation4], 64, 64, 4
    $region5: #{tpu_custom_call.1} parent=1 // pred_fallthru
      _
    // Predicated region
    $region6: #{tpu_custom_call.1} parent=1 // pred_check
      _
    $region7: #{tpu_custom_call.1} parent=1 // pred_check_branch
      %32 = sbr.rel (0) target = $region9
    $region8: #{tpu_custom_call.1} parent=1 // pred_region
      %s34 = ssub.s32 256, 256
      %35 = vsyncadd [#allocation7], %s34
      %s36 = sshll.u32 [#allocation6], 4
      %s37 = int_to_ptr.vmem [resolvable:$true] %s36
      %42 = dma.hbm_to_vmem [thread:$0]  %s1, 256, %s37, [#allocation7], 128, 128, 8
    $region9: #{tpu_custom_call.1} parent=1 // pred_fallthru
      _
    // Predicated region
    $region10: #{tpu_custom_call.1} parent=1 // pred_check
      _
    $region11: #{tpu_custom_call.1} parent=1 // pred_check_branch
      %44 = sbr.rel (0) target = $region13
    $region12: #{tpu_custom_call.1} parent=1 // pred_region
      %s46 = ssub.s32 512, 512
      %47 = vsyncadd [#allocation7], %s46
      %s48 = sshll.u32 [#allocation8], 4
      %s49 = int_to_ptr.vmem [resolvable:$true] %s48
      %54 = dma.hbm_to_vmem [thread:$0]  %s2, 512, %s49, [#allocation7], 64, 64, 4
    $region13: #{tpu_custom_call.1} parent=1 // pred_fallthru
      _
    // Predicated region
    $region14: #{tpu_custom_call.1} parent=1 // pred_check
      _
    $region15: #{tpu_custom_call.1} parent=1 // pred_check_branch
      %56 = sbr.rel (0) target = $region17
    $region16: #{tpu_custom_call.1} parent=1 // pred_region
      %s58 = ssub.s32 256, 256
      %59 = vsyncadd [#allocation10], %s58
      %s60 = sshll.u32 [#allocation9], 4
      %s61 = int_to_ptr.vmem [resolvable:$true] %s60
      %66 = dma.hbm_to_vmem [thread:$0]  %s3, 256, %s61, [#allocation10], 64, 64, 4
    $region17: #{tpu_custom_call.1} parent=1 // pred_fallthru
      _
    // Predicated region
    $region18: #{tpu_custom_call.1} parent=1 // pred_check
      _
    $region19: #{tpu_custom_call.1} parent=1 // pred_check_branch
      %68 = sbr.rel (0) target = $region21
    $region20: #{tpu_custom_call.1} parent=1 // pred_region
      %s70 = ssub.s32 16, 16
      %71 = vsyncadd [#allocation10], %s70
      %s73 = sshll.u32 [#allocation11], 4
      %s74 = int_to_ptr.vmem [resolvable:$true] %s73
      %76 = dma.hbm_to_vmem [thread:$0]  %s4, 16, %s74, [#allocation10]
    $region21: #{tpu_custom_call.1} parent=1 // pred_fallthru
      _
    // Predicated region
    $region22: #{tpu_custom_call.1} parent=1 // pred_check
      _
    $region23: #{tpu_custom_call.1} parent=1 // pred_check_branch
      %78 = sbr.rel (0) target = $region25
    $region24: #{tpu_custom_call.1} parent=1 // pred_region
      %s80 = ssub.s32 256, 256
      %81 = vsyncadd [#allocation13], %s80
      %s82 = sshll.u32 [#allocation12], 4
      %s83 = int_to_ptr.vmem [resolvable:$true] %s82
      %88 = dma.hbm_to_vmem [thread:$0]  %s5, 256, %s83, [#allocation13], 64, 64, 4
    $region25: #{tpu_custom_call.1} parent=1 // pred_fallthru
      _
    // Predicated region
    $region26: #{tpu_custom_call.1} parent=1 // pred_check
      _
    $region27: #{tpu_custom_call.1} parent=1 // pred_check_branch
      %90 = sbr.rel (0) target = $region29
    $region28: #{tpu_custom_call.1} parent=1 // pred_region
      %s92 = ssub.s32 256, 256
      %93 = vsyncadd [#allocation13], %s92
      %s94 = sshll.u32 [#allocation14], 4
      %s95 = int_to_ptr.vmem [resolvable:$true] %s94
      %100 = dma.hbm_to_vmem [thread:$0]  %s6, 256, %s95, [#allocation13], 64, 64, 4
    $region29: #{tpu_custom_call.1} parent=1 // pred_fallthru
      _
    // Predicated region
    $region30: #{tpu_custom_call.1} parent=1 // pred_check
      _
    $region31: #{tpu_custom_call.1} parent=1 // pred_check_branch
      %102 = sbr.rel (0) target = $region33
    $region32: #{tpu_custom_call.1} parent=1 // pred_region
      %s104 = ssub.s32 16, 16
      %105 = vsyncadd [#allocation16], %s104
      %s107 = sshll.u32 [#allocation15], 4
      %s108 = int_to_ptr.vmem [resolvable:$true] %s107
      %110 = dma.hbm_to_vmem [thread:$0]  %s7, 16, %s108, [#allocation16]
    $region33: #{tpu_custom_call.1} parent=1 // pred_fallthru
      _
    // Predicated region
    $region34: #{tpu_custom_call.1} parent=1 // pred_check
      _
    $region35: #{tpu_custom_call.1} parent=1 // pred_check_branch
      %112 = sbr.rel (0) target = $region37
    $region36: #{tpu_custom_call.1} parent=1 // pred_region
      %113 = dma.done [#allocation4], 1024
    $region37: #{tpu_custom_call.1} parent=1 // pred_fallthru
      _
    // Predicated region
    $region38: #{tpu_custom_call.1} parent=1 // pred_check
      _
    $region39: #{tpu_custom_call.1} parent=1 // pred_check_branch
      %115 = sbr.rel (0) target = $region41
    $region40: #{tpu_custom_call.1} parent=1 // pred_region
      %116 = dma.done [#allocation7], 256
    $region41: #{tpu_custom_call.1} parent=1 // pred_fallthru
      _
    // Predicated region
    $region42: #{tpu_custom_call.1} parent=1 // pred_check
      _
    $region43: #{tpu_custom_call.1} parent=1 // pred_check_branch
      %118 = sbr.rel (0) target = $region45
    $region44: #{tpu_custom_call.1} parent=1 // pred_region
      %119 = dma.done [#allocation7], 512
    $region45: #{tpu_custom_call.1} parent=1 // pred_fallthru
      _
    // Predicated region
    $region46: #{tpu_custom_call.1} parent=1 // pred_check
      _
    $region47: #{tpu_custom_call.1} parent=1 // pred_check_branch
      %121 = sbr.rel (0) target = $region49
    $region48: #{tpu_custom_call.1} parent=1 // pred_region
      %122 = dma.done [#allocation10], 256
    $region49: #{tpu_custom_call.1} parent=1 // pred_fallthru
      _
    // Predicated region
    $region50: #{tpu_custom_call.1} parent=1 // pred_check
      _
    $region51: #{tpu_custom_call.1} parent=1 // pred_check_branch
      %124 = sbr.rel (0) target = $region53
    $region52: #{tpu_custom_call.1} parent=1 // pred_region
      %125 = dma.done [#allocation10], 16
    $region53: #{tpu_custom_call.1} parent=1 // pred_fallthru
      _
    // Predicated region
    $region54: #{tpu_custom_call.1} parent=1 // pred_check
      _
    $region55: #{tpu_custom_call.1} parent=1 // pred_check_branch
      %127 = sbr.rel (0) target = $region57
    $region56: #{tpu_custom_call.1} parent=1 // pred_region
      %128 = dma.done [#allocation13], 256
    $region57: #{tpu_custom_call.1} parent=1 // pred_fallthru
      _
    // Predicated region
    $region58: #{tpu_custom_call.1} parent=1 // pred_check
      _
    $region59: #{tpu_custom_call.1} parent=1 // pred_check_branch
      %130 = sbr.rel (0) target = $region61
    $region60: #{tpu_custom_call.1} parent=1 // pred_region
      %131 = dma.done [#allocation13], 256
    $region61: #{tpu_custom_call.1} parent=1 // pred_fallthru
      _
    // Predicated region
    $region62: #{tpu_custom_call.1} parent=1 // pred_check
      _
    $region63: #{tpu_custom_call.1} parent=1 // pred_check_branch
      %133 = sbr.rel (0) target = $region65
    $region64: #{tpu_custom_call.1} parent=1 // pred_region
      %134 = dma.done [#allocation16], 16
    $region65: #{tpu_custom_call.1} parent=1 // pred_fallthru
      _
    %v136 = vld [vmem:[#allocation6] sm:$0xff]
    %v137 = vld [vmem:[#allocation6 + $0x8] sm:$0xff]
    %v138 = vld [vmem:[#allocation9] sm:$0xf]
    %v139 = vld [vmem:[#allocation9 + $0x4] sm:$0xf]
    %v140 = vld [vmem:[#allocation9 + $0x8] sm:$0xf]
    %v141 = vld [vmem:[#allocation9 + $0xc] sm:$0xf]
    %v142 = vld [vmem:[#allocation11] sm:$0x1]
    %v143 = vld [vmem:[#allocation3] sm:$0xf]
    %v144 = vld [vmem:[#allocation3 + $0x4] sm:$0xf]
    %v145 = vld [vmem:[#allocation3 + $0x8] sm:$0xf]
    %v146 = vld [vmem:[#allocation3 + $0xc] sm:$0xf]
    %v147 = vld [vmem:[#allocation3 + $0x10] sm:$0xf]
    %v148 = vld [vmem:[#allocation3 + $0x14] sm:$0xf]
    %v149 = vld [vmem:[#allocation3 + $0x18] sm:$0xf]
    %v150 = vld [vmem:[#allocation3 + $0x1c] sm:$0xf]
    %v151 = vld [vmem:[#allocation3 + $0x20] sm:$0xf]
    %v152 = vld [vmem:[#allocation3 + $0x24] sm:$0xf]
    %v153 = vld [vmem:[#allocation3 + $0x28] sm:$0xf]
    %v154 = vld [vmem:[#allocation3 + $0x2c] sm:$0xf]
    %v155 = vld [vmem:[#allocation3 + $0x30] sm:$0xf]
    %v156 = vld [vmem:[#allocation3 + $0x34] sm:$0xf]
    %v157 = vld [vmem:[#allocation3 + $0x38] sm:$0xf]
    %v158 = vld [vmem:[#allocation3 + $0x3c] sm:$0xf]
    %v159 = vld [vmem:[#allocation8] sm:$0xf]
    %v160 = vld [vmem:[#allocation8 + $0x4] sm:$0xf]
    %v161 = vld [vmem:[#allocation8 + $0x8] sm:$0xf]
    %v162 = vld [vmem:[#allocation8 + $0xc] sm:$0xf]
    %v163 = vld [vmem:[#allocation8 + $0x10] sm:$0xf]
    %v164 = vld [vmem:[#allocation8 + $0x14] sm:$0xf]
    %v165 = vld [vmem:[#allocation8 + $0x18] sm:$0xf]
    %v166 = vld [vmem:[#allocation8 + $0x1c] sm:$0xf]
    %v168 = vlaneseq
    %v169 = vshrl.u32 %v168, 7
    %v170 = vsub.s32 0, %v169
    %v171 = vrot.slane %v142, %v170
    %v189 = vunpack.c.l.b16 %v143
    %v190 = vunpack.c.l.b16 %v144
    %v191 = vunpack.c.l.b16 %v145
    %v192 = vunpack.c.l.b16 %v146
    %v193 = vunpack.c.l.b16 %v147
    %v194 = vunpack.c.l.b16 %v148
    %v195 = vunpack.c.l.b16 %v149
    %v196 = vunpack.c.l.b16 %v150
    %v197 = vunpack.c.l.b16 %v151
    %v198 = vunpack.c.l.b16 %v152
    %v199 = vunpack.c.l.b16 %v153
    %v200 = vunpack.c.l.b16 %v154
    %v201 = vunpack.c.l.b16 %v155
    %v202 = vunpack.c.l.b16 %v156
    %v203 = vunpack.c.l.b16 %v157
    %v204 = vunpack.c.l.b16 %v158
    %v205 = vpack.c.b16 %v190, %v189
    %v206 = vpack.c.b16 %v192, %v191
    %v207 = vpack.c.b16 %v194, %v193
    %v208 = vpack.c.b16 %v196, %v195
    %v209 = vpack.c.b16 %v198, %v197
    %v210 = vpack.c.b16 %v200, %v199
    %v211 = vpack.c.b16 %v202, %v201
    %v212 = vpack.c.b16 %v204, %v203
    %v221 = vunpack.c.l.b16 %v159
    %v222 = vunpack.c.l.b16 %v160
    %v223 = vunpack.c.l.b16 %v161
    %v224 = vunpack.c.l.b16 %v162
    %v225 = vunpack.c.l.b16 %v163
    %v226 = vunpack.c.l.b16 %v164
    %v227 = vunpack.c.l.b16 %v165
    %v228 = vunpack.c.l.b16 %v166
    %v229 = vpack.c.b16 %v222, %v221
    %v230 = vpack.c.b16 %v224, %v223
    %v231 = vpack.c.b16 %v226, %v225
    %v232 = vpack.c.b16 %v228, %v227
    %vm237 = vcmask 523264
    %v239 = vsel %vm237, %v205, 0
    %v242 = vsel %vm237, %v206, 0
    %v245 = vsel %vm237, %v207, 0
    %v248 = vsel %vm237, %v208, 0
    %v251 = vsel %vm237, %v209, 0
    %v254 = vsel %vm237, %v210, 0
    %v257 = vsel %vm237, %v211, 0
    %v260 = vsel %vm237, %v212, 0
    %262 = vmatprep.subr.bf16.mxu0 0
    %263 = vmatpush1.bf16.msra.mxu0 %v229
    %264 = vmatprep.subr.bf16.mxu0 0
    %265 = vmatpush1.bf16.msra.mxu0 %v230
    %266 = vmatprep.subr.bf16.mxu0 0
    %267 = vmatpush1.bf16.msra.mxu0 %v231
    %268 = vmatprep.subr.bf16.mxu0 0
    %269 = vmatpush1.bf16.msra.mxu0 %v232
    %270 = vmatprep.subr.bf16.mxu0 0
    %271 = vmatpush1.bf16.msra.mxu0 0
    %272 = vmatprep.subr.bf16.mxu0 0
    %273 = vmatpush1.bf16.msra.mxu0 0
    %274 = vmatprep.subr.bf16.mxu0 0
    %275 = vmatpush1.bf16.msra.mxu0 0
    %276 = vmatprep.subr.bf16.mxu0 0
    %277 = vmatpush1.bf16.msra.mxu0 0
    %278 = vmatprep.subr.bf16.mxu0 0
    %279 = vmatpush1.bf16.msra.mxu0 0
    %280 = vmatprep.subr.bf16.mxu0 0
    %281 = vmatpush1.bf16.msra.mxu0 0
    %282 = vmatprep.subr.bf16.mxu0 0
    %283 = vmatpush1.bf16.msra.mxu0 0
    %284 = vmatprep.subr.bf16.mxu0 0
    %285 = vmatpush1.bf16.msra.mxu0 0
    %286 = vmatprep.subr.bf16.mxu0 0
    %287 = vmatpush1.bf16.msra.mxu0 0
    %288 = vmatprep.subr.bf16.mxu0 0
    %289 = vmatpush1.bf16.msra.mxu0 0
    %290 = vmatprep.subr.bf16.mxu0 0
    %291 = vmatpush1.bf16.msra.mxu0 0
    %292 = vmatprep.subr.bf16.mxu0 0
    %293 = vmatpush1.bf16.msra.mxu0 0
    %294 = vmatprep.mubr.bf16.mxu0 0
    %295 = vmatmul.mubr.bf16.gmra.mrb[0].mxu0 %v239
    %v296 = vpop.f32.mrb[0].mxu0
    %v297 = vadd.f32 %v171, %v296
    %v298 = vpop.f32.mrb[0].mxu0
    %v299 = vpop.f32.mrb[0].mxu0
    %v300 = vadd.f32 %v171, %v299
    %v301 = vpop.f32.mrb[0].mxu0
    %302 = vmatprep.mubr.bf16.mxu0 0
    %303 = vmatmul.mubr.bf16.gmra.mrb[0].mxu0 %v242
    %v304 = vpop.f32.mrb[0].mxu0
    %v305 = vadd.f32 %v171, %v304
    %v306 = vpop.f32.mrb[0].mxu0
    %v307 = vpop.f32.mrb[0].mxu0
    %v308 = vadd.f32 %v171, %v307
    %v309 = vpop.f32.mrb[0].mxu0
    %310 = vmatprep.mubr.bf16.mxu0 0
    %311 = vmatmul.mubr.bf16.gmra.mrb[0].mxu0 %v245
    %v312 = vpop.f32.mrb[0].mxu0
    %v313 = vadd.f32 %v171, %v312
    %v314 = vpop.f32.mrb[0].mxu0
    %v315 = vpop.f32.mrb[0].mxu0
    %v316 = vadd.f32 %v171, %v315
    %v317 = vpop.f32.mrb[0].mxu0
    %318 = vmatprep.mubr.bf16.mxu0 0
    %319 = vmatmul.mubr.bf16.gmra.mrb[0].mxu0 %v248
    %v320 = vpop.f32.mrb[0].mxu0
    %v321 = vadd.f32 %v171, %v320
    %v322 = vpop.f32.mrb[0].mxu0
    %v323 = vpop.f32.mrb[0].mxu0
    %v324 = vadd.f32 %v171, %v323
    %v325 = vpop.f32.mrb[0].mxu0
    %326 = vmatprep.mubr.bf16.mxu0 0
    %327 = vmatmul.mubr.bf16.gmra.mrb[0].mxu0 %v251
    %v328 = vpop.f32.mrb[0].mxu0
    %v329 = vadd.f32 %v171, %v328
    %v330 = vpop.f32.mrb[0].mxu0
    %v331 = vpop.f32.mrb[0].mxu0
    %v332 = vadd.f32 %v171, %v331
    %v333 = vpop.f32.mrb[0].mxu0
    %334 = vmatprep.mubr.bf16.mxu0 0
    %335 = vmatmul.mubr.bf16.gmra.mrb[0].mxu0 %v254
    %v336 = vpop.f32.mrb[0].mxu0
    %v337 = vadd.f32 %v171, %v336
    %v338 = vpop.f32.mrb[0].mxu0
    %v339 = vpop.f32.mrb[0].mxu0
    %v340 = vadd.f32 %v171, %v339
    %v341 = vpop.f32.mrb[0].mxu0
    %342 = vmatprep.mubr.bf16.mxu0 0
    %343 = vmatmul.mubr.bf16.gmra.mrb[0].mxu0 %v257
    %v344 = vpop.f32.mrb[0].mxu0
    %v345 = vadd.f32 %v171, %v344
    %v346 = vpop.f32.mrb[0].mxu0
    %v347 = vpop.f32.mrb[0].mxu0
    %v348 = vadd.f32 %v171, %v347
    %v349 = vpop.f32.mrb[0].mxu0
    %350 = vmatprep.mubr.bf16.mxu0 0
    %351 = vmatmul.mubr.bf16.gmra.mrb[0].mxu0 %v260
    %v352 = vpop.f32.mrb[0].mxu0
    %v353 = vadd.f32 %v171, %v352
    %v354 = vpop.f32.mrb[0].mxu0
    %v355 = vpop.f32.mrb[0].mxu0
    %v356 = vadd.f32 %v171, %v355
    %v357 = vpop.f32.mrb[0].mxu0
    %358 = vdwg.mxu0
    %v363 = vunpack.c.l.b16 %v138
    %v364 = vunpack.c.l.b16 %v139
    %v365 = vunpack.c.l.b16 %v140
    %v366 = vunpack.c.l.b16 %v141
    %v367 = vpack.c.b16 %v364, %v363
    %v368 = vpack.c.b16 %v366, %v365
    %vm371 = vcmask 261120
    %v373 = vsel %vm371, 0, 0
    %375 = vmatprep.subr.bf16.mxu0 0
    %376 = vmatpush1.bf16.msra.mxu0 %v367
    %377 = vmatprep.subr.bf16.mxu0 0
    %378 = vmatpush1.bf16.msra.mxu0 %v368
    %379 = vmatprep.subr.bf16.mxu0 0
    %380 = vmatpush1.bf16.msra.mxu0 0
    %381 = vmatprep.subr.bf16.mxu0 0
    %382 = vmatpush1.bf16.msra.mxu0 0
    %383 = vmatprep.subr.bf16.mxu0 0
    %384 = vmatpush1.bf16.msra.mxu0 0
    %385 = vmatprep.subr.bf16.mxu0 0
    %386 = vmatpush1.bf16.msra.mxu0 0
    %387 = vmatprep.subr.bf16.mxu0 0
    %388 = vmatpush1.bf16.msra.mxu0 0
    %389 = vmatprep.subr.bf16.mxu0 0
    %390 = vmatpush1.bf16.msra.mxu0 0
    %391 = vmatprep.subr.bf16.mxu0 0
    %392 = vmatpush1.bf16.msra.mxu0 0
    %393 = vmatprep.subr.bf16.mxu0 0
    %394 = vmatpush1.bf16.msra.mxu0 0
    %395 = vmatprep.subr.bf16.mxu0 0
    %396 = vmatpush1.bf16.msra.mxu0 0
    %397 = vmatprep.subr.bf16.mxu0 0
    %398 = vmatpush1.bf16.msra.mxu0 0
    %399 = vmatprep.subr.bf16.mxu0 0
    %400 = vmatpush1.bf16.msra.mxu0 0
    %401 = vmatprep.subr.bf16.mxu0 0
    %402 = vmatpush1.bf16.msra.mxu0 0
    %403 = vmatprep.subr.bf16.mxu0 0
    %404 = vmatpush1.bf16.msra.mxu0 0
    %405 = vmatprep.subr.bf16.mxu0 0
    %406 = vmatpush1.bf16.msra.mxu0 0
    %407 = vmatprep.mubr.bf16.mxu0 0
    %408 = vmatmul.mubr.bf16.gmra.mrb[0].mxu0 %v373
    %v409 = vpop.f32.mrb[0].mxu0
    %v410 = vadd.f32 0.0, %v409
    %v411 = vpop.f32.mrb[0].mxu0
    %v412 = vpop.f32.mrb[0].mxu0
    %v413 = vadd.f32 0.0, %v412
    %v414 = vpop.f32.mrb[0].mxu0
    %415 = vdwg.mxu0
    %v416 = vadd.f32 %v297, %v410
    %v417 = vadd.f32 %v300, %v413
    %v418 = vxor.u32 %v416, 2147483648
    %v419 = vxor.u32 %v417, 2147483648
    %v420 = vmul.f32 %v418, 1.442695
    %v421 = vpow.pop %v420
    %v422 = vmul.f32 %v419, 1.442695
    %v423 = vpow.pop %v422
    %v424 = vadd.f32 %v421, 1.0
    %v425 = vadd.f32 %v423, 1.0
    %v426 = vrcp.pop %v424
    %v427 = vmul.f32 1.0, %v426
    %v428 = vrcp.pop %v425
    %v429 = vmul.f32 1.0, %v428
    %v430 = vtanh.pop %v416
    %v431 = vtanh.pop %v417
    %v432 = vmul.f32 %v427, 0.0
    %v433 = vmul.f32 %v429, 0.0
    %436 = vrot.lane.b32.xlu0 %v430, 32
    %v437 = vpop.permute.xlu0 %436
    %438 = vrot.lane.b32.xlu0 %v431, 32
    %v439 = vpop.permute.xlu0 %438
    %v442 = vmul.f32 %v427, %v437
    %v443 = vmul.f32 %v429, %v439
    %446 = vrot.lane.b32.xlu0 %v442, 32
    %v447 = vpop.permute.xlu0 %446
    %448 = vrot.lane.b32.xlu0 %v443, 32
    %v449 = vpop.permute.xlu0 %448
    %v452 = vadd.f32 %v432, %v447
    %v453 = vadd.f32 %v433, %v449
    %v454 = vtanh.pop %v452
    %v455 = vtanh.pop %v453
    %458 = vrot.lane.b32.xlu0 %v454, 32
    %v459 = vpop.permute.xlu0 %458
    %460 = vrot.lane.b32.xlu0 %v455, 32
    %v461 = vpop.permute.xlu0 %460
    %v464 = vmul.f32 %v427, %v459
    %v465 = vmul.f32 %v429, %v461
    %vm466 = vcmp.gt.f32.partialorder %v136, 0.0
    %vm467 = vcmp.gt.f32.partialorder %v137, 0.0
    %v468 = vsel %vm466, 1, 0
    %v469 = vsel %vm467, 1, 0
    %470 = vset.pattern.permute.xlu0 0
    %471 = vperm.xlu0 %470, %v468
    %v472 = vpop.permute.xlu0 %471
    %473 = vset.pattern.permute.xlu0 0
    %474 = vperm.xlu0 %473, %v469
    %v475 = vpop.permute.xlu0 %474
    %vm476 = vcmp.eq.s32.totalorder %v472, 1
    %vm477 = vcmp.eq.s32.totalorder %v475, 1
    %v478 = vsel %vm476, %v452, 0.0
    %v479 = vsel %vm477, %v453, 0.0
    %v480 = vsel %vm476, %v464, 0.0
    %v481 = vsel %vm477, %v465, 0.0
    %v482 = vpack.c.bf16 %v481, %v480
    %484 = vrot.lane.b32.xlu0 %v482, 64
    %v485 = vpop.permute.xlu0 %484
    %v487 = vsel %vm371, %v485, 0
    %489 = vmatprep.subr.bf16.mxu0 0
    %490 = vmatpush1.bf16.msra.mxu0 %v367
    %491 = vmatprep.subr.bf16.mxu0 0
    %492 = vmatpush1.bf16.msra.mxu0 %v368
    %493 = vmatprep.subr.bf16.mxu0 0
    %494 = vmatpush1.bf16.msra.mxu0 0
    %495 = vmatprep.subr.bf16.mxu0 0
    %496 = vmatpush1.bf16.msra.mxu0 0
    %497 = vmatprep.subr.bf16.mxu0 0
    %498 = vmatpush1.bf16.msra.mxu0 0
    %499 = vmatprep.subr.bf16.mxu0 0
    %500 = vmatpush1.bf16.msra.mxu0 0
    %501 = vmatprep.subr.bf16.mxu0 0
    %502 = vmatpush1.bf16.msra.mxu0 0
    %503 = vmatprep.subr.bf16.mxu0 0
    %504 = vmatpush1.bf16.msra.mxu0 0
    %505 = vmatprep.subr.bf16.mxu0 0
    %506 = vmatpush1.bf16.msra.mxu0 0
    %507 = vmatprep.subr.bf16.mxu0 0
    %508 = vmatpush1.bf16.msra.mxu0 0
    %509 = vmatprep.subr.bf16.mxu0 0
    %510 = vmatpush1.bf16.msra.mxu0 0
    %511 = vmatprep.subr.bf16.mxu0 0
    %512 = vmatpush1.bf16.msra.mxu0 0
    %513 = vmatprep.subr.bf16.mxu0 0
    %514 = vmatpush1.bf16.msra.mxu0 0
    %515 = vmatprep.subr.bf16.mxu0 0
    %516 = vmatpush1.bf16.msra.mxu0 0
    %517 = vmatprep.subr.bf16.mxu0 0
    %518 = vmatpush1.bf16.msra.mxu0 0
    %519 = vmatprep.subr.bf16.mxu0 0
    %520 = vmatpush1.bf16.msra.mxu0 0
    %521 = vmatprep.mubr.bf16.mxu0 0
    %522 = vmatmul.mubr.bf16.gmra.mrb[0].mxu0 %v487
    %v523 = vpop.f32.mrb[0].mxu0
    %v524 = vadd.f32 0.0, %v523
    %v525 = vpop.f32.mrb[0].mxu0
    %v526 = vpop.f32.mrb[0].mxu0
    %v527 = vadd.f32 0.0, %v526
    %v528 = vpop.f32.mrb[0].mxu0
    %529 = vdwg.mxu0
    %v530 = vadd.f32 %v305, %v524
    %v531 = vadd.f32 %v308, %v527
    %v532 = vxor.u32 %v530, 2147483648
    %v533 = vxor.u32 %v531, 2147483648
    %v534 = vmul.f32 %v532, 1.442695
    %v535 = vpow.pop %v534
    %v536 = vmul.f32 %v533, 1.442695
    %v537 = vpow.pop %v536
    %v538 = vadd.f32 %v535, 1.0
    %v539 = vadd.f32 %v537, 1.0
    %v540 = vrcp.pop %v538
    %v541 = vmul.f32 1.0, %v540
    %v542 = vrcp.pop %v539
    %v543 = vmul.f32 1.0, %v542
    %v544 = vtanh.pop %v530
    %v545 = vtanh.pop %v531
    %v546 = vmul.f32 %v541, %v478
    %v547 = vmul.f32 %v543, %v479
    %550 = vrot.lane.b32.xlu0 %v544, 32
    %v551 = vpop.permute.xlu0 %550
    %552 = vrot.lane.b32.xlu0 %v545, 32
    %v553 = vpop.permute.xlu0 %552
    %v556 = vmul.f32 %v541, %v551
    %v557 = vmul.f32 %v543, %v553
    %560 = vrot.lane.b32.xlu0 %v556, 32
    %v561 = vpop.permute.xlu0 %560
    %562 = vrot.lane.b32.xlu0 %v557, 32
    %v563 = vpop.permute.xlu0 %562
    %v566 = vadd.f32 %v546, %v561
    %v567 = vadd.f32 %v547, %v563
    %v568 = vtanh.pop %v566
    %v569 = vtanh.pop %v567
    %572 = vrot.lane.b32.xlu0 %v568, 32
    %v573 = vpop.permute.xlu0 %572
    %574 = vrot.lane.b32.xlu0 %v569, 32
    %v575 = vpop.permute.xlu0 %574
    %v578 = vmul.f32 %v541, %v573
    %v579 = vmul.f32 %v543, %v575
    %vm580 = vcmp.gt.f32.partialorder %v136, 1.0
    %vm581 = vcmp.gt.f32.partialorder %v137, 1.0
    %v582 = vsel %vm580, 1, 0
    %v583 = vsel %vm581, 1, 0
    %584 = vset.pattern.permute.xlu0 0
    %585 = vperm.xlu0 %584, %v582
    %v586 = vpop.permute.xlu0 %585
    %587 = vset.pattern.permute.xlu0 0
    %588 = vperm.xlu0 %587, %v583
    %v589 = vpop.permute.xlu0 %588
    %vm590 = vcmp.eq.s32.totalorder %v586, 1
    %vm591 = vcmp.eq.s32.totalorder %v589, 1
    %v592 = vsel %vm590, %v566, %v478
    %v593 = vsel %vm591, %v567, %v479
    %v594 = vsel %vm590, %v578, %v480
    %v595 = vsel %vm591, %v579, %v481
    %v596 = vpack.c.bf16 %v595, %v594
    %598 = vrot.lane.b32.xlu0 %v596, 64
    %v599 = vpop.permute.xlu0 %598
    %v601 = vsel %vm371, %v599, 0
    %603 = vmatprep.subr.bf16.mxu0 0
    %604 = vmatpush1.bf16.msra.mxu0 %v367
    %605 = vmatprep.subr.bf16.mxu0 0
    %606 = vmatpush1.bf16.msra.mxu0 %v368
    %607 = vmatprep.subr.bf16.mxu0 0
    %608 = vmatpush1.bf16.msra.mxu0 0
    %609 = vmatprep.subr.bf16.mxu0 0
    %610 = vmatpush1.bf16.msra.mxu0 0
    %611 = vmatprep.subr.bf16.mxu0 0
    %612 = vmatpush1.bf16.msra.mxu0 0
    %613 = vmatprep.subr.bf16.mxu0 0
    %614 = vmatpush1.bf16.msra.mxu0 0
    %615 = vmatprep.subr.bf16.mxu0 0
    %616 = vmatpush1.bf16.msra.mxu0 0
    %617 = vmatprep.subr.bf16.mxu0 0
    %618 = vmatpush1.bf16.msra.mxu0 0
    %619 = vmatprep.subr.bf16.mxu0 0
    %620 = vmatpush1.bf16.msra.mxu0 0
    %621 = vmatprep.subr.bf16.mxu0 0
    %622 = vmatpush1.bf16.msra.mxu0 0
    %623 = vmatprep.subr.bf16.mxu0 0
    %624 = vmatpush1.bf16.msra.mxu0 0
    %625 = vmatprep.subr.bf16.mxu0 0
    %626 = vmatpush1.bf16.msra.mxu0 0
    %627 = vmatprep.subr.bf16.mxu0 0
    %628 = vmatpush1.bf16.msra.mxu0 0
    %629 = vmatprep.subr.bf16.mxu0 0
    %630 = vmatpush1.bf16.msra.mxu0 0
    %631 = vmatprep.subr.bf16.mxu0 0
    %632 = vmatpush1.bf16.msra.mxu0 0
    %633 = vmatprep.subr.bf16.mxu0 0
    %634 = vmatpush1.bf16.msra.mxu0 0
    %635 = vmatprep.mubr.bf16.mxu0 0
    %636 = vmatmul.mubr.bf16.gmra.mrb[0].mxu0 %v601
    %v637 = vpop.f32.mrb[0].mxu0
    %v638 = vadd.f32 0.0, %v637
    %v639 = vpop.f32.mrb[0].mxu0
    %v640 = vpop.f32.mrb[0].mxu0
    %v641 = vadd.f32 0.0, %v640
    %v642 = vpop.f32.mrb[0].mxu0
    %643 = vdwg.mxu0
    %v644 = vadd.f32 %v313, %v638
    %v645 = vadd.f32 %v316, %v641
    %v646 = vxor.u32 %v644, 2147483648
    %v647 = vxor.u32 %v645, 2147483648
    %v648 = vmul.f32 %v646, 1.442695
    %v649 = vpow.pop %v648
    %v650 = vmul.f32 %v647, 1.442695
    %v651 = vpow.pop %v650
    %v652 = vadd.f32 %v649, 1.0
    %v653 = vadd.f32 %v651, 1.0
    %v654 = vrcp.pop %v652
    %v655 = vmul.f32 1.0, %v654
    %v656 = vrcp.pop %v653
    %v657 = vmul.f32 1.0, %v656
    %v658 = vtanh.pop %v644
    %v659 = vtanh.pop %v645
    %v660 = vmul.f32 %v655, %v592
    %v661 = vmul.f32 %v657, %v593
    %664 = vrot.lane.b32.xlu0 %v658, 32
    %v665 = vpop.permute.xlu0 %664
    %666 = vrot.lane.b32.xlu0 %v659, 32
    %v667 = vpop.permute.xlu0 %666
    %v670 = vmul.f32 %v655, %v665
    %v671 = vmul.f32 %v657, %v667
    %674 = vrot.lane.b32.xlu0 %v670, 32
    %v675 = vpop.permute.xlu0 %674
    %676 = vrot.lane.b32.xlu0 %v671, 32
    %v677 = vpop.permute.xlu0 %676
    %v680 = vadd.f32 %v660, %v675
    %v681 = vadd.f32 %v661, %v677
    %v682 = vtanh.pop %v680
    %v683 = vtanh.pop %v681
    %686 = vrot.lane.b32.xlu0 %v682, 32
    %v687 = vpop.permute.xlu0 %686
    %688 = vrot.lane.b32.xlu0 %v683, 32
    %v689 = vpop.permute.xlu0 %688
    %v692 = vmul.f32 %v655, %v687
    %v693 = vmul.f32 %v657, %v689
    %vm694 = vcmp.gt.f32.partialorder %v136, 2.0
    %vm695 = vcmp.gt.f32.partialorder %v137, 2.0
    %v696 = vsel %vm694, 1, 0
    %v697 = vsel %vm695, 1, 0
    %698 = vset.pattern.permute.xlu0 0
    %699 = vperm.xlu0 %698, %v696
    %v700 = vpop.permute.xlu0 %699
    %701 = vset.pattern.permute.xlu0 0
    %702 = vperm.xlu0 %701, %v697
    %v703 = vpop.permute.xlu0 %702
    %vm704 = vcmp.eq.s32.totalorder %v700, 1
    %vm705 = vcmp.eq.s32.totalorder %v703, 1
    %v706 = vsel %vm704, %v680, %v592
    %v707 = vsel %vm705, %v681, %v593
    %v708 = vsel %vm704, %v692, %v594
    %v709 = vsel %vm705, %v693, %v595
    %v710 = vpack.c.bf16 %v709, %v708
    %712 = vrot.lane.b32.xlu0 %v710, 64
    %v713 = vpop.permute.xlu0 %712
    %v715 = vsel %vm371, %v713, 0
    %717 = vmatprep.subr.bf16.mxu0 0
    %718 = vmatpush1.bf16.msra.mxu0 %v367
    %719 = vmatprep.subr.bf16.mxu0 0
    %720 = vmatpush1.bf16.msra.mxu0 %v368
    %721 = vmatprep.subr.bf16.mxu0 0
    %722 = vmatpush1.bf16.msra.mxu0 0
    %723 = vmatprep.subr.bf16.mxu0 0
    %724 = vmatpush1.bf16.msra.mxu0 0
    %725 = vmatprep.subr.bf16.mxu0 0
    %726 = vmatpush1.bf16.msra.mxu0 0
    %727 = vmatprep.subr.bf16.mxu0 0
    %728 = vmatpush1.bf16.msra.mxu0 0
    %729 = vmatprep.subr.bf16.mxu0 0
    %730 = vmatpush1.bf16.msra.mxu0 0
    %731 = vmatprep.subr.bf16.mxu0 0
    %732 = vmatpush1.bf16.msra.mxu0 0
    %733 = vmatprep.subr.bf16.mxu0 0
    %734 = vmatpush1.bf16.msra.mxu0 0
    %735 = vmatprep.subr.bf16.mxu0 0
    %736 = vmatpush1.bf16.msra.mxu0 0
    %737 = vmatprep.subr.bf16.mxu0 0
    %738 = vmatpush1.bf16.msra.mxu0 0
    %739 = vmatprep.subr.bf16.mxu0 0
    %740 = vmatpush1.bf16.msra.mxu0 0
    %741 = vmatprep.subr.bf16.mxu0 0
    %742 = vmatpush1.bf16.msra.mxu0 0
    %743 = vmatprep.subr.bf16.mxu0 0
    %744 = vmatpush1.bf16.msra.mxu0 0
    %745 = vmatprep.subr.bf16.mxu0 0
    %746 = vmatpush1.bf16.msra.mxu0 0
    %747 = vmatprep.subr.bf16.mxu0 0
    %748 = vmatpush1.bf16.msra.mxu0 0
    %749 = vmatprep.mubr.bf16.mxu0 0
    %750 = vmatmul.mubr.bf16.gmra.mrb[0].mxu0 %v715
    %v751 = vpop.f32.mrb[0].mxu0
    %v752 = vadd.f32 0.0, %v751
    %v753 = vpop.f32.mrb[0].mxu0
    %v754 = vpop.f32.mrb[0].mxu0
    %v755 = vadd.f32 0.0, %v754
    %v756 = vpop.f32.mrb[0].mxu0
    %757 = vdwg.mxu0
    %v758 = vadd.f32 %v321, %v752
    %v759 = vadd.f32 %v324, %v755
    %v760 = vxor.u32 %v758, 2147483648
    %v761 = vxor.u32 %v759, 2147483648
    %v762 = vmul.f32 %v760, 1.442695
    %v763 = vpow.pop %v762
    %v764 = vmul.f32 %v761, 1.442695
    %v765 = vpow.pop %v764
    %v766 = vadd.f32 %v763, 1.0
    %v767 = vadd.f32 %v765, 1.0
    %v768 = vrcp.pop %v766
    %v769 = vmul.f32 1.0, %v768
    %v770 = vrcp.pop %v767
    %v771 = vmul.f32 1.0, %v770
    %v772 = vtanh.pop %v758
    %v773 = vtanh.pop %v759
    %v774 = vmul.f32 %v769, %v706
    %v775 = vmul.f32 %v771, %v707
    %778 = vrot.lane.b32.xlu0 %v772, 32
    %v779 = vpop.permute.xlu0 %778
    %780 = vrot.lane.b32.xlu0 %v773, 32
    %v781 = vpop.permute.xlu0 %780
    %v784 = vmul.f32 %v769, %v779
    %v785 = vmul.f32 %v771, %v781
    %788 = vrot.lane.b32.xlu0 %v784, 32
    %v789 = vpop.permute.xlu0 %788
    %790 = vrot.lane.b32.xlu0 %v785, 32
    %v791 = vpop.permute.xlu0 %790
    %v794 = vadd.f32 %v774, %v789
    %v795 = vadd.f32 %v775, %v791
    %v796 = vtanh.pop %v794
    %v797 = vtanh.pop %v795
    %800 = vrot.lane.b32.xlu0 %v796, 32
    %v801 = vpop.permute.xlu0 %800
    %802 = vrot.lane.b32.xlu0 %v797, 32
    %v803 = vpop.permute.xlu0 %802
    %v806 = vmul.f32 %v769, %v801
    %v807 = vmul.f32 %v771, %v803
    %vm808 = vcmp.gt.f32.partialorder %v136, 3.0
    %vm809 = vcmp.gt.f32.partialorder %v137, 3.0
    %v810 = vsel %vm808, 1, 0
    %v811 = vsel %vm809, 1, 0
    %812 = vset.pattern.permute.xlu0 0
    %813 = vperm.xlu0 %812, %v810
    %v814 = vpop.permute.xlu0 %813
    %815 = vset.pattern.permute.xlu0 0
    %816 = vperm.xlu0 %815, %v811
    %v817 = vpop.permute.xlu0 %816
    %vm818 = vcmp.eq.s32.totalorder %v814, 1
    %vm819 = vcmp.eq.s32.totalorder %v817, 1
    %v820 = vsel %vm818, %v794, %v706
    %v821 = vsel %vm819, %v795, %v707
    %v822 = vsel %vm818, %v806, %v708
    %v823 = vsel %vm819, %v807, %v709
    %v824 = vpack.c.bf16 %v823, %v822
    %826 = vrot.lane.b32.xlu0 %v824, 64
    %v827 = vpop.permute.xlu0 %826
    %v829 = vsel %vm371, %v827, 0
    %831 = vmatprep.subr.bf16.mxu0 0
    %832 = vmatpush1.bf16.msra.mxu0 %v367
    %833 = vmatprep.subr.bf16.mxu0 0
    %834 = vmatpush1.bf16.msra.mxu0 %v368
    %835 = vmatprep.subr.bf16.mxu0 0
    %836 = vmatpush1.bf16.msra.mxu0 0
    %837 = vmatprep.subr.bf16.mxu0 0
    %838 = vmatpush1.bf16.msra.mxu0 0
    %839 = vmatprep.subr.bf16.mxu0 0
    %840 = vmatpush1.bf16.msra.mxu0 0
    %841 = vmatprep.subr.bf16.mxu0 0
    %842 = vmatpush1.bf16.msra.mxu0 0
    %843 = vmatprep.subr.bf16.mxu0 0
    %844 = vmatpush1.bf16.msra.mxu0 0
    %845 = vmatprep.subr.bf16.mxu0 0
    %846 = vmatpush1.bf16.msra.mxu0 0
    %847 = vmatprep.subr.bf16.mxu0 0
    %848 = vmatpush1.bf16.msra.mxu0 0
    %849 = vmatprep.subr.bf16.mxu0 0
    %850 = vmatpush1.bf16.msra.mxu0 0
    %851 = vmatprep.subr.bf16.mxu0 0
    %852 = vmatpush1.bf16.msra.mxu0 0
    %853 = vmatprep.subr.bf16.mxu0 0
    %854 = vmatpush1.bf16.msra.mxu0 0
    %855 = vmatprep.subr.bf16.mxu0 0
    %856 = vmatpush1.bf16.msra.mxu0 0
    %857 = vmatprep.subr.bf16.mxu0 0
    %858 = vmatpush1.bf16.msra.mxu0 0
    %859 = vmatprep.subr.bf16.mxu0 0
    %860 = vmatpush1.bf16.msra.mxu0 0
    %861 = vmatprep.subr.bf16.mxu0 0
    %862 = vmatpush1.bf16.msra.mxu0 0
    %863 = vmatprep.mubr.bf16.mxu0 0
    %864 = vmatmul.mubr.bf16.gmra.mrb[0].mxu0 %v829
    %v865 = vpop.f32.mrb[0].mxu0
    %v866 = vadd.f32 0.0, %v865
    %v867 = vpop.f32.mrb[0].mxu0
    %v868 = vpop.f32.mrb[0].mxu0
    %v869 = vadd.f32 0.0, %v868
    %v870 = vpop.f32.mrb[0].mxu0
    %871 = vdwg.mxu0
    %v872 = vadd.f32 %v329, %v866
    %v873 = vadd.f32 %v332, %v869
    %v874 = vxor.u32 %v872, 2147483648
    %v875 = vxor.u32 %v873, 2147483648
    %v876 = vmul.f32 %v874, 1.442695
    %v877 = vpow.pop %v876
    %v878 = vmul.f32 %v875, 1.442695
    %v879 = vpow.pop %v878
    %v880 = vadd.f32 %v877, 1.0
    %v881 = vadd.f32 %v879, 1.0
    %v882 = vrcp.pop %v880
    %v883 = vmul.f32 1.0, %v882
    %v884 = vrcp.pop %v881
    %v885 = vmul.f32 1.0, %v884
    %v886 = vtanh.pop %v872
    %v887 = vtanh.pop %v873
    %v888 = vmul.f32 %v883, %v820
    %v889 = vmul.f32 %v885, %v821
    %892 = vrot.lane.b32.xlu0 %v886, 32
    %v893 = vpop.permute.xlu0 %892
    %894 = vrot.lane.b32.xlu0 %v887, 32
    %v895 = vpop.permute.xlu0 %894
    %v898 = vmul.f32 %v883, %v893
    %v899 = vmul.f32 %v885, %v895
    %902 = vrot.lane.b32.xlu0 %v898, 32
    %v903 = vpop.permute.xlu0 %902
    %904 = vrot.lane.b32.xlu0 %v899, 32
    %v905 = vpop.permute.xlu0 %904
    %v908 = vadd.f32 %v888, %v903
    %v909 = vadd.f32 %v889, %v905
    %v910 = vtanh.pop %v908
    %v911 = vtanh.pop %v909
    %914 = vrot.lane.b32.xlu0 %v910, 32
    %v915 = vpop.permute.xlu0 %914
    %916 = vrot.lane.b32.xlu0 %v911, 32
    %v917 = vpop.permute.xlu0 %916
    %v920 = vmul.f32 %v883, %v915
    %v921 = vmul.f32 %v885, %v917
    %vm922 = vcmp.gt.f32.partialorder %v136, 4.0
    %vm923 = vcmp.gt.f32.partialorder %v137, 4.0
    %v924 = vsel %vm922, 1, 0
    %v925 = vsel %vm923, 1, 0
    %926 = vset.pattern.permute.xlu0 0
    %927 = vperm.xlu0 %926, %v924
    %v928 = vpop.permute.xlu0 %927
    %929 = vset.pattern.permute.xlu0 0
    %930 = vperm.xlu0 %929, %v925
    %v931 = vpop.permute.xlu0 %930
    %vm932 = vcmp.eq.s32.totalorder %v928, 1
    %vm933 = vcmp.eq.s32.totalorder %v931, 1
    %v934 = vsel %vm932, %v908, %v820
    %v935 = vsel %vm933, %v909, %v821
    %v936 = vsel %vm932, %v920, %v822
    %v937 = vsel %vm933, %v921, %v823
    %v938 = vpack.c.bf16 %v937, %v936
    %940 = vrot.lane.b32.xlu0 %v938, 64
    %v941 = vpop.permute.xlu0 %940
    %v943 = vsel %vm371, %v941, 0
    %945 = vmatprep.subr.bf16.mxu0 0
    %946 = vmatpush1.bf16.msra.mxu0 %v367
    %947 = vmatprep.subr.bf16.mxu0 0
    %948 = vmatpush1.bf16.msra.mxu0 %v368
    %949 = vmatprep.subr.bf16.mxu0 0
    %950 = vmatpush1.bf16.msra.mxu0 0
    %951 = vmatprep.subr.bf16.mxu0 0
    %952 = vmatpush1.bf16.msra.mxu0 0
    %953 = vmatprep.subr.bf16.mxu0 0
    %954 = vmatpush1.bf16.msra.mxu0 0
    %955 = vmatprep.subr.bf16.mxu0 0
    %956 = vmatpush1.bf16.msra.mxu0 0
    %957 = vmatprep.subr.bf16.mxu0 0
    %958 = vmatpush1.bf16.msra.mxu0 0
    %959 = vmatprep.subr.bf16.mxu0 0
    %960 = vmatpush1.bf16.msra.mxu0 0
    %961 = vmatprep.subr.bf16.mxu0 0
    %962 = vmatpush1.bf16.msra.mxu0 0
    %963 = vmatprep.subr.bf16.mxu0 0
    %964 = vmatpush1.bf16.msra.mxu0 0
    %965 = vmatprep.subr.bf16.mxu0 0
    %966 = vmatpush1.bf16.msra.mxu0 0
    %967 = vmatprep.subr.bf16.mxu0 0
    %968 = vmatpush1.bf16.msra.mxu0 0
    %969 = vmatprep.subr.bf16.mxu0 0
    %970 = vmatpush1.bf16.msra.mxu0 0
    %971 = vmatprep.subr.bf16.mxu0 0
    %972 = vmatpush1.bf16.msra.mxu0 0
    %973 = vmatprep.subr.bf16.mxu0 0
    %974 = vmatpush1.bf16.msra.mxu0 0
    %975 = vmatprep.subr.bf16.mxu0 0
    %976 = vmatpush1.bf16.msra.mxu0 0
    %977 = vmatprep.mubr.bf16.mxu0 0
    %978 = vmatmul.mubr.bf16.gmra.mrb[0].mxu0 %v943
    %v979 = vpop.f32.mrb[0].mxu0
    %v980 = vadd.f32 0.0, %v979
    %v981 = vpop.f32.mrb[0].mxu0
    %v982 = vpop.f32.mrb[0].mxu0
    %v983 = vadd.f32 0.0, %v982
    %v984 = vpop.f32.mrb[0].mxu0
    %985 = vdwg.mxu0
    %v986 = vadd.f32 %v337, %v980
    %v987 = vadd.f32 %v340, %v983
    %v988 = vxor.u32 %v986, 2147483648
    %v989 = vxor.u32 %v987, 2147483648
    %v990 = vmul.f32 %v988, 1.442695
    %v991 = vpow.pop %v990
    %v992 = vmul.f32 %v989, 1.442695
    %v993 = vpow.pop %v992
    %v994 = vadd.f32 %v991, 1.0
    %v995 = vadd.f32 %v993, 1.0
    %v996 = vrcp.pop %v994
    %v997 = vmul.f32 1.0, %v996
    %v998 = vrcp.pop %v995
    %v999 = vmul.f32 1.0, %v998
    %v1000 = vtanh.pop %v986
    %v1001 = vtanh.pop %v987
    %v1002 = vmul.f32 %v997, %v934
    %v1003 = vmul.f32 %v999, %v935
    %1006 = vrot.lane.b32.xlu0 %v1000, 32
    %v1007 = vpop.permute.xlu0 %1006
    %1008 = vrot.lane.b32.xlu0 %v1001, 32
    %v1009 = vpop.permute.xlu0 %1008
    %v1012 = vmul.f32 %v997, %v1007
    %v1013 = vmul.f32 %v999, %v1009
    %1016 = vrot.lane.b32.xlu0 %v1012, 32
    %v1017 = vpop.permute.xlu0 %1016
    %1018 = vrot.lane.b32.xlu0 %v1013, 32
    %v1019 = vpop.permute.xlu0 %1018
    %v1022 = vadd.f32 %v1002, %v1017
    %v1023 = vadd.f32 %v1003, %v1019
    %v1024 = vtanh.pop %v1022
    %v1025 = vtanh.pop %v1023
    %1028 = vrot.lane.b32.xlu0 %v1024, 32
    %v1029 = vpop.permute.xlu0 %1028
    %1030 = vrot.lane.b32.xlu0 %v1025, 32
    %v1031 = vpop.permute.xlu0 %1030
    %v1034 = vmul.f32 %v997, %v1029
    %v1035 = vmul.f32 %v999, %v1031
    %vm1036 = vcmp.gt.f32.partialorder %v136, 5.0
    %vm1037 = vcmp.gt.f32.partialorder %v137, 5.0
    %v1038 = vsel %vm1036, 1, 0
    %v1039 = vsel %vm1037, 1, 0
    %1040 = vset.pattern.permute.xlu0 0
    %1041 = vperm.xlu0 %1040, %v1038
    %v1042 = vpop.permute.xlu0 %1041
    %1043 = vset.pattern.permute.xlu0 0
    %1044 = vperm.xlu0 %1043, %v1039
    %v1045 = vpop.permute.xlu0 %1044
    %vm1046 = vcmp.eq.s32.totalorder %v1042, 1
    %vm1047 = vcmp.eq.s32.totalorder %v1045, 1
    %v1048 = vsel %vm1046, %v1022, %v934
    %v1049 = vsel %vm1047, %v1023, %v935
    %v1050 = vsel %vm1046, %v1034, %v936
    %v1051 = vsel %vm1047, %v1035, %v937
    %v1052 = vpack.c.bf16 %v1051, %v1050
    %1054 = vrot.lane.b32.xlu0 %v1052, 64
    %v1055 = vpop.permute.xlu0 %1054
    %v1057 = vsel %vm371, %v1055, 0
    %1059 = vmatprep.subr.bf16.mxu0 0
    %1060 = vmatpush1.bf16.msra.mxu0 %v367
    %1061 = vmatprep.subr.bf16.mxu0 0
    %1062 = vmatpush1.bf16.msra.mxu0 %v368
    %1063 = vmatprep.subr.bf16.mxu0 0
    %1064 = vmatpush1.bf16.msra.mxu0 0
    %1065 = vmatprep.subr.bf16.mxu0 0
    %1066 = vmatpush1.bf16.msra.mxu0 0
    %1067 = vmatprep.subr.bf16.mxu0 0
    %1068 = vmatpush1.bf16.msra.mxu0 0
    %1069 = vmatprep.subr.bf16.mxu0 0
    %1070 = vmatpush1.bf16.msra.mxu0 0
    %1071 = vmatprep.subr.bf16.mxu0 0
    %1072 = vmatpush1.bf16.msra.mxu0 0
    %1073 = vmatprep.subr.bf16.mxu0 0
    %1074 = vmatpush1.bf16.msra.mxu0 0
    %1075 = vmatprep.subr.bf16.mxu0 0
    %1076 = vmatpush1.bf16.msra.mxu0 0
    %1077 = vmatprep.subr.bf16.mxu0 0
    %1078 = vmatpush1.bf16.msra.mxu0 0
    %1079 = vmatprep.subr.bf16.mxu0 0
    %1080 = vmatpush1.bf16.msra.mxu0 0
    %1081 = vmatprep.subr.bf16.mxu0 0
    %1082 = vmatpush1.bf16.msra.mxu0 0
    %1083 = vmatprep.subr.bf16.mxu0 0
    %1084 = vmatpush1.bf16.msra.mxu0 0
    %1085 = vmatprep.subr.bf16.mxu0 0
    %1086 = vmatpush1.bf16.msra.mxu0 0
    %1087 = vmatprep.subr.bf16.mxu0 0
    %1088 = vmatpush1.bf16.msra.mxu0 0
    %1089 = vmatprep.subr.bf16.mxu0 0
    %1090 = vmatpush1.bf16.msra.mxu0 0
    %1091 = vmatprep.mubr.bf16.mxu0 0
    %1092 = vmatmul.mubr.bf16.gmra.mrb[0].mxu0 %v1057
    %v1093 = vpop.f32.mrb[0].mxu0
    %v1094 = vadd.f32 0.0, %v1093
    %v1095 = vpop.f32.mrb[0].mxu0
    %v1096 = vpop.f32.mrb[0].mxu0
    %v1097 = vadd.f32 0.0, %v1096
    %v1098 = vpop.f32.mrb[0].mxu0
    %1099 = vdwg.mxu0
    %v1100 = vadd.f32 %v345, %v1094
    %v1101 = vadd.f32 %v348, %v1097
    %v1102 = vxor.u32 %v1100, 2147483648
    %v1103 = vxor.u32 %v1101, 2147483648
    %v1104 = vmul.f32 %v1102, 1.442695
    %v1105 = vpow.pop %v1104
    %v1106 = vmul.f32 %v1103, 1.442695
    %v1107 = vpow.pop %v1106
    %v1108 = vadd.f32 %v1105, 1.0
    %v1109 = vadd.f32 %v1107, 1.0
    %v1110 = vrcp.pop %v1108
    %v1111 = vmul.f32 1.0, %v1110
    %v1112 = vrcp.pop %v1109
    %v1113 = vmul.f32 1.0, %v1112
    %v1114 = vtanh.pop %v1100
    %v1115 = vtanh.pop %v1101
    %v1116 = vmul.f32 %v1111, %v1048
    %v1117 = vmul.f32 %v1113, %v1049
    %1120 = vrot.lane.b32.xlu0 %v1114, 32
    %v1121 = vpop.permute.xlu0 %1120
    %1122 = vrot.lane.b32.xlu0 %v1115, 32
    %v1123 = vpop.permute.xlu0 %1122
    %v1126 = vmul.f32 %v1111, %v1121
    %v1127 = vmul.f32 %v1113, %v1123
    %1130 = vrot.lane.b32.xlu0 %v1126, 32
    %v1131 = vpop.permute.xlu0 %1130
    %1132 = vrot.lane.b32.xlu0 %v1127, 32
    %v1133 = vpop.permute.xlu0 %1132
    %v1136 = vadd.f32 %v1116, %v1131
    %v1137 = vadd.f32 %v1117, %v1133
    %v1138 = vtanh.pop %v1136
    %v1139 = vtanh.pop %v1137
    %1142 = vrot.lane.b32.xlu0 %v1138, 32
    %v1143 = vpop.permute.xlu0 %1142
    %1144 = vrot.lane.b32.xlu0 %v1139, 32
    %v1145 = vpop.permute.xlu0 %1144
    %v1148 = vmul.f32 %v1111, %v1143
    %v1149 = vmul.f32 %v1113, %v1145
    %vm1150 = vcmp.gt.f32.partialorder %v136, 6.0
    %vm1151 = vcmp.gt.f32.partialorder %v137, 6.0
    %v1152 = vsel %vm1150, 1, 0
    %v1153 = vsel %vm1151, 1, 0
    %1154 = vset.pattern.permute.xlu0 0
    %1155 = vperm.xlu0 %1154, %v1152
    %v1156 = vpop.permute.xlu0 %1155
    %1157 = vset.pattern.permute.xlu0 0
    %1158 = vperm.xlu0 %1157, %v1153
    %v1159 = vpop.permute.xlu0 %1158
    %vm1160 = vcmp.eq.s32.totalorder %v1156, 1
    %vm1161 = vcmp.eq.s32.totalorder %v1159, 1
    %v1162 = vsel %vm1160, %v1136, %v1048
    %v1163 = vsel %vm1161, %v1137, %v1049
    %v1164 = vsel %vm1160, %v1148, %v1050
    %v1165 = vsel %vm1161, %v1149, %v1051
    %v1166 = vpack.c.bf16 %v1165, %v1164
    %1168 = vrot.lane.b32.xlu0 %v1166, 64
    %v1169 = vpop.permute.xlu0 %1168
    %v1171 = vsel %vm371, %v1169, 0
    %1173 = vmatprep.subr.bf16.mxu0 0
    %1174 = vmatpush1.bf16.msra.mxu0 %v367
    %1175 = vmatprep.subr.bf16.mxu0 0
    %1176 = vmatpush1.bf16.msra.mxu0 %v368
    %1177 = vmatprep.subr.bf16.mxu0 0
    %1178 = vmatpush1.bf16.msra.mxu0 0
    %1179 = vmatprep.subr.bf16.mxu0 0
    %1180 = vmatpush1.bf16.msra.mxu0 0
    %1181 = vmatprep.subr.bf16.mxu0 0
    %1182 = vmatpush1.bf16.msra.mxu0 0
    %1183 = vmatprep.subr.bf16.mxu0 0
    %1184 = vmatpush1.bf16.msra.mxu0 0
    %1185 = vmatprep.subr.bf16.mxu0 0
    %1186 = vmatpush1.bf16.msra.mxu0 0
    %1187 = vmatprep.subr.bf16.mxu0 0
    %1188 = vmatpush1.bf16.msra.mxu0 0
    %1189 = vmatprep.subr.bf16.mxu0 0
    %1190 = vmatpush1.bf16.msra.mxu0 0
    %1191 = vmatprep.subr.bf16.mxu0 0
    %1192 = vmatpush1.bf16.msra.mxu0 0
    %1193 = vmatprep.subr.bf16.mxu0 0
    %1194 = vmatpush1.bf16.msra.mxu0 0
    %1195 = vmatprep.subr.bf16.mxu0 0
    %1196 = vmatpush1.bf16.msra.mxu0 0
    %1197 = vmatprep.subr.bf16.mxu0 0
    %1198 = vmatpush1.bf16.msra.mxu0 0
    %1199 = vmatprep.subr.bf16.mxu0 0
    %1200 = vmatpush1.bf16.msra.mxu0 0
    %1201 = vmatprep.subr.bf16.mxu0 0
    %1202 = vmatpush1.bf16.msra.mxu0 0
    %1203 = vmatprep.subr.bf16.mxu0 0
    %1204 = vmatpush1.bf16.msra.mxu0 0
    %1205 = vmatprep.mubr.bf16.mxu0 0
    %1206 = vmatmul.mubr.bf16.gmra.mrb[0].mxu0 %v1171
    %v1207 = vpop.f32.mrb[0].mxu0
    %v1208 = vadd.f32 0.0, %v1207
    %v1209 = vpop.f32.mrb[0].mxu0
    %v1210 = vpop.f32.mrb[0].mxu0
    %v1211 = vadd.f32 0.0, %v1210
    %v1212 = vpop.f32.mrb[0].mxu0
    %1213 = vdwg.mxu0
    %v1214 = vadd.f32 %v353, %v1208
    %v1215 = vadd.f32 %v356, %v1211
    %v1216 = vxor.u32 %v1214, 2147483648
    %v1217 = vxor.u32 %v1215, 2147483648
    %v1218 = vmul.f32 %v1216, 1.442695
    %v1219 = vpow.pop %v1218
    %v1220 = vmul.f32 %v1217, 1.442695
    %v1221 = vpow.pop %v1220
    %v1222 = vadd.f32 %v1219, 1.0
    %v1223 = vadd.f32 %v1221, 1.0
    %v1224 = vrcp.pop %v1222
    %v1225 = vmul.f32 1.0, %v1224
    %v1226 = vrcp.pop %v1223
    %v1227 = vmul.f32 1.0, %v1226
    %v1228 = vtanh.pop %v1214
    %v1229 = vtanh.pop %v1215
    %v1230 = vmul.f32 %v1225, %v1162
    %v1231 = vmul.f32 %v1227, %v1163
    %1234 = vrot.lane.b32.xlu0 %v1228, 32
    %v1235 = vpop.permute.xlu0 %1234
    %1236 = vrot.lane.b32.xlu0 %v1229, 32
    %v1237 = vpop.permute.xlu0 %1236
    %v1240 = vmul.f32 %v1225, %v1235
    %v1241 = vmul.f32 %v1227, %v1237
    %1244 = vrot.lane.b32.xlu0 %v1240, 32
    %v1245 = vpop.permute.xlu0 %1244
    %1246 = vrot.lane.b32.xlu0 %v1241, 32
    %v1247 = vpop.permute.xlu0 %1246
    %v1250 = vadd.f32 %v1230, %v1245
    %v1251 = vadd.f32 %v1231, %v1247
    %v1252 = vtanh.pop %v1250
    %v1253 = vtanh.pop %v1251
    %1256 = vrot.lane.b32.xlu0 %v1252, 32
    %v1257 = vpop.permute.xlu0 %1256
    %1258 = vrot.lane.b32.xlu0 %v1253, 32
    %v1259 = vpop.permute.xlu0 %1258
    %v1262 = vmul.f32 %v1225, %v1257
    %v1263 = vmul.f32 %v1227, %v1259
    %vm1264 = vcmp.gt.f32.partialorder %v136, 7.0
    %vm1265 = vcmp.gt.f32.partialorder %v137, 7.0
    %v1266 = vsel %vm1264, 1, 0
    %v1267 = vsel %vm1265, 1, 0
    %1268 = vset.pattern.permute.xlu0 0
    %1269 = vperm.xlu0 %1268, %v1266
    %v1270 = vpop.permute.xlu0 %1269
    %1271 = vset.pattern.permute.xlu0 0
    %1272 = vperm.xlu0 %1271, %v1267
    %v1273 = vpop.permute.xlu0 %1272
    %vm1274 = vcmp.eq.s32.totalorder %v1270, 1
    %vm1275 = vcmp.eq.s32.totalorder %v1273, 1
    %v1276 = vsel %vm1274, %v1262, %v1164
    %v1277 = vsel %vm1275, %v1263, %v1165
    %v1278 = vpack.c.bf16 %v1277, %v1276
    %1280 = vrot.lane.b32.xlu0 %v1278, 64
    %v1281 = vpop.permute.xlu0 %1280
    %1290 = vst.msk [vmem:[#allocation2] sm:$0xff] %vm371, %v485
    %1291 = vst.msk [vmem:[#allocation2 + $0x8] sm:$0xff] %vm371, %v599
    %1292 = vst.msk [vmem:[#allocation2 + $0x10] sm:$0xff] %vm371, %v713
    %1293 = vst.msk [vmem:[#allocation2 + $0x18] sm:$0xff] %vm371, %v827
    %1294 = vst.msk [vmem:[#allocation2 + $0x20] sm:$0xff] %vm371, %v941
    %1295 = vst.msk [vmem:[#allocation2 + $0x28] sm:$0xff] %vm371, %v1055
    %1296 = vst.msk [vmem:[#allocation2 + $0x30] sm:$0xff] %vm371, %v1169
    %1297 = vst.msk [vmem:[#allocation2 + $0x38] sm:$0xff] %vm371, %v1281
    %v1298 = vld [vmem:[#allocation14] sm:$0xf]
    %v1299 = vld [vmem:[#allocation14 + $0x4] sm:$0xf]
    %v1300 = vld [vmem:[#allocation14 + $0x8] sm:$0xf]
    %v1301 = vld [vmem:[#allocation14 + $0xc] sm:$0xf]
    %v1302 = vld [vmem:[#allocation15] sm:$0x1]
    %v1303 = vld [vmem:[#allocation2] sm:$0xff]
    %v1304 = vld [vmem:[#allocation2 + $0x8] sm:$0xff]
    %v1305 = vld [vmem:[#allocation2 + $0x10] sm:$0xff]
    %v1306 = vld [vmem:[#allocation2 + $0x18] sm:$0xff]
    %v1307 = vld [vmem:[#allocation2 + $0x20] sm:$0xff]
    %v1308 = vld [vmem:[#allocation2 + $0x28] sm:$0xff]
    %v1309 = vld [vmem:[#allocation2 + $0x30] sm:$0xff]
    %v1310 = vld [vmem:[#allocation2 + $0x38] sm:$0xff]
    %v1311 = vld [vmem:[#allocation12] sm:$0xf]
    %v1312 = vld [vmem:[#allocation12 + $0x4] sm:$0xf]
    %v1313 = vld [vmem:[#allocation12 + $0x8] sm:$0xf]
    %v1314 = vld [vmem:[#allocation12 + $0xc] sm:$0xf]
    %v1316 = vlaneseq
    %v1317 = vshrl.u32 %v1316, 7
    %v1318 = vsub.s32 0, %v1317
    %v1319 = vrot.slane %v1302, %v1318
    %v1325 = vunpack.c.l.b16 %v1311
    %v1326 = vunpack.c.l.b16 %v1312
    %v1327 = vunpack.c.l.b16 %v1313
    %v1328 = vunpack.c.l.b16 %v1314
    %v1329 = vpack.c.b16 %v1326, %v1325
    %v1330 = vpack.c.b16 %v1328, %v1327
    %v1334 = vsel %vm371, %v1303, 0
    %v1337 = vsel %vm371, %v1304, 0
    %v1340 = vsel %vm371, %v1305, 0
    %v1343 = vsel %vm371, %v1306, 0
    %v1346 = vsel %vm371, %v1307, 0
    %v1349 = vsel %vm371, %v1308, 0
    %v1352 = vsel %vm371, %v1309, 0
    %v1355 = vsel %vm371, %v1310, 0
    %1357 = vmatprep.subr.bf16.mxu0 0
    %1358 = vmatpush1.bf16.msra.mxu0 %v1329
    %1359 = vmatprep.subr.bf16.mxu0 0
    %1360 = vmatpush1.bf16.msra.mxu0 %v1330
    %1361 = vmatprep.subr.bf16.mxu0 0
    %1362 = vmatpush1.bf16.msra.mxu0 0
    %1363 = vmatprep.subr.bf16.mxu0 0
    %1364 = vmatpush1.bf16.msra.mxu0 0
    %1365 = vmatprep.subr.bf16.mxu0 0
    %1366 = vmatpush1.bf16.msra.mxu0 0
    %1367 = vmatprep.subr.bf16.mxu0 0
    %1368 = vmatpush1.bf16.msra.mxu0 0
    %1369 = vmatprep.subr.bf16.mxu0 0
    %1370 = vmatpush1.bf16.msra.mxu0 0
    %1371 = vmatprep.subr.bf16.mxu0 0
    %1372 = vmatpush1.bf16.msra.mxu0 0
    %1373 = vmatprep.subr.bf16.mxu0 0
    %1374 = vmatpush1.bf16.msra.mxu0 0
    %1375 = vmatprep.subr.bf16.mxu0 0
    %1376 = vmatpush1.bf16.msra.mxu0 0
    %1377 = vmatprep.subr.bf16.mxu0 0
    %1378 = vmatpush1.bf16.msra.mxu0 0
    %1379 = vmatprep.subr.bf16.mxu0 0
    %1380 = vmatpush1.bf16.msra.mxu0 0
    %1381 = vmatprep.subr.bf16.mxu0 0
    %1382 = vmatpush1.bf16.msra.mxu0 0
    %1383 = vmatprep.subr.bf16.mxu0 0
    %1384 = vmatpush1.bf16.msra.mxu0 0
    %1385 = vmatprep.subr.bf16.mxu0 0
    %1386 = vmatpush1.bf16.msra.mxu0 0
    %1387 = vmatprep.subr.bf16.mxu0 0
    %1388 = vmatpush1.bf16.msra.mxu0 0
    %1389 = vmatprep.mubr.bf16.mxu0 0
    %1390 = vmatmul.mubr.bf16.gmra.mrb[0].mxu0 %v1334
    %v1391 = vpop.f32.mrb[0].mxu0
    %v1392 = vadd.f32 %v1319, %v1391
    %v1393 = vpop.f32.mrb[0].mxu0
    %v1394 = vpop.f32.mrb[0].mxu0
    %v1395 = vadd.f32 %v1319, %v1394
    %v1396 = vpop.f32.mrb[0].mxu0
    %1397 = vmatprep.mubr.bf16.mxu0 0
    %1398 = vmatmul.mubr.bf16.gmra.mrb[0].mxu0 %v1337
    %v1399 = vpop.f32.mrb[0].mxu0
    %v1400 = vadd.f32 %v1319, %v1399
    %v1401 = vpop.f32.mrb[0].mxu0
    %v1402 = vpop.f32.mrb[0].mxu0
    %v1403 = vadd.f32 %v1319, %v1402
    %v1404 = vpop.f32.mrb[0].mxu0
    %1405 = vmatprep.mubr.bf16.mxu0 0
    %1406 = vmatmul.mubr.bf16.gmra.mrb[0].mxu0 %v1340
    %v1407 = vpop.f32.mrb[0].mxu0
    %v1408 = vadd.f32 %v1319, %v1407
    %v1409 = vpop.f32.mrb[0].mxu0
    %v1410 = vpop.f32.mrb[0].mxu0
    %v1411 = vadd.f32 %v1319, %v1410
    %v1412 = vpop.f32.mrb[0].mxu0
    %1413 = vmatprep.mubr.bf16.mxu0 0
    %1414 = vmatmul.mubr.bf16.gmra.mrb[0].mxu0 %v1343
    %v1415 = vpop.f32.mrb[0].mxu0
    %v1416 = vadd.f32 %v1319, %v1415
    %v1417 = vpop.f32.mrb[0].mxu0
    %v1418 = vpop.f32.mrb[0].mxu0
    %v1419 = vadd.f32 %v1319, %v1418
    %v1420 = vpop.f32.mrb[0].mxu0
    %1421 = vmatprep.mubr.bf16.mxu0 0
    %1422 = vmatmul.mubr.bf16.gmra.mrb[0].mxu0 %v1346
    %v1423 = vpop.f32.mrb[0].mxu0
    %v1424 = vadd.f32 %v1319, %v1423
    %v1425 = vpop.f32.mrb[0].mxu0
    %v1426 = vpop.f32.mrb[0].mxu0
    %v1427 = vadd.f32 %v1319, %v1426
    %v1428 = vpop.f32.mrb[0].mxu0
    %1429 = vmatprep.mubr.bf16.mxu0 0
    %1430 = vmatmul.mubr.bf16.gmra.mrb[0].mxu0 %v1349
    %v1431 = vpop.f32.mrb[0].mxu0
    %v1432 = vadd.f32 %v1319, %v1431
    %v1433 = vpop.f32.mrb[0].mxu0
    %v1434 = vpop.f32.mrb[0].mxu0
    %v1435 = vadd.f32 %v1319, %v1434
    %v1436 = vpop.f32.mrb[0].mxu0
    %1437 = vmatprep.mubr.bf16.mxu0 0
    %1438 = vmatmul.mubr.bf16.gmra.mrb[0].mxu0 %v1352
    %v1439 = vpop.f32.mrb[0].mxu0
    %v1440 = vadd.f32 %v1319, %v1439
    %v1441 = vpop.f32.mrb[0].mxu0
    %v1442 = vpop.f32.mrb[0].mxu0
    %v1443 = vadd.f32 %v1319, %v1442
    %v1444 = vpop.f32.mrb[0].mxu0
    %1445 = vmatprep.mubr.bf16.mxu0 0
    %1446 = vmatmul.mubr.bf16.gmra.mrb[0].mxu0 %v1355
    %v1447 = vpop.f32.mrb[0].mxu0
    %v1448 = vadd.f32 %v1319, %v1447
    %v1449 = vpop.f32.mrb[0].mxu0
    %v1450 = vpop.f32.mrb[0].mxu0
    %v1451 = vadd.f32 %v1319, %v1450
    %v1452 = vpop.f32.mrb[0].mxu0
    %1453 = vdwg.mxu0
    %v1458 = vunpack.c.l.b16 %v1298
    %v1459 = vunpack.c.l.b16 %v1299
    %v1460 = vunpack.c.l.b16 %v1300
    %v1461 = vunpack.c.l.b16 %v1301
    %v1462 = vpack.c.b16 %v1459, %v1458
    %v1463 = vpack.c.b16 %v1461, %v1460
    %1466 = vmatprep.subr.bf16.mxu0 0
    %1467 = vmatpush1.bf16.msra.mxu0 %v1462
    %1468 = vmatprep.subr.bf16.mxu0 0
    %1469 = vmatpush1.bf16.msra.mxu0 %v1463
    %1470 = vmatprep.subr.bf16.mxu0 0
    %1471 = vmatpush1.bf16.msra.mxu0 0
    %1472 = vmatprep.subr.bf16.mxu0 0
    %1473 = vmatpush1.bf16.msra.mxu0 0
    %1474 = vmatprep.subr.bf16.mxu0 0
    %1475 = vmatpush1.bf16.msra.mxu0 0
    %1476 = vmatprep.subr.bf16.mxu0 0
    %1477 = vmatpush1.bf16.msra.mxu0 0
    %1478 = vmatprep.subr.bf16.mxu0 0
    %1479 = vmatpush1.bf16.msra.mxu0 0
    %1480 = vmatprep.subr.bf16.mxu0 0
    %1481 = vmatpush1.bf16.msra.mxu0 0
    %1482 = vmatprep.subr.bf16.mxu0 0
    %1483 = vmatpush1.bf16.msra.mxu0 0
    %1484 = vmatprep.subr.bf16.mxu0 0
    %1485 = vmatpush1.bf16.msra.mxu0 0
    %1486 = vmatprep.subr.bf16.mxu0 0
    %1487 = vmatpush1.bf16.msra.mxu0 0
    %1488 = vmatprep.subr.bf16.mxu0 0
    %1489 = vmatpush1.bf16.msra.mxu0 0
    %1490 = vmatprep.subr.bf16.mxu0 0
    %1491 = vmatpush1.bf16.msra.mxu0 0
    %1492 = vmatprep.subr.bf16.mxu0 0
    %1493 = vmatpush1.bf16.msra.mxu0 0
    %1494 = vmatprep.subr.bf16.mxu0 0
    %1495 = vmatpush1.bf16.msra.mxu0 0
    %1496 = vmatprep.subr.bf16.mxu0 0
    %1497 = vmatpush1.bf16.msra.mxu0 0
    %1498 = vmatprep.mubr.bf16.mxu0 0
    %1499 = vmatmul.mubr.bf16.gmra.mrb[0].mxu0 %v373
    %v1500 = vpop.f32.mrb[0].mxu0
    %v1501 = vadd.f32 0.0, %v1500
    %v1502 = vpop.f32.mrb[0].mxu0
    %v1503 = vpop.f32.mrb[0].mxu0
    %v1504 = vadd.f32 0.0, %v1503
    %v1505 = vpop.f32.mrb[0].mxu0
    %1506 = vdwg.mxu0
    %v1507 = vadd.f32 %v1392, %v1501
    %v1508 = vadd.f32 %v1395, %v1504
    %v1509 = vxor.u32 %v1507, 2147483648
    %v1510 = vxor.u32 %v1508, 2147483648
    %v1511 = vmul.f32 %v1509, 1.442695
    %v1512 = vpow.pop %v1511
    %v1513 = vmul.f32 %v1510, 1.442695
    %v1514 = vpow.pop %v1513
    %v1515 = vadd.f32 %v1512, 1.0
    %v1516 = vadd.f32 %v1514, 1.0
    %v1517 = vrcp.pop %v1515
    %v1518 = vmul.f32 1.0, %v1517
    %v1519 = vrcp.pop %v1516
    %v1520 = vmul.f32 1.0, %v1519
    %v1521 = vtanh.pop %v1507
    %v1522 = vtanh.pop %v1508
    %v1523 = vmul.f32 %v1518, 0.0
    %v1524 = vmul.f32 %v1520, 0.0
    %1527 = vrot.lane.b32.xlu0 %v1521, 32
    %v1528 = vpop.permute.xlu0 %1527
    %1529 = vrot.lane.b32.xlu0 %v1522, 32
    %v1530 = vpop.permute.xlu0 %1529
    %v1533 = vmul.f32 %v1518, %v1528
    %v1534 = vmul.f32 %v1520, %v1530
    %1537 = vrot.lane.b32.xlu0 %v1533, 32
    %v1538 = vpop.permute.xlu0 %1537
    %1539 = vrot.lane.b32.xlu0 %v1534, 32
    %v1540 = vpop.permute.xlu0 %1539
    %v1543 = vadd.f32 %v1523, %v1538
    %v1544 = vadd.f32 %v1524, %v1540
    %v1545 = vtanh.pop %v1543
    %v1546 = vtanh.pop %v1544
    %1549 = vrot.lane.b32.xlu0 %v1545, 32
    %v1550 = vpop.permute.xlu0 %1549
    %1551 = vrot.lane.b32.xlu0 %v1546, 32
    %v1552 = vpop.permute.xlu0 %1551
    %v1555 = vmul.f32 %v1518, %v1550
    %v1556 = vmul.f32 %v1520, %v1552
    %v1557 = vsel %vm476, %v1543, 0.0
    %v1558 = vsel %vm477, %v1544, 0.0
    %v1559 = vsel %vm476, %v1555, 0.0
    %v1560 = vsel %vm477, %v1556, 0.0
    %v1561 = vadd.f32 %v1559, 0.0
    %v1562 = vadd.f32 %v1560, 0.0
    %v1563 = vpack.c.bf16 %v1560, %v1559
    %1565 = vrot.lane.b32.xlu0 %v1563, 64
    %v1566 = vpop.permute.xlu0 %1565
    %v1568 = vsel %vm371, %v1566, 0
    %1570 = vmatprep.subr.bf16.mxu0 0
    %1571 = vmatpush1.bf16.msra.mxu0 %v1462
    %1572 = vmatprep.subr.bf16.mxu0 0
    %1573 = vmatpush1.bf16.msra.mxu0 %v1463
    %1574 = vmatprep.subr.bf16.mxu0 0
    %1575 = vmatpush1.bf16.msra.mxu0 0
    %1576 = vmatprep.subr.bf16.mxu0 0
    %1577 = vmatpush1.bf16.msra.mxu0 0
    %1578 = vmatprep.subr.bf16.mxu0 0
    %1579 = vmatpush1.bf16.msra.mxu0 0
    %1580 = vmatprep.subr.bf16.mxu0 0
    %1581 = vmatpush1.bf16.msra.mxu0 0
    %1582 = vmatprep.subr.bf16.mxu0 0
    %1583 = vmatpush1.bf16.msra.mxu0 0
    %1584 = vmatprep.subr.bf16.mxu0 0
    %1585 = vmatpush1.bf16.msra.mxu0 0
    %1586 = vmatprep.subr.bf16.mxu0 0
    %1587 = vmatpush1.bf16.msra.mxu0 0
    %1588 = vmatprep.subr.bf16.mxu0 0
    %1589 = vmatpush1.bf16.msra.mxu0 0
    %1590 = vmatprep.subr.bf16.mxu0 0
    %1591 = vmatpush1.bf16.msra.mxu0 0
    %1592 = vmatprep.subr.bf16.mxu0 0
    %1593 = vmatpush1.bf16.msra.mxu0 0
    %1594 = vmatprep.subr.bf16.mxu0 0
    %1595 = vmatpush1.bf16.msra.mxu0 0
    %1596 = vmatprep.subr.bf16.mxu0 0
    %1597 = vmatpush1.bf16.msra.mxu0 0
    %1598 = vmatprep.subr.bf16.mxu0 0
    %1599 = vmatpush1.bf16.msra.mxu0 0
    %1600 = vmatprep.subr.bf16.mxu0 0
    %1601 = vmatpush1.bf16.msra.mxu0 0
    %1602 = vmatprep.mubr.bf16.mxu0 0
    %1603 = vmatmul.mubr.bf16.gmra.mrb[0].mxu0 %v1568
    %v1604 = vpop.f32.mrb[0].mxu0
    %v1605 = vadd.f32 0.0, %v1604
    %v1606 = vpop.f32.mrb[0].mxu0
    %v1607 = vpop.f32.mrb[0].mxu0
    %v1608 = vadd.f32 0.0, %v1607
    %v1609 = vpop.f32.mrb[0].mxu0
    %1610 = vdwg.mxu0
    %v1611 = vadd.f32 %v1400, %v1605
    %v1612 = vadd.f32 %v1403, %v1608
    %v1613 = vxor.u32 %v1611, 2147483648
    %v1614 = vxor.u32 %v1612, 2147483648
    %v1615 = vmul.f32 %v1613, 1.442695
    %v1616 = vpow.pop %v1615
    %v1617 = vmul.f32 %v1614, 1.442695
    %v1618 = vpow.pop %v1617
    %v1619 = vadd.f32 %v1616, 1.0
    %v1620 = vadd.f32 %v1618, 1.0
    %v1621 = vrcp.pop %v1619
    %v1622 = vmul.f32 1.0, %v1621
    %v1623 = vrcp.pop %v1620
    %v1624 = vmul.f32 1.0, %v1623
    %v1625 = vtanh.pop %v1611
    %v1626 = vtanh.pop %v1612
    %v1627 = vmul.f32 %v1622, %v1557
    %v1628 = vmul.f32 %v1624, %v1558
    %1631 = vrot.lane.b32.xlu0 %v1625, 32
    %v1632 = vpop.permute.xlu0 %1631
    %1633 = vrot.lane.b32.xlu0 %v1626, 32
    %v1634 = vpop.permute.xlu0 %1633
    %v1637 = vmul.f32 %v1622, %v1632
    %v1638 = vmul.f32 %v1624, %v1634
    %1641 = vrot.lane.b32.xlu0 %v1637, 32
    %v1642 = vpop.permute.xlu0 %1641
    %1643 = vrot.lane.b32.xlu0 %v1638, 32
    %v1644 = vpop.permute.xlu0 %1643
    %v1647 = vadd.f32 %v1627, %v1642
    %v1648 = vadd.f32 %v1628, %v1644
    %v1649 = vtanh.pop %v1647
    %v1650 = vtanh.pop %v1648
    %1653 = vrot.lane.b32.xlu0 %v1649, 32
    %v1654 = vpop.permute.xlu0 %1653
    %1655 = vrot.lane.b32.xlu0 %v1650, 32
    %v1656 = vpop.permute.xlu0 %1655
    %v1659 = vmul.f32 %v1622, %v1654
    %v1660 = vmul.f32 %v1624, %v1656
    %v1661 = vsel %vm590, %v1647, %v1557
    %v1662 = vsel %vm591, %v1648, %v1558
    %v1663 = vsel %vm590, %v1659, %v1559
    %v1664 = vsel %vm591, %v1660, %v1560
    %v1665 = vsel %vm590, %v1659, 0.0
    %v1666 = vsel %vm591, %v1660, 0.0
    %v1667 = vadd.f32 %v1561, %v1665
    %v1668 = vadd.f32 %v1562, %v1666
    %v1669 = vpack.c.bf16 %v1664, %v1663
    %1671 = vrot.lane.b32.xlu0 %v1669, 64
    %v1672 = vpop.permute.xlu0 %1671
    %v1674 = vsel %vm371, %v1672, 0
    %1676 = vmatprep.subr.bf16.mxu0 0
    %1677 = vmatpush1.bf16.msra.mxu0 %v1462
    %1678 = vmatprep.subr.bf16.mxu0 0
    %1679 = vmatpush1.bf16.msra.mxu0 %v1463
    %1680 = vmatprep.subr.bf16.mxu0 0
    %1681 = vmatpush1.bf16.msra.mxu0 0
    %1682 = vmatprep.subr.bf16.mxu0 0
    %1683 = vmatpush1.bf16.msra.mxu0 0
    %1684 = vmatprep.subr.bf16.mxu0 0
    %1685 = vmatpush1.bf16.msra.mxu0 0
    %1686 = vmatprep.subr.bf16.mxu0 0
    %1687 = vmatpush1.bf16.msra.mxu0 0
    %1688 = vmatprep.subr.bf16.mxu0 0
    %1689 = vmatpush1.bf16.msra.mxu0 0
    %1690 = vmatprep.subr.bf16.mxu0 0
    %1691 = vmatpush1.bf16.msra.mxu0 0
    %1692 = vmatprep.subr.bf16.mxu0 0
    %1693 = vmatpush1.bf16.msra.mxu0 0
    %1694 = vmatprep.subr.bf16.mxu0 0
    %1695 = vmatpush1.bf16.msra.mxu0 0
    %1696 = vmatprep.subr.bf16.mxu0 0
    %1697 = vmatpush1.bf16.msra.mxu0 0
    %1698 = vmatprep.subr.bf16.mxu0 0
    %1699 = vmatpush1.bf16.msra.mxu0 0
    %1700 = vmatprep.subr.bf16.mxu0 0
    %1701 = vmatpush1.bf16.msra.mxu0 0
    %1702 = vmatprep.subr.bf16.mxu0 0
    %1703 = vmatpush1.bf16.msra.mxu0 0
    %1704 = vmatprep.subr.bf16.mxu0 0
    %1705 = vmatpush1.bf16.msra.mxu0 0
    %1706 = vmatprep.subr.bf16.mxu0 0
    %1707 = vmatpush1.bf16.msra.mxu0 0
    %1708 = vmatprep.mubr.bf16.mxu0 0
    %1709 = vmatmul.mubr.bf16.gmra.mrb[0].mxu0 %v1674
    %v1710 = vpop.f32.mrb[0].mxu0
    %v1711 = vadd.f32 0.0, %v1710
    %v1712 = vpop.f32.mrb[0].mxu0
    %v1713 = vpop.f32.mrb[0].mxu0
    %v1714 = vadd.f32 0.0, %v1713
    %v1715 = vpop.f32.mrb[0].mxu0
    %1716 = vdwg.mxu0
    %v1717 = vadd.f32 %v1408, %v1711
    %v1718 = vadd.f32 %v1411, %v1714
    %v1719 = vxor.u32 %v1717, 2147483648
    %v1720 = vxor.u32 %v1718, 2147483648
    %v1721 = vmul.f32 %v1719, 1.442695
    %v1722 = vpow.pop %v1721
    %v1723 = vmul.f32 %v1720, 1.442695
    %v1724 = vpow.pop %v1723
    %v1725 = vadd.f32 %v1722, 1.0
    %v1726 = vadd.f32 %v1724, 1.0
    %v1727 = vrcp.pop %v1725
    %v1728 = vmul.f32 1.0, %v1727
    %v1729 = vrcp.pop %v1726
    %v1730 = vmul.f32 1.0, %v1729
    %v1731 = vtanh.pop %v1717
    %v1732 = vtanh.pop %v1718
    %v1733 = vmul.f32 %v1728, %v1661
    %v1734 = vmul.f32 %v1730, %v1662
    %1737 = vrot.lane.b32.xlu0 %v1731, 32
    %v1738 = vpop.permute.xlu0 %1737
    %1739 = vrot.lane.b32.xlu0 %v1732, 32
    %v1740 = vpop.permute.xlu0 %1739
    %v1743 = vmul.f32 %v1728, %v1738
    %v1744 = vmul.f32 %v1730, %v1740
    %1747 = vrot.lane.b32.xlu0 %v1743, 32
    %v1748 = vpop.permute.xlu0 %1747
    %1749 = vrot.lane.b32.xlu0 %v1744, 32
    %v1750 = vpop.permute.xlu0 %1749
    %v1753 = vadd.f32 %v1733, %v1748
    %v1754 = vadd.f32 %v1734, %v1750
    %v1755 = vtanh.pop %v1753
    %v1756 = vtanh.pop %v1754
    %1759 = vrot.lane.b32.xlu0 %v1755, 32
    %v1760 = vpop.permute.xlu0 %1759
    %1761 = vrot.lane.b32.xlu0 %v1756, 32
    %v1762 = vpop.permute.xlu0 %1761
    %v1765 = vmul.f32 %v1728, %v1760
    %v1766 = vmul.f32 %v1730, %v1762
    %v1767 = vsel %vm704, %v1753, %v1661
    %v1768 = vsel %vm705, %v1754, %v1662
    %v1769 = vsel %vm704, %v1765, %v1663
    %v1770 = vsel %vm705, %v1766, %v1664
    %v1771 = vsel %vm704, %v1765, 0.0
    %v1772 = vsel %vm705, %v1766, 0.0
    %v1773 = vadd.f32 %v1667, %v1771
    %v1774 = vadd.f32 %v1668, %v1772
    %v1775 = vpack.c.bf16 %v1770, %v1769
    %1777 = vrot.lane.b32.xlu0 %v1775, 64
    %v1778 = vpop.permute.xlu0 %1777
    %v1780 = vsel %vm371, %v1778, 0
    %1782 = vmatprep.subr.bf16.mxu0 0
    %1783 = vmatpush1.bf16.msra.mxu0 %v1462
    %1784 = vmatprep.subr.bf16.mxu0 0
    %1785 = vmatpush1.bf16.msra.mxu0 %v1463
    %1786 = vmatprep.subr.bf16.mxu0 0
    %1787 = vmatpush1.bf16.msra.mxu0 0
    %1788 = vmatprep.subr.bf16.mxu0 0
    %1789 = vmatpush1.bf16.msra.mxu0 0
    %1790 = vmatprep.subr.bf16.mxu0 0
    %1791 = vmatpush1.bf16.msra.mxu0 0
    %1792 = vmatprep.subr.bf16.mxu0 0
    %1793 = vmatpush1.bf16.msra.mxu0 0
    %1794 = vmatprep.subr.bf16.mxu0 0
    %1795 = vmatpush1.bf16.msra.mxu0 0
    %1796 = vmatprep.subr.bf16.mxu0 0
    %1797 = vmatpush1.bf16.msra.mxu0 0
    %1798 = vmatprep.subr.bf16.mxu0 0
    %1799 = vmatpush1.bf16.msra.mxu0 0
    %1800 = vmatprep.subr.bf16.mxu0 0
    %1801 = vmatpush1.bf16.msra.mxu0 0
    %1802 = vmatprep.subr.bf16.mxu0 0
    %1803 = vmatpush1.bf16.msra.mxu0 0
    %1804 = vmatprep.subr.bf16.mxu0 0
    %1805 = vmatpush1.bf16.msra.mxu0 0
    %1806 = vmatprep.subr.bf16.mxu0 0
    %1807 = vmatpush1.bf16.msra.mxu0 0
    %1808 = vmatprep.subr.bf16.mxu0 0
    %1809 = vmatpush1.bf16.msra.mxu0 0
    %1810 = vmatprep.subr.bf16.mxu0 0
    %1811 = vmatpush1.bf16.msra.mxu0 0
    %1812 = vmatprep.subr.bf16.mxu0 0
    %1813 = vmatpush1.bf16.msra.mxu0 0
    %1814 = vmatprep.mubr.bf16.mxu0 0
    %1815 = vmatmul.mubr.bf16.gmra.mrb[0].mxu0 %v1780
    %v1816 = vpop.f32.mrb[0].mxu0
    %v1817 = vadd.f32 0.0, %v1816
    %v1818 = vpop.f32.mrb[0].mxu0
    %v1819 = vpop.f32.mrb[0].mxu0
    %v1820 = vadd.f32 0.0, %v1819
    %v1821 = vpop.f32.mrb[0].mxu0
    %1822 = vdwg.mxu0
    %v1823 = vadd.f32 %v1416, %v1817
    %v1824 = vadd.f32 %v1419, %v1820
    %v1825 = vxor.u32 %v1823, 2147483648
    %v1826 = vxor.u32 %v1824, 2147483648
    %v1827 = vmul.f32 %v1825, 1.442695
    %v1828 = vpow.pop %v1827
    %v1829 = vmul.f32 %v1826, 1.442695
    %v1830 = vpow.pop %v1829
    %v1831 = vadd.f32 %v1828, 1.0
    %v1832 = vadd.f32 %v1830, 1.0
    %v1833 = vrcp.pop %v1831
    %v1834 = vmul.f32 1.0, %v1833
    %v1835 = vrcp.pop %v1832
    %v1836 = vmul.f32 1.0, %v1835
    %v1837 = vtanh.pop %v1823
    %v1838 = vtanh.pop %v1824
    %v1839 = vmul.f32 %v1834, %v1767
    %v1840 = vmul.f32 %v1836, %v1768
    %1843 = vrot.lane.b32.xlu0 %v1837, 32
    %v1844 = vpop.permute.xlu0 %1843
    %1845 = vrot.lane.b32.xlu0 %v1838, 32
    %v1846 = vpop.permute.xlu0 %1845
    %v1849 = vmul.f32 %v1834, %v1844
    %v1850 = vmul.f32 %v1836, %v1846
    %1853 = vrot.lane.b32.xlu0 %v1849, 32
    %v1854 = vpop.permute.xlu0 %1853
    %1855 = vrot.lane.b32.xlu0 %v1850, 32
    %v1856 = vpop.permute.xlu0 %1855
    %v1859 = vadd.f32 %v1839, %v1854
    %v1860 = vadd.f32 %v1840, %v1856
    %v1861 = vtanh.pop %v1859
    %v1862 = vtanh.pop %v1860
    %1865 = vrot.lane.b32.xlu0 %v1861, 32
    %v1866 = vpop.permute.xlu0 %1865
    %1867 = vrot.lane.b32.xlu0 %v1862, 32
    %v1868 = vpop.permute.xlu0 %1867
    %v1871 = vmul.f32 %v1834, %v1866
    %v1872 = vmul.f32 %v1836, %v1868
    %v1873 = vsel %vm818, %v1859, %v1767
    %v1874 = vsel %vm819, %v1860, %v1768
    %v1875 = vsel %vm818, %v1871, %v1769
    %v1876 = vsel %vm819, %v1872, %v1770
    %v1877 = vsel %vm818, %v1871, 0.0
    %v1878 = vsel %vm819, %v1872, 0.0
    %v1879 = vadd.f32 %v1773, %v1877
    %v1880 = vadd.f32 %v1774, %v1878
    %v1881 = vpack.c.bf16 %v1876, %v1875
    %1883 = vrot.lane.b32.xlu0 %v1881, 64
    %v1884 = vpop.permute.xlu0 %1883
    %v1886 = vsel %vm371, %v1884, 0
    %1888 = vmatprep.subr.bf16.mxu0 0
    %1889 = vmatpush1.bf16.msra.mxu0 %v1462
    %1890 = vmatprep.subr.bf16.mxu0 0
    %1891 = vmatpush1.bf16.msra.mxu0 %v1463
    %1892 = vmatprep.subr.bf16.mxu0 0
    %1893 = vmatpush1.bf16.msra.mxu0 0
    %1894 = vmatprep.subr.bf16.mxu0 0
    %1895 = vmatpush1.bf16.msra.mxu0 0
    %1896 = vmatprep.subr.bf16.mxu0 0
    %1897 = vmatpush1.bf16.msra.mxu0 0
    %1898 = vmatprep.subr.bf16.mxu0 0
    %1899 = vmatpush1.bf16.msra.mxu0 0
    %1900 = vmatprep.subr.bf16.mxu0 0
    %1901 = vmatpush1.bf16.msra.mxu0 0
    %1902 = vmatprep.subr.bf16.mxu0 0
    %1903 = vmatpush1.bf16.msra.mxu0 0
    %1904 = vmatprep.subr.bf16.mxu0 0
    %1905 = vmatpush1.bf16.msra.mxu0 0
    %1906 = vmatprep.subr.bf16.mxu0 0
    %1907 = vmatpush1.bf16.msra.mxu0 0
    %1908 = vmatprep.subr.bf16.mxu0 0
    %1909 = vmatpush1.bf16.msra.mxu0 0
    %1910 = vmatprep.subr.bf16.mxu0 0
    %1911 = vmatpush1.bf16.msra.mxu0 0
    %1912 = vmatprep.subr.bf16.mxu0 0
    %1913 = vmatpush1.bf16.msra.mxu0 0
    %1914 = vmatprep.subr.bf16.mxu0 0
    %1915 = vmatpush1.bf16.msra.mxu0 0
    %1916 = vmatprep.subr.bf16.mxu0 0
    %1917 = vmatpush1.bf16.msra.mxu0 0
    %1918 = vmatprep.subr.bf16.mxu0 0
    %1919 = vmatpush1.bf16.msra.mxu0 0
    %1920 = vmatprep.mubr.bf16.mxu0 0
    %1921 = vmatmul.mubr.bf16.gmra.mrb[0].mxu0 %v1886
    %v1922 = vpop.f32.mrb[0].mxu0
    %v1923 = vadd.f32 0.0, %v1922
    %v1924 = vpop.f32.mrb[0].mxu0
    %v1925 = vpop.f32.mrb[0].mxu0
    %v1926 = vadd.f32 0.0, %v1925
    %v1927 = vpop.f32.mrb[0].mxu0
    %1928 = vdwg.mxu0
    %v1929 = vadd.f32 %v1424, %v1923
    %v1930 = vadd.f32 %v1427, %v1926
    %v1931 = vxor.u32 %v1929, 2147483648
    %v1932 = vxor.u32 %v1930, 2147483648
    %v1933 = vmul.f32 %v1931, 1.442695
    %v1934 = vpow.pop %v1933
    %v1935 = vmul.f32 %v1932, 1.442695
    %v1936 = vpow.pop %v1935
    %v1937 = vadd.f32 %v1934, 1.0
    %v1938 = vadd.f32 %v1936, 1.0
    %v1939 = vrcp.pop %v1937
    %v1940 = vmul.f32 1.0, %v1939
    %v1941 = vrcp.pop %v1938
    %v1942 = vmul.f32 1.0, %v1941
    %v1943 = vtanh.pop %v1929
    %v1944 = vtanh.pop %v1930
    %v1945 = vmul.f32 %v1940, %v1873
    %v1946 = vmul.f32 %v1942, %v1874
    %1949 = vrot.lane.b32.xlu0 %v1943, 32
    %v1950 = vpop.permute.xlu0 %1949
    %1951 = vrot.lane.b32.xlu0 %v1944, 32
    %v1952 = vpop.permute.xlu0 %1951
    %v1955 = vmul.f32 %v1940, %v1950
    %v1956 = vmul.f32 %v1942, %v1952
    %1959 = vrot.lane.b32.xlu0 %v1955, 32
    %v1960 = vpop.permute.xlu0 %1959
    %1961 = vrot.lane.b32.xlu0 %v1956, 32
    %v1962 = vpop.permute.xlu0 %1961
    %v1965 = vadd.f32 %v1945, %v1960
    %v1966 = vadd.f32 %v1946, %v1962
    %v1967 = vtanh.pop %v1965
    %v1968 = vtanh.pop %v1966
    %1971 = vrot.lane.b32.xlu0 %v1967, 32
    %v1972 = vpop.permute.xlu0 %1971
    %1973 = vrot.lane.b32.xlu0 %v1968, 32
    %v1974 = vpop.permute.xlu0 %1973
    %v1977 = vmul.f32 %v1940, %v1972
    %v1978 = vmul.f32 %v1942, %v1974
    %v1979 = vsel %vm932, %v1965, %v1873
    %v1980 = vsel %vm933, %v1966, %v1874
    %v1981 = vsel %vm932, %v1977, %v1875
    %v1982 = vsel %vm933, %v1978, %v1876
    %v1983 = vsel %vm932, %v1977, 0.0
    %v1984 = vsel %vm933, %v1978, 0.0
    %v1985 = vadd.f32 %v1879, %v1983
    %v1986 = vadd.f32 %v1880, %v1984
    %v1987 = vpack.c.bf16 %v1982, %v1981
    %1989 = vrot.lane.b32.xlu0 %v1987, 64
    %v1990 = vpop.permute.xlu0 %1989
    %v1992 = vsel %vm371, %v1990, 0
    %1994 = vmatprep.subr.bf16.mxu0 0
    %1995 = vmatpush1.bf16.msra.mxu0 %v1462
    %1996 = vmatprep.subr.bf16.mxu0 0
    %1997 = vmatpush1.bf16.msra.mxu0 %v1463
    %1998 = vmatprep.subr.bf16.mxu0 0
    %1999 = vmatpush1.bf16.msra.mxu0 0
    %2000 = vmatprep.subr.bf16.mxu0 0
    %2001 = vmatpush1.bf16.msra.mxu0 0
    %2002 = vmatprep.subr.bf16.mxu0 0
    %2003 = vmatpush1.bf16.msra.mxu0 0
    %2004 = vmatprep.subr.bf16.mxu0 0
    %2005 = vmatpush1.bf16.msra.mxu0 0
    %2006 = vmatprep.subr.bf16.mxu0 0
    %2007 = vmatpush1.bf16.msra.mxu0 0
    %2008 = vmatprep.subr.bf16.mxu0 0
    %2009 = vmatpush1.bf16.msra.mxu0 0
    %2010 = vmatprep.subr.bf16.mxu0 0
    %2011 = vmatpush1.bf16.msra.mxu0 0
    %2012 = vmatprep.subr.bf16.mxu0 0
    %2013 = vmatpush1.bf16.msra.mxu0 0
    %2014 = vmatprep.subr.bf16.mxu0 0
    %2015 = vmatpush1.bf16.msra.mxu0 0
    %2016 = vmatprep.subr.bf16.mxu0 0
    %2017 = vmatpush1.bf16.msra.mxu0 0
    %2018 = vmatprep.subr.bf16.mxu0 0
    %2019 = vmatpush1.bf16.msra.mxu0 0
    %2020 = vmatprep.subr.bf16.mxu0 0
    %2021 = vmatpush1.bf16.msra.mxu0 0
    %2022 = vmatprep.subr.bf16.mxu0 0
    %2023 = vmatpush1.bf16.msra.mxu0 0
    %2024 = vmatprep.subr.bf16.mxu0 0
    %2025 = vmatpush1.bf16.msra.mxu0 0
    %2026 = vmatprep.mubr.bf16.mxu0 0
    %2027 = vmatmul.mubr.bf16.gmra.mrb[0].mxu0 %v1992
    %v2028 = vpop.f32.mrb[0].mxu0
    %v2029 = vadd.f32 0.0, %v2028
    %v2030 = vpop.f32.mrb[0].mxu0
    %v2031 = vpop.f32.mrb[0].mxu0
    %v2032 = vadd.f32 0.0, %v2031
    %v2033 = vpop.f32.mrb[0].mxu0
    %2034 = vdwg.mxu0
    %v2035 = vadd.f32 %v1432, %v2029
    %v2036 = vadd.f32 %v1435, %v2032
    %v2037 = vxor.u32 %v2035, 2147483648
    %v2038 = vxor.u32 %v2036, 2147483648
    %v2039 = vmul.f32 %v2037, 1.442695
    %v2040 = vpow.pop %v2039
    %v2041 = vmul.f32 %v2038, 1.442695
    %v2042 = vpow.pop %v2041
    %v2043 = vadd.f32 %v2040, 1.0
    %v2044 = vadd.f32 %v2042, 1.0
    %v2045 = vrcp.pop %v2043
    %v2046 = vmul.f32 1.0, %v2045
    %v2047 = vrcp.pop %v2044
    %v2048 = vmul.f32 1.0, %v2047
    %v2049 = vtanh.pop %v2035
    %v2050 = vtanh.pop %v2036
    %v2051 = vmul.f32 %v2046, %v1979
    %v2052 = vmul.f32 %v2048, %v1980
    %2055 = vrot.lane.b32.xlu0 %v2049, 32
    %v2056 = vpop.permute.xlu0 %2055
    %2057 = vrot.lane.b32.xlu0 %v2050, 32
    %v2058 = vpop.permute.xlu0 %2057
    %v2061 = vmul.f32 %v2046, %v2056
    %v2062 = vmul.f32 %v2048, %v2058
    %2065 = vrot.lane.b32.xlu0 %v2061, 32
    %v2066 = vpop.permute.xlu0 %2065
    %2067 = vrot.lane.b32.xlu0 %v2062, 32
    %v2068 = vpop.permute.xlu0 %2067
    %v2071 = vadd.f32 %v2051, %v2066
    %v2072 = vadd.f32 %v2052, %v2068
    %v2073 = vtanh.pop %v2071
    %v2074 = vtanh.pop %v2072
    %2077 = vrot.lane.b32.xlu0 %v2073, 32
    %v2078 = vpop.permute.xlu0 %2077
    %2079 = vrot.lane.b32.xlu0 %v2074, 32
    %v2080 = vpop.permute.xlu0 %2079
    %v2083 = vmul.f32 %v2046, %v2078
    %v2084 = vmul.f32 %v2048, %v2080
    %v2085 = vsel %vm1046, %v2071, %v1979
    %v2086 = vsel %vm1047, %v2072, %v1980
    %v2087 = vsel %vm1046, %v2083, %v1981
    %v2088 = vsel %vm1047, %v2084, %v1982
    %v2089 = vsel %vm1046, %v2083, 0.0
    %v2090 = vsel %vm1047, %v2084, 0.0
    %v2091 = vadd.f32 %v1985, %v2089
    %v2092 = vadd.f32 %v1986, %v2090
    %v2093 = vpack.c.bf16 %v2088, %v2087
    %2095 = vrot.lane.b32.xlu0 %v2093, 64
    %v2096 = vpop.permute.xlu0 %2095
    %v2098 = vsel %vm371, %v2096, 0
    %2100 = vmatprep.subr.bf16.mxu0 0
    %2101 = vmatpush1.bf16.msra.mxu0 %v1462
    %2102 = vmatprep.subr.bf16.mxu0 0
    %2103 = vmatpush1.bf16.msra.mxu0 %v1463
    %2104 = vmatprep.subr.bf16.mxu0 0
    %2105 = vmatpush1.bf16.msra.mxu0 0
    %2106 = vmatprep.subr.bf16.mxu0 0
    %2107 = vmatpush1.bf16.msra.mxu0 0
    %2108 = vmatprep.subr.bf16.mxu0 0
    %2109 = vmatpush1.bf16.msra.mxu0 0
    %2110 = vmatprep.subr.bf16.mxu0 0
    %2111 = vmatpush1.bf16.msra.mxu0 0
    %2112 = vmatprep.subr.bf16.mxu0 0
    %2113 = vmatpush1.bf16.msra.mxu0 0
    %2114 = vmatprep.subr.bf16.mxu0 0
    %2115 = vmatpush1.bf16.msra.mxu0 0
    %2116 = vmatprep.subr.bf16.mxu0 0
    %2117 = vmatpush1.bf16.msra.mxu0 0
    %2118 = vmatprep.subr.bf16.mxu0 0
    %2119 = vmatpush1.bf16.msra.mxu0 0
    %2120 = vmatprep.subr.bf16.mxu0 0
    %2121 = vmatpush1.bf16.msra.mxu0 0
    %2122 = vmatprep.subr.bf16.mxu0 0
    %2123 = vmatpush1.bf16.msra.mxu0 0
    %2124 = vmatprep.subr.bf16.mxu0 0
    %2125 = vmatpush1.bf16.msra.mxu0 0
    %2126 = vmatprep.subr.bf16.mxu0 0
    %2127 = vmatpush1.bf16.msra.mxu0 0
    %2128 = vmatprep.subr.bf16.mxu0 0
    %2129 = vmatpush1.bf16.msra.mxu0 0
    %2130 = vmatprep.subr.bf16.mxu0 0
    %2131 = vmatpush1.bf16.msra.mxu0 0
    %2132 = vmatprep.mubr.bf16.mxu0 0
    %2133 = vmatmul.mubr.bf16.gmra.mrb[0].mxu0 %v2098
    %v2134 = vpop.f32.mrb[0].mxu0
    %v2135 = vadd.f32 0.0, %v2134
    %v2136 = vpop.f32.mrb[0].mxu0
    %v2137 = vpop.f32.mrb[0].mxu0
    %v2138 = vadd.f32 0.0, %v2137
    %v2139 = vpop.f32.mrb[0].mxu0
    %2140 = vdwg.mxu0
    %v2141 = vadd.f32 %v1440, %v2135
    %v2142 = vadd.f32 %v1443, %v2138
    %v2143 = vxor.u32 %v2141, 2147483648
    %v2144 = vxor.u32 %v2142, 2147483648
    %v2145 = vmul.f32 %v2143, 1.442695
    %v2146 = vpow.pop %v2145
    %v2147 = vmul.f32 %v2144, 1.442695
    %v2148 = vpow.pop %v2147
    %v2149 = vadd.f32 %v2146, 1.0
    %v2150 = vadd.f32 %v2148, 1.0
    %v2151 = vrcp.pop %v2149
    %v2152 = vmul.f32 1.0, %v2151
    %v2153 = vrcp.pop %v2150
    %v2154 = vmul.f32 1.0, %v2153
    %v2155 = vtanh.pop %v2141
    %v2156 = vtanh.pop %v2142
    %v2157 = vmul.f32 %v2152, %v2085
    %v2158 = vmul.f32 %v2154, %v2086
    %2161 = vrot.lane.b32.xlu0 %v2155, 32
    %v2162 = vpop.permute.xlu0 %2161
    %2163 = vrot.lane.b32.xlu0 %v2156, 32
    %v2164 = vpop.permute.xlu0 %2163
    %v2167 = vmul.f32 %v2152, %v2162
    %v2168 = vmul.f32 %v2154, %v2164
    %2171 = vrot.lane.b32.xlu0 %v2167, 32
    %v2172 = vpop.permute.xlu0 %2171
    %2173 = vrot.lane.b32.xlu0 %v2168, 32
    %v2174 = vpop.permute.xlu0 %2173
    %v2177 = vadd.f32 %v2157, %v2172
    %v2178 = vadd.f32 %v2158, %v2174
    %v2179 = vtanh.pop %v2177
    %v2180 = vtanh.pop %v2178
    %2183 = vrot.lane.b32.xlu0 %v2179, 32
    %v2184 = vpop.permute.xlu0 %2183
    %2185 = vrot.lane.b32.xlu0 %v2180, 32
    %v2186 = vpop.permute.xlu0 %2185
    %v2189 = vmul.f32 %v2152, %v2184
    %v2190 = vmul.f32 %v2154, %v2186
    %v2191 = vsel %vm1160, %v2177, %v2085
    %v2192 = vsel %vm1161, %v2178, %v2086
    %v2193 = vsel %vm1160, %v2189, %v2087
    %v2194 = vsel %vm1161, %v2190, %v2088
    %v2195 = vsel %vm1160, %v2189, 0.0
    %v2196 = vsel %vm1161, %v2190, 0.0
    %v2197 = vadd.f32 %v2091, %v2195
    %v2198 = vadd.f32 %v2092, %v2196
    %v2199 = vpack.c.bf16 %v2194, %v2193
    %2201 = vrot.lane.b32.xlu0 %v2199, 64
    %v2202 = vpop.permute.xlu0 %2201
    %v2204 = vsel %vm371, %v2202, 0
    %2206 = vmatprep.subr.bf16.mxu0 0
    %2207 = vmatpush1.bf16.msra.mxu0 %v1462
    %2208 = vmatprep.subr.bf16.mxu0 0
    %2209 = vmatpush1.bf16.msra.mxu0 %v1463
    %2210 = vmatprep.subr.bf16.mxu0 0
    %2211 = vmatpush1.bf16.msra.mxu0 0
    %2212 = vmatprep.subr.bf16.mxu0 0
    %2213 = vmatpush1.bf16.msra.mxu0 0
    %2214 = vmatprep.subr.bf16.mxu0 0
    %2215 = vmatpush1.bf16.msra.mxu0 0
    %2216 = vmatprep.subr.bf16.mxu0 0
    %2217 = vmatpush1.bf16.msra.mxu0 0
    %2218 = vmatprep.subr.bf16.mxu0 0
    %2219 = vmatpush1.bf16.msra.mxu0 0
    %2220 = vmatprep.subr.bf16.mxu0 0
    %2221 = vmatpush1.bf16.msra.mxu0 0
    %2222 = vmatprep.subr.bf16.mxu0 0
    %2223 = vmatpush1.bf16.msra.mxu0 0
    %2224 = vmatprep.subr.bf16.mxu0 0
    %2225 = vmatpush1.bf16.msra.mxu0 0
    %2226 = vmatprep.subr.bf16.mxu0 0
    %2227 = vmatpush1.bf16.msra.mxu0 0
    %2228 = vmatprep.subr.bf16.mxu0 0
    %2229 = vmatpush1.bf16.msra.mxu0 0
    %2230 = vmatprep.subr.bf16.mxu0 0
    %2231 = vmatpush1.bf16.msra.mxu0 0
    %2232 = vmatprep.subr.bf16.mxu0 0
    %2233 = vmatpush1.bf16.msra.mxu0 0
    %2234 = vmatprep.subr.bf16.mxu0 0
    %2235 = vmatpush1.bf16.msra.mxu0 0
    %2236 = vmatprep.subr.bf16.mxu0 0
    %2237 = vmatpush1.bf16.msra.mxu0 0
    %2238 = vmatprep.mubr.bf16.mxu0 0
    %2239 = vmatmul.mubr.bf16.gmra.mrb[0].mxu0 %v2204
    %v2240 = vpop.f32.mrb[0].mxu0
    %v2241 = vadd.f32 0.0, %v2240
    %v2242 = vpop.f32.mrb[0].mxu0
    %v2243 = vpop.f32.mrb[0].mxu0
    %v2244 = vadd.f32 0.0, %v2243
    %v2245 = vpop.f32.mrb[0].mxu0
    %2246 = vdwg.mxu0
    %v2247 = vadd.f32 %v1448, %v2241
    %v2248 = vadd.f32 %v1451, %v2244
    %v2249 = vxor.u32 %v2247, 2147483648
    %v2250 = vxor.u32 %v2248, 2147483648
    %v2251 = vmul.f32 %v2249, 1.442695
    %v2252 = vpow.pop %v2251
    %v2253 = vmul.f32 %v2250, 1.442695
    %v2254 = vpow.pop %v2253
    %v2255 = vadd.f32 %v2252, 1.0
    %v2256 = vadd.f32 %v2254, 1.0
    %v2257 = vrcp.pop %v2255
    %v2258 = vmul.f32 1.0, %v2257
    %v2259 = vrcp.pop %v2256
    %v2260 = vmul.f32 1.0, %v2259
    %v2261 = vtanh.pop %v2247
    %v2262 = vtanh.pop %v2248
    %v2263 = vmul.f32 %v2258, %v2191
    %v2264 = vmul.f32 %v2260, %v2192
    %2267 = vrot.lane.b32.xlu0 %v2261, 32
    %v2268 = vpop.permute.xlu0 %2267
    %2269 = vrot.lane.b32.xlu0 %v2262, 32
    %v2270 = vpop.permute.xlu0 %2269
    %v2273 = vmul.f32 %v2258, %v2268
    %v2274 = vmul.f32 %v2260, %v2270
    %2277 = vrot.lane.b32.xlu0 %v2273, 32
    %v2278 = vpop.permute.xlu0 %2277
    %2279 = vrot.lane.b32.xlu0 %v2274, 32
    %v2280 = vpop.permute.xlu0 %2279
    %v2283 = vadd.f32 %v2263, %v2278
    %v2284 = vadd.f32 %v2264, %v2280
    %v2285 = vtanh.pop %v2283
    %v2286 = vtanh.pop %v2284
    %2289 = vrot.lane.b32.xlu0 %v2285, 32
    %v2290 = vpop.permute.xlu0 %2289
    %2291 = vrot.lane.b32.xlu0 %v2286, 32
    %v2292 = vpop.permute.xlu0 %2291
    %v2295 = vmul.f32 %v2258, %v2290
    %v2296 = vmul.f32 %v2260, %v2292
    %v2297 = vsel %vm1274, %v2295, 0.0
    %v2298 = vsel %vm1275, %v2296, 0.0
    %v2299 = vadd.f32 %v2197, %v2297
    %v2300 = vadd.f32 %v2198, %v2298
    %2302 = vset.pattern.permute.xlu0 0
    %2303 = vperm.xlu0 %2302, %v136
    %v2304 = vpop.permute.xlu0 %2303
    %2307 = vset.pattern.permute.xlu0 0
    %2308 = vperm.xlu0 %2307, %v137
    %v2309 = vpop.permute.xlu0 %2308
    %v2311 = vrcp.pop %v2304
    %v2312 = vmul.f32 %v2299, %v2311
    %v2313 = vrcp.pop %v2309
    %v2314 = vmul.f32 %v2300, %v2313
    %v2315 = vmul.f32 %v2312, %v2312
    %v2316 = vmul.f32 %v2314, %v2314
    %2319 = vrot.lane.b32.xlu0 %v2315, 64
    %v2320 = vpop.permute.xlu0 %2319
    %2321 = vrot.lane.b32.xlu0 %v2316, 64
    %v2322 = vpop.permute.xlu0 %2321
    %v2325 = vsel %vm371, %v2320, 0.0
    %2326 = vadd.xlane.f32.xlu0 %v2325
    %v2327 = vpop.xlane.xlu0 %2326
    %v2328 = vsel %vm371, %v2322, 0.0
    %2329 = vadd.xlane.f32.xlu0 %v2328
    %v2330 = vpop.xlane.xlu0 %2329
    %v2331 = vmax.f32 %v2327, 1e-24
    %v2332 = vmax.f32 %v2330, 1e-24
    %v2333 = vrsqrt.pop %v2331
    %v2334 = vrsqrt.pop %v2332
    %v2335 = vmul.f32 %v2312, %v2333
    %v2336 = vmul.f32 %v2314, %v2334
    %2339 = vrot.lane.b32.xlu0 %v2335, 64
    %v2340 = vpop.permute.xlu0 %2339
    %2341 = vrot.lane.b32.xlu0 %v2336, 64
    %v2342 = vpop.permute.xlu0 %2341
    %2345 = vst.msk [vmem:[#allocation17] sm:$0xff] %vm371, %v2340
    %2346 = vst.msk [vmem:[#allocation17 + $0x8] sm:$0xff] %vm371, %v2342
    // Predicated region
    $region66: #{tpu_custom_call.1} parent=1 // pred_check
      _
    $region67: #{tpu_custom_call.1} parent=1 // pred_check_branch
      %2348 = sbr.rel (0) target = $region69
    $region68: #{tpu_custom_call.1} parent=1 // pred_region
      %s2350 = ssub.s32 256, 256
      %2351 = vsyncadd [#allocation5], %s2350
      %s2352 = sshll.u32 [#allocation17], 4
      %s2353 = int_to_ptr.vmem [resolvable:$true] %s2352
      %2358 = dma.vmem_to_hbm [thread:$0]  %s2353, 256, %s8, [#allocation5], 128, 128, 8
    $region69: #{tpu_custom_call.1} parent=1 // pred_fallthru
      _
    // Predicated region
    $region70: #{tpu_custom_call.1} parent=1 // pred_check
      _
    $region71: #{tpu_custom_call.1} parent=1 // pred_check_branch
      %2360 = sbr.rel (0) target = $region73
    $region72: #{tpu_custom_call.1} parent=1 // pred_region
      %2361 = dma.done [#allocation5], 256
    $region73: #{tpu_custom_call.1} parent=1 // pred_fallthru
      _
    %2362 = vsyncpa [#allocation4], 1
    %2363 = vsyncpa [#allocation7], 1
    %2364 = vsyncpa [#allocation10], 1
    %2365 = vsyncpa [#allocation13], 1
    %2366 = vsyncpa [#allocation16], 1
    %2367 = vsyncpa [#allocation5], 1

</llo_original>
